<compile_context>
chip_gen: v7x
topology: tpu7x:2x2x1
jax: 0.10.0
libtpu: 0.0.40
codegen_flags: <defaults>
</compile_context>

<pallas_src>
import functools

import jax
import jax.numpy as jnp
from jax import lax
from jax.experimental import pallas as pl
from jax.experimental.pallas import tpu as pltpu


def _i32(x):
    """Python int (uint32 bit pattern) -> wrapped int32 jnp constant."""
    x &= 0xFFFFFFFF
    if x >= (1 << 31):
        x -= 1 << 32
    return jnp.int32(x)


# hash / mixing constants (murmur3-style finalizer + golden-ratio increments)
_K_ROW = 0x85EBCA6B
_K_COL = 0xC2B2AE35
_K_SEED = 0x9E3779B9
_K_DRAW = 0x27D4EB2F
_K_F1 = 0x7FEB352D
_K_F2 = 0x846CA68B


def _shr(x, n):
    """Logical (unsigned) right shift on int32."""
    return lax.shift_right_logical(x, jnp.int32(n))


def _bernoulli(pmf, salt, row_off, sample_dtype):
    """Bernoulli(pmf) sample from a counter-based hash PRNG.

    pmf: f32 [rows, cols]; salt: int32 (1,1) per-draw salt; row_off: int32
    scalar global row offset of this tile.  Returns 0/1 in `sample_dtype`.
    All integer math is int32 (wrapping) with logical shifts; the final
    compare is integer-domain so there is no uint->float convert.
    """
    shape = pmf.shape
    rows = lax.broadcasted_iota(jnp.int32, shape, 0) + row_off
    cols = lax.broadcasted_iota(jnp.int32, shape, 1)
    x = rows * _i32(_K_ROW) + cols * _i32(_K_COL)
    x = x ^ salt
    # avalanche finalizer
    x = x ^ _shr(x, 16)
    x = x * _i32(_K_F1)
    x = x ^ _shr(x, 15)
    x = x * _i32(_K_F2)
    x = x ^ _shr(x, 16)
    u24 = _shr(x, 8)                                      # 24 uniform bits, >= 0
    thresh = (pmf * jnp.float32(1 << 24)).astype(jnp.int32)
    samp = jnp.where(u24 < thresh, jnp.float32(1.0), jnp.float32(0.0))
    return samp.astype(sample_dtype)


def rbm_kernel(seed_ref, v_d_ref, v_m_ref, b_ref, c_ref, w_ref,
               llh_ref, v_m_out_ref, *, k, block_m):
    seed = seed_ref[...]                                  # (1, 1) int32
    row_off = pl.program_id(0) * block_m                  # global row offset

    v_d = v_d_ref[...]                                    # (bm, n_v) f32
    b_row = b_ref[...]                                    # (1, n_v)  f32
    c_row = c_ref[...]                                    # (1, n_h)  f32
    w_f32 = w_ref[...]                                    # (n_v, n_h) f32
    w_bf = w_f32.astype(jnp.bfloat16)                     # MXU operand

    bm, n_v = v_d.shape
    n_h = w_f32.shape[1]

    # Hoisted bias broadcasts (JAX does not CSE broadcast_in_dim).
    b_bcast = jnp.broadcast_to(b_row, (bm, n_v))
    c_bcast = jnp.broadcast_to(c_row, (bm, n_h))

    def salt(draw_id):
        return seed * _i32(_K_SEED) + _i32(draw_id * _K_DRAW)

    def h_preact(v_bf):
        # v @ W : bf16 operands, f32 accumulation on the MXU.
        return jnp.dot(v_bf, w_bf, preferred_element_type=jnp.float32)

    def v_preact(h_bf):
        # h @ W.T without materializing W.T: contract on W's second dim.
        return lax.dot_general(h_bf, w_bf,
                               dimension_numbers=(((1,), (1,)), ((), ())),
                               preferred_element_type=jnp.float32)

    def sample_h(pre, draw_id):
        pmf = jax.nn.sigmoid(c_bcast + pre)               # f32 VPU/EUP math
        return _bernoulli(pmf, salt(draw_id), row_off, jnp.bfloat16)

    def sample_v(pre, draw_id):
        pmf = jax.nn.sigmoid(b_bcast + pre)
        return _bernoulli(pmf, salt(draw_id), row_off, jnp.bfloat16)

    # ---- positive phase: sample h_d | v_d, reuse its pre-activation --------
    v_d_bf = v_d.astype(jnp.bfloat16)                     # binary -> exact
    pre_d = h_preact(v_d_bf)                              # (bm, n_h) f32
    h_d = sample_h(pre_d, 0)

    # ---- k-step Gibbs chain on the fantasy particles ------------------------
    # k is small & static -> unrolled Python loop (use lax.fori_loop for big k).
    v = v_m_ref[...].astype(jnp.bfloat16)
    h = None
    for t in range(k):
        h = sample_h(h_preact(v), 1 + 2 * t)
        v = sample_v(v_preact(h), 2 + 2 * t)
    v_m_new, h_m = v, h

    # ---- contrastive-divergence log-likelihood proxy ------------------------
    def phase_sum(vv_bf, hh_bf, pre_vw):
        t1 = jnp.sum(vv_bf.astype(jnp.float32) * b_bcast)
        t2 = jnp.sum(hh_bf.astype(jnp.float32) * c_bcast)
        t3 = jnp.sum(pre_vw * hh_bf.astype(jnp.float32))
        return t1 + t2 + t3

    # h_m was sampled from the previous v, so v_m_new @ W is a genuinely new
    # matmul (only the positive phase can reuse a pre-activation).
    pre_m = h_preact(v_m_new)
    llh_part = phase_sum(v_d_bf, h_d, pre_d) - phase_sum(v_m_new, h_m, pre_m)

    llh_ref[...] = jnp.reshape(llh_part, (1, 1, 1))
    v_m_out_ref[...] = v_m_new.astype(jnp.float32)


def rbm_forward(v_d, v_m, b, c, W, seed, *, k, block_m=128):
    assert k >= 1
    m, n_v = v_d.shape
    n_h = W.shape[1]
    assert W.shape == (n_v, n_h)
    # Lane-dense tiling: keep n_v / n_h multiples of 128 (zero-padding W rows/
    # cols with zero b/c entries is an exact way to reach alignment).
    assert n_v % 128 == 0 and n_h % 128 == 0, "pad n_v / n_h to multiples of 128"
    if m % block_m != 0:
        block_m = m                      # single full-batch tile fallback
    num_tiles = m // block_m

    v_d = v_d.astype(jnp.float32)
    v_m = v_m.astype(jnp.float32)
    b2 = b.reshape(1, n_v).astype(jnp.float32)
    c2 = c.reshape(1, n_h).astype(jnp.float32)
    W = W.astype(jnp.float32)
    seed2 = jnp.asarray(seed, dtype=jnp.int32).reshape(1, 1)

    kernel = functools.partial(rbm_kernel, k=k, block_m=block_m)

    # NOTE: for large RBMs set pltpu.CompilerParams(vmem_limit_bytes=...) and/or
    # tile n_h so W (+ its bf16 copy) fits v7x's smaller VMEM; not needed here.
    llh_parts, v_m_out = pl.pallas_call(
        kernel,
        grid=(num_tiles,),
        in_specs=[
            pl.BlockSpec((1, 1), lambda i: (0, 0)),           # seed
            pl.BlockSpec((block_m, n_v), lambda i: (i, 0)),   # v_d tile
            pl.BlockSpec((block_m, n_v), lambda i: (i, 0)),   # v_m tile
            pl.BlockSpec((1, n_v), lambda i: (0, 0)),         # b
            pl.BlockSpec((1, n_h), lambda i: (0, 0)),         # c
            pl.BlockSpec((n_v, n_h), lambda i: (0, 0)),       # W (resident)
        ],
        out_specs=(
            pl.BlockSpec((1, 1, 1), lambda i: (i, 0, 0)),     # per-tile llh sum
            pl.BlockSpec((block_m, n_v), lambda i: (i, 0)),   # updated v_m
        ),
        out_shape=(
            jax.ShapeDtypeStruct((num_tiles, 1, 1), jnp.float32),
            jax.ShapeDtypeStruct((m, n_v), jnp.float32),
        ),
        input_output_aliases={2: 1},     # fantasy particles: in-place update
        compiler_params=pltpu.CompilerParams(
            dimension_semantics=("parallel",)),
    )(seed2, v_d, v_m, b2, c2, W)

    llh = -jnp.sum(llh_parts) / m
    return llh, v_m_out


if __name__ == "__main__":
    # Small but lane/sublane-dense RBM: n_v, n_h multiples of 128, batch that
    # splits into two 128-row tiles (exercises the parallel grid axis).
    M, N_V, N_H, K = 256, 256, 128, 2

    key = jax.random.PRNGKey(0)
    kb, kc, kw, kvd, kvm = jax.random.split(key, 5)

    # Parameters as in the module __init__: N(0, 1), float32.
    b = jax.random.normal(kb, (N_V,), dtype=jnp.float32)
    c = jax.random.normal(kc, (N_H,), dtype=jnp.float32)
    W = jax.random.normal(kw, (N_V, N_H), dtype=jnp.float32)

    # Binary visible data (data batch and fantasy/model batch).
    v_d = jax.random.bernoulli(kvd, 0.5, (M, N_V)).astype(jnp.float32)
    v_m = jax.random.bernoulli(kvm, 0.5, (M, N_V)).astype(jnp.float32)

    llh, v_m_new = rbm_forward(v_d, v_m, b, c, W, seed=0, k=K)
    llh, v_m_new = jax.block_until_ready((llh, v_m_new))

    assert llh.shape == ()
    assert v_m_new.shape == (M, N_V)
    assert bool(jnp.all((v_m_new == 0.0) | (v_m_new == 1.0)))
    assert bool(jnp.isfinite(llh))
    print("KERNEL_OK")
</pallas_src>

<mosaic_0001>
module attributes {stable_mosaic.version = 11 : i64} {
  func.func @rbm_kernel(%arg0: i32, %arg1: memref<1x1xi32, #tpu.memory_space<vmem>>, %arg2: memref<128x256xf32, #tpu.memory_space<vmem>>, %arg3: memref<128x256xf32, #tpu.memory_space<vmem>>, %arg4: memref<1x256xf32, #tpu.memory_space<vmem>>, %arg5: memref<1x128xf32, #tpu.memory_space<vmem>>, %arg6: memref<256x128xf32, #tpu.memory_space<vmem>>, %arg7: memref<1x1x1xf32, #tpu.memory_space<vmem>>, %arg8: memref<128x256xf32, #tpu.memory_space<vmem>>) attributes {dimension_semantics = [#tpu.dimension_semantics<parallel>], iteration_bounds = array<i64: 2>, scalar_prefetch = 0 : i64, scratch_operands = 0 : i64, tpu.core_type = #tpu.core_type<tc>, window_params = [{pipeline_mode = #tpu.pipeline_mode<synchronous>, transform_indices = @transform_0, window_bounds = array<i64: 1, 1>}, {transform_indices = @transform_1, window_bounds = array<i64: 128, 256>}, {transform_indices = @transform_2, window_bounds = array<i64: 128, 256>}, {pipeline_mode = #tpu.pipeline_mode<synchronous>, transform_indices = @transform_3, window_bounds = array<i64: 1, 256>}, {pipeline_mode = #tpu.pipeline_mode<synchronous>, transform_indices = @transform_4, window_bounds = array<i64: 1, 128>}, {pipeline_mode = #tpu.pipeline_mode<synchronous>, transform_indices = @transform_5, window_bounds = array<i64: 256, 128>}, {transform_indices = @transform_6, window_bounds = array<i64: 1, 1, 1>}, {transform_indices = @transform_7, window_bounds = array<i64: 128, 256>}]} {
    %c0 = arith.constant 0 : index
    %c0_0 = arith.constant 0 : index
    %0 = vector.load %arg1[%c0, %c0_0] : memref<1x1xi32, #tpu.memory_space<vmem>>, vector<1x1xi32>
    %c128_i32 = arith.constant 128 : i32
    %1 = arith.muli %arg0, %c128_i32 : i32
    %c0_1 = arith.constant 0 : index
    %c0_2 = arith.constant 0 : index
    %2 = vector.load %arg2[%c0_1, %c0_2] : memref<128x256xf32, #tpu.memory_space<vmem>>, vector<128x256xf32>
    %c0_3 = arith.constant 0 : index
    %c0_4 = arith.constant 0 : index
    %3 = vector.load %arg4[%c0_3, %c0_4] : memref<1x256xf32, #tpu.memory_space<vmem>>, vector<1x256xf32>
    %c0_5 = arith.constant 0 : index
    %c0_6 = arith.constant 0 : index
    %4 = vector.load %arg5[%c0_5, %c0_6] : memref<1x128xf32, #tpu.memory_space<vmem>>, vector<1x128xf32>
    %c0_7 = arith.constant 0 : index
    %c0_8 = arith.constant 0 : index
    %5 = vector.load %arg6[%c0_7, %c0_8] : memref<256x128xf32, #tpu.memory_space<vmem>>, vector<256x128xf32>
    %6 = arith.truncf %5 : vector<256x128xf32> to vector<256x128xbf16>
    %7 = vector.shape_cast %3 : vector<1x256xf32> to vector<1x256xf32>
    %8 = vector.broadcast %7 : vector<1x256xf32> to vector<128x256xf32>
    %9 = vector.shape_cast %4 : vector<1x128xf32> to vector<1x128xf32>
    %10 = vector.broadcast %9 : vector<1x128xf32> to vector<128x128xf32>
    %11 = arith.truncf %2 : vector<128x256xf32> to vector<128x256xbf16>
    %cst = arith.constant dense<0.000000e+00> : vector<128x128xf32>
    %12 = tpu.matmul %11, %6, %cst {dimension_numbers = #tpu.dot_dimension_numbers<[1], [0], [0], [1], [0, 0, 1, 1], [], []>} : vector<128x256xbf16>, vector<256x128xbf16>, vector<128x128xf32> -> vector<128x128xf32>
    %13 = arith.addf %10, %12 : vector<128x128xf32>
    %14 = arith.negf %13 : vector<128x128xf32>
    %15 = math.exp %14 : vector<128x128xf32>
    %cst_9 = arith.constant 1.000000e+00 : f32
    %16 = vector.broadcast %cst_9 : f32 to vector<128x128xf32>
    %17 = arith.addf %16, %15 : vector<128x128xf32>
    %18 = arith.divf %16, %17 : vector<128x128xf32>
    %c-1640531527_i32 = arith.constant -1640531527 : i32
    %19 = vector.broadcast %c-1640531527_i32 : i32 to vector<1x1xi32>
    %20 = arith.muli %0, %19 : vector<1x1xi32>
    %c0_i32 = arith.constant 0 : i32
    %21 = vector.broadcast %c0_i32 : i32 to vector<1x1xi32>
    %22 = arith.addi %20, %21 : vector<1x1xi32>
    %23 = tpu.iota {dimensions = array<i32: 0>} : vector<128x128xi32>
    %24 = vector.broadcast %1 : i32 to vector<128x128xi32>
    %25 = arith.addi %23, %24 : vector<128x128xi32>
    %26 = tpu.iota {dimensions = array<i32: 1>} : vector<128x128xi32>
    %c-2048144789_i32 = arith.constant -2048144789 : i32
    %27 = vector.broadcast %c-2048144789_i32 : i32 to vector<128x128xi32>
    %28 = arith.muli %25, %27 : vector<128x128xi32>
    %c-1028477387_i32 = arith.constant -1028477387 : i32
    %29 = vector.broadcast %c-1028477387_i32 : i32 to vector<128x128xi32>
    %30 = arith.muli %26, %29 : vector<128x128xi32>
    %31 = arith.addi %28, %30 : vector<128x128xi32>
    %32 = vector.broadcast %22 : vector<1x1xi32> to vector<128x128xi32>
    %33 = arith.xori %31, %32 : vector<128x128xi32>
    %c16_i32 = arith.constant 16 : i32
    %34 = vector.broadcast %c16_i32 : i32 to vector<128x128xi32>
    %35 = arith.shrui %33, %34 : vector<128x128xi32>
    %36 = arith.xori %33, %35 : vector<128x128xi32>
    %c2146121005_i32 = arith.constant 2146121005 : i32
    %37 = vector.broadcast %c2146121005_i32 : i32 to vector<128x128xi32>
    %38 = arith.muli %36, %37 : vector<128x128xi32>
    %c15_i32 = arith.constant 15 : i32
    %39 = vector.broadcast %c15_i32 : i32 to vector<128x128xi32>
    %40 = arith.shrui %38, %39 : vector<128x128xi32>
    %41 = arith.xori %38, %40 : vector<128x128xi32>
    %c-2073254261_i32 = arith.constant -2073254261 : i32
    %42 = vector.broadcast %c-2073254261_i32 : i32 to vector<128x128xi32>
    %43 = arith.muli %41, %42 : vector<128x128xi32>
    %c16_i32_10 = arith.constant 16 : i32
    %44 = vector.broadcast %c16_i32_10 : i32 to vector<128x128xi32>
    %45 = arith.shrui %43, %44 : vector<128x128xi32>
    %46 = arith.xori %43, %45 : vector<128x128xi32>
    %c8_i32 = arith.constant 8 : i32
    %47 = vector.broadcast %c8_i32 : i32 to vector<128x128xi32>
    %48 = arith.shrui %46, %47 : vector<128x128xi32>
    %cst_11 = arith.constant 0x4B800000 : f32
    %49 = vector.broadcast %cst_11 : f32 to vector<128x128xf32>
    %50 = arith.mulf %18, %49 : vector<128x128xf32>
    %51 = arith.fptosi %50 : vector<128x128xf32> to vector<128x128xi32>
    %52 = arith.cmpi slt, %48, %51 : vector<128x128xi32>
    %cst_12 = arith.constant 1.000000e+00 : f32
    %cst_13 = arith.constant 0.000000e+00 : f32
    %53 = vector.broadcast %cst_12 : f32 to vector<128x128xf32>
    %54 = vector.broadcast %cst_13 : f32 to vector<128x128xf32>
    %55 = arith.select %52, %53, %54 : vector<128x128xi1>, vector<128x128xf32>
    %56 = arith.truncf %55 : vector<128x128xf32> to vector<128x128xbf16>
    %c0_14 = arith.constant 0 : index
    %c0_15 = arith.constant 0 : index
    %57 = vector.load %arg3[%c0_14, %c0_15] : memref<128x256xf32, #tpu.memory_space<vmem>>, vector<128x256xf32>
    %58 = arith.truncf %57 : vector<128x256xf32> to vector<128x256xbf16>
    %cst_16 = arith.constant dense<0.000000e+00> : vector<128x128xf32>
    %59 = tpu.matmul %58, %6, %cst_16 {dimension_numbers = #tpu.dot_dimension_numbers<[1], [0], [0], [1], [0, 0, 1, 1], [], []>} : vector<128x256xbf16>, vector<256x128xbf16>, vector<128x128xf32> -> vector<128x128xf32>
    %60 = arith.addf %10, %59 : vector<128x128xf32>
    %61 = arith.negf %60 : vector<128x128xf32>
    %62 = math.exp %61 : vector<128x128xf32>
    %cst_17 = arith.constant 1.000000e+00 : f32
    %63 = vector.broadcast %cst_17 : f32 to vector<128x128xf32>
    %64 = arith.addf %63, %62 : vector<128x128xf32>
    %65 = arith.divf %63, %64 : vector<128x128xf32>
    %c-1640531527_i32_18 = arith.constant -1640531527 : i32
    %66 = vector.broadcast %c-1640531527_i32_18 : i32 to vector<1x1xi32>
    %67 = arith.muli %0, %66 : vector<1x1xi32>
    %c668265263_i32 = arith.constant 668265263 : i32
    %68 = vector.broadcast %c668265263_i32 : i32 to vector<1x1xi32>
    %69 = arith.addi %67, %68 : vector<1x1xi32>
    %70 = tpu.iota {dimensions = array<i32: 0>} : vector<128x128xi32>
    %71 = vector.broadcast %1 : i32 to vector<128x128xi32>
    %72 = arith.addi %70, %71 : vector<128x128xi32>
    %73 = tpu.iota {dimensions = array<i32: 1>} : vector<128x128xi32>
    %c-2048144789_i32_19 = arith.constant -2048144789 : i32
    %74 = vector.broadcast %c-2048144789_i32_19 : i32 to vector<128x128xi32>
    %75 = arith.muli %72, %74 : vector<128x128xi32>
    %c-1028477387_i32_20 = arith.constant -1028477387 : i32
    %76 = vector.broadcast %c-1028477387_i32_20 : i32 to vector<128x128xi32>
    %77 = arith.muli %73, %76 : vector<128x128xi32>
    %78 = arith.addi %75, %77 : vector<128x128xi32>
    %79 = vector.broadcast %69 : vector<1x1xi32> to vector<128x128xi32>
    %80 = arith.xori %78, %79 : vector<128x128xi32>
    %c16_i32_21 = arith.constant 16 : i32
    %81 = vector.broadcast %c16_i32_21 : i32 to vector<128x128xi32>
    %82 = arith.shrui %80, %81 : vector<128x128xi32>
    %83 = arith.xori %80, %82 : vector<128x128xi32>
    %c2146121005_i32_22 = arith.constant 2146121005 : i32
    %84 = vector.broadcast %c2146121005_i32_22 : i32 to vector<128x128xi32>
    %85 = arith.muli %83, %84 : vector<128x128xi32>
    %c15_i32_23 = arith.constant 15 : i32
    %86 = vector.broadcast %c15_i32_23 : i32 to vector<128x128xi32>
    %87 = arith.shrui %85, %86 : vector<128x128xi32>
    %88 = arith.xori %85, %87 : vector<128x128xi32>
    %c-2073254261_i32_24 = arith.constant -2073254261 : i32
    %89 = vector.broadcast %c-2073254261_i32_24 : i32 to vector<128x128xi32>
    %90 = arith.muli %88, %89 : vector<128x128xi32>
    %c16_i32_25 = arith.constant 16 : i32
    %91 = vector.broadcast %c16_i32_25 : i32 to vector<128x128xi32>
    %92 = arith.shrui %90, %91 : vector<128x128xi32>
    %93 = arith.xori %90, %92 : vector<128x128xi32>
    %c8_i32_26 = arith.constant 8 : i32
    %94 = vector.broadcast %c8_i32_26 : i32 to vector<128x128xi32>
    %95 = arith.shrui %93, %94 : vector<128x128xi32>
    %cst_27 = arith.constant 0x4B800000 : f32
    %96 = vector.broadcast %cst_27 : f32 to vector<128x128xf32>
    %97 = arith.mulf %65, %96 : vector<128x128xf32>
    %98 = arith.fptosi %97 : vector<128x128xf32> to vector<128x128xi32>
    %99 = arith.cmpi slt, %95, %98 : vector<128x128xi32>
    %cst_28 = arith.constant 1.000000e+00 : f32
    %cst_29 = arith.constant 0.000000e+00 : f32
    %100 = vector.broadcast %cst_28 : f32 to vector<128x128xf32>
    %101 = vector.broadcast %cst_29 : f32 to vector<128x128xf32>
    %102 = arith.select %99, %100, %101 : vector<128x128xi1>, vector<128x128xf32>
    %103 = arith.truncf %102 : vector<128x128xf32> to vector<128x128xbf16>
    %cst_30 = arith.constant dense<0.000000e+00> : vector<128x256xf32>
    %104 = tpu.matmul %103, %6, %cst_30 {dimension_numbers = #tpu.dot_dimension_numbers<[1], [1], [0], [0], [0, 0, 1, 0], [], []>} : vector<128x128xbf16>, vector<256x128xbf16>, vector<128x256xf32> -> vector<128x256xf32>
    %105 = arith.addf %8, %104 : vector<128x256xf32>
    %106 = arith.negf %105 : vector<128x256xf32>
    %107 = math.exp %106 : vector<128x256xf32>
    %cst_31 = arith.constant 1.000000e+00 : f32
    %108 = vector.broadcast %cst_31 : f32 to vector<128x256xf32>
    %109 = arith.addf %108, %107 : vector<128x256xf32>
    %110 = arith.divf %108, %109 : vector<128x256xf32>
    %c-1640531527_i32_32 = arith.constant -1640531527 : i32
    %111 = vector.broadcast %c-1640531527_i32_32 : i32 to vector<1x1xi32>
    %112 = arith.muli %0, %111 : vector<1x1xi32>
    %c1336530526_i32 = arith.constant 1336530526 : i32
    %113 = vector.broadcast %c1336530526_i32 : i32 to vector<1x1xi32>
    %114 = arith.addi %112, %113 : vector<1x1xi32>
    %115 = tpu.iota {dimensions = array<i32: 0>} : vector<128x256xi32>
    %116 = vector.broadcast %1 : i32 to vector<128x256xi32>
    %117 = arith.addi %115, %116 : vector<128x256xi32>
    %118 = tpu.iota {dimensions = array<i32: 1>} : vector<128x256xi32>
    %c-2048144789_i32_33 = arith.constant -2048144789 : i32
    %119 = vector.broadcast %c-2048144789_i32_33 : i32 to vector<128x256xi32>
    %120 = arith.muli %117, %119 : vector<128x256xi32>
    %c-1028477387_i32_34 = arith.constant -1028477387 : i32
    %121 = vector.broadcast %c-1028477387_i32_34 : i32 to vector<128x256xi32>
    %122 = arith.muli %118, %121 : vector<128x256xi32>
    %123 = arith.addi %120, %122 : vector<128x256xi32>
    %124 = vector.broadcast %114 : vector<1x1xi32> to vector<128x256xi32>
    %125 = arith.xori %123, %124 : vector<128x256xi32>
    %c16_i32_35 = arith.constant 16 : i32
    %126 = vector.broadcast %c16_i32_35 : i32 to vector<128x256xi32>
    %127 = arith.shrui %125, %126 : vector<128x256xi32>
    %128 = arith.xori %125, %127 : vector<128x256xi32>
    %c2146121005_i32_36 = arith.constant 2146121005 : i32
    %129 = vector.broadcast %c2146121005_i32_36 : i32 to vector<128x256xi32>
    %130 = arith.muli %128, %129 : vector<128x256xi32>
    %c15_i32_37 = arith.constant 15 : i32
    %131 = vector.broadcast %c15_i32_37 : i32 to vector<128x256xi32>
    %132 = arith.shrui %130, %131 : vector<128x256xi32>
    %133 = arith.xori %130, %132 : vector<128x256xi32>
    %c-2073254261_i32_38 = arith.constant -2073254261 : i32
    %134 = vector.broadcast %c-2073254261_i32_38 : i32 to vector<128x256xi32>
    %135 = arith.muli %133, %134 : vector<128x256xi32>
    %c16_i32_39 = arith.constant 16 : i32
    %136 = vector.broadcast %c16_i32_39 : i32 to vector<128x256xi32>
    %137 = arith.shrui %135, %136 : vector<128x256xi32>
    %138 = arith.xori %135, %137 : vector<128x256xi32>
    %c8_i32_40 = arith.constant 8 : i32
    %139 = vector.broadcast %c8_i32_40 : i32 to vector<128x256xi32>
    %140 = arith.shrui %138, %139 : vector<128x256xi32>
    %cst_41 = arith.constant 0x4B800000 : f32
    %141 = vector.broadcast %cst_41 : f32 to vector<128x256xf32>
    %142 = arith.mulf %110, %141 : vector<128x256xf32>
    %143 = arith.fptosi %142 : vector<128x256xf32> to vector<128x256xi32>
    %144 = arith.cmpi slt, %140, %143 : vector<128x256xi32>
    %cst_42 = arith.constant 1.000000e+00 : f32
    %cst_43 = arith.constant 0.000000e+00 : f32
    %145 = vector.broadcast %cst_42 : f32 to vector<128x256xf32>
    %146 = vector.broadcast %cst_43 : f32 to vector<128x256xf32>
    %147 = arith.select %144, %145, %146 : vector<128x256xi1>, vector<128x256xf32>
    %148 = arith.truncf %147 : vector<128x256xf32> to vector<128x256xbf16>
    %cst_44 = arith.constant dense<0.000000e+00> : vector<128x128xf32>
    %149 = tpu.matmul %148, %6, %cst_44 {dimension_numbers = #tpu.dot_dimension_numbers<[1], [0], [0], [1], [0, 0, 1, 1], [], []>} : vector<128x256xbf16>, vector<256x128xbf16>, vector<128x128xf32> -> vector<128x128xf32>
    %150 = arith.addf %10, %149 : vector<128x128xf32>
    %151 = arith.negf %150 : vector<128x128xf32>
    %152 = math.exp %151 : vector<128x128xf32>
    %cst_45 = arith.constant 1.000000e+00 : f32
    %153 = vector.broadcast %cst_45 : f32 to vector<128x128xf32>
    %154 = arith.addf %153, %152 : vector<128x128xf32>
    %155 = arith.divf %153, %154 : vector<128x128xf32>
    %c-1640531527_i32_46 = arith.constant -1640531527 : i32
    %156 = vector.broadcast %c-1640531527_i32_46 : i32 to vector<1x1xi32>
    %157 = arith.muli %0, %156 : vector<1x1xi32>
    %c2004795789_i32 = arith.constant 2004795789 : i32
    %158 = vector.broadcast %c2004795789_i32 : i32 to vector<1x1xi32>
    %159 = arith.addi %157, %158 : vector<1x1xi32>
    %160 = tpu.iota {dimensions = array<i32: 0>} : vector<128x128xi32>
    %161 = vector.broadcast %1 : i32 to vector<128x128xi32>
    %162 = arith.addi %160, %161 : vector<128x128xi32>
    %163 = tpu.iota {dimensions = array<i32: 1>} : vector<128x128xi32>
    %c-2048144789_i32_47 = arith.constant -2048144789 : i32
    %164 = vector.broadcast %c-2048144789_i32_47 : i32 to vector<128x128xi32>
    %165 = arith.muli %162, %164 : vector<128x128xi32>
    %c-1028477387_i32_48 = arith.constant -1028477387 : i32
    %166 = vector.broadcast %c-1028477387_i32_48 : i32 to vector<128x128xi32>
    %167 = arith.muli %163, %166 : vector<128x128xi32>
    %168 = arith.addi %165, %167 : vector<128x128xi32>
    %169 = vector.broadcast %159 : vector<1x1xi32> to vector<128x128xi32>
    %170 = arith.xori %168, %169 : vector<128x128xi32>
    %c16_i32_49 = arith.constant 16 : i32
    %171 = vector.broadcast %c16_i32_49 : i32 to vector<128x128xi32>
    %172 = arith.shrui %170, %171 : vector<128x128xi32>
    %173 = arith.xori %170, %172 : vector<128x128xi32>
    %c2146121005_i32_50 = arith.constant 2146121005 : i32
    %174 = vector.broadcast %c2146121005_i32_50 : i32 to vector<128x128xi32>
    %175 = arith.muli %173, %174 : vector<128x128xi32>
    %c15_i32_51 = arith.constant 15 : i32
    %176 = vector.broadcast %c15_i32_51 : i32 to vector<128x128xi32>
    %177 = arith.shrui %175, %176 : vector<128x128xi32>
    %178 = arith.xori %175, %177 : vector<128x128xi32>
    %c-2073254261_i32_52 = arith.constant -2073254261 : i32
    %179 = vector.broadcast %c-2073254261_i32_52 : i32 to vector<128x128xi32>
    %180 = arith.muli %178, %179 : vector<128x128xi32>
    %c16_i32_53 = arith.constant 16 : i32
    %181 = vector.broadcast %c16_i32_53 : i32 to vector<128x128xi32>
    %182 = arith.shrui %180, %181 : vector<128x128xi32>
    %183 = arith.xori %180, %182 : vector<128x128xi32>
    %c8_i32_54 = arith.constant 8 : i32
    %184 = vector.broadcast %c8_i32_54 : i32 to vector<128x128xi32>
    %185 = arith.shrui %183, %184 : vector<128x128xi32>
    %cst_55 = arith.constant 0x4B800000 : f32
    %186 = vector.broadcast %cst_55 : f32 to vector<128x128xf32>
    %187 = arith.mulf %155, %186 : vector<128x128xf32>
    %188 = arith.fptosi %187 : vector<128x128xf32> to vector<128x128xi32>
    %189 = arith.cmpi slt, %185, %188 : vector<128x128xi32>
    %cst_56 = arith.constant 1.000000e+00 : f32
    %cst_57 = arith.constant 0.000000e+00 : f32
    %190 = vector.broadcast %cst_56 : f32 to vector<128x128xf32>
    %191 = vector.broadcast %cst_57 : f32 to vector<128x128xf32>
    %192 = arith.select %189, %190, %191 : vector<128x128xi1>, vector<128x128xf32>
    %193 = arith.truncf %192 : vector<128x128xf32> to vector<128x128xbf16>
    %cst_58 = arith.constant dense<0.000000e+00> : vector<128x256xf32>
    %194 = tpu.matmul %193, %6, %cst_58 {dimension_numbers = #tpu.dot_dimension_numbers<[1], [1], [0], [0], [0, 0, 1, 0], [], []>} : vector<128x128xbf16>, vector<256x128xbf16>, vector<128x256xf32> -> vector<128x256xf32>
    %195 = arith.addf %8, %194 : vector<128x256xf32>
    %196 = arith.negf %195 : vector<128x256xf32>
    %197 = math.exp %196 : vector<128x256xf32>
    %cst_59 = arith.constant 1.000000e+00 : f32
    %198 = vector.broadcast %cst_59 : f32 to vector<128x256xf32>
    %199 = arith.addf %198, %197 : vector<128x256xf32>
    %200 = arith.divf %198, %199 : vector<128x256xf32>
    %c-1640531527_i32_60 = arith.constant -1640531527 : i32
    %201 = vector.broadcast %c-1640531527_i32_60 : i32 to vector<1x1xi32>
    %202 = arith.muli %0, %201 : vector<1x1xi32>
    %c-1621906244_i32 = arith.constant -1621906244 : i32
    %203 = vector.broadcast %c-1621906244_i32 : i32 to vector<1x1xi32>
    %204 = arith.addi %202, %203 : vector<1x1xi32>
    %205 = tpu.iota {dimensions = array<i32: 0>} : vector<128x256xi32>
    %206 = vector.broadcast %1 : i32 to vector<128x256xi32>
    %207 = arith.addi %205, %206 : vector<128x256xi32>
    %208 = tpu.iota {dimensions = array<i32: 1>} : vector<128x256xi32>
    %c-2048144789_i32_61 = arith.constant -2048144789 : i32
    %209 = vector.broadcast %c-2048144789_i32_61 : i32 to vector<128x256xi32>
    %210 = arith.muli %207, %209 : vector<128x256xi32>
    %c-1028477387_i32_62 = arith.constant -1028477387 : i32
    %211 = vector.broadcast %c-1028477387_i32_62 : i32 to vector<128x256xi32>
    %212 = arith.muli %208, %211 : vector<128x256xi32>
    %213 = arith.addi %210, %212 : vector<128x256xi32>
    %214 = vector.broadcast %204 : vector<1x1xi32> to vector<128x256xi32>
    %215 = arith.xori %213, %214 : vector<128x256xi32>
    %c16_i32_63 = arith.constant 16 : i32
    %216 = vector.broadcast %c16_i32_63 : i32 to vector<128x256xi32>
    %217 = arith.shrui %215, %216 : vector<128x256xi32>
    %218 = arith.xori %215, %217 : vector<128x256xi32>
    %c2146121005_i32_64 = arith.constant 2146121005 : i32
    %219 = vector.broadcast %c2146121005_i32_64 : i32 to vector<128x256xi32>
    %220 = arith.muli %218, %219 : vector<128x256xi32>
    %c15_i32_65 = arith.constant 15 : i32
    %221 = vector.broadcast %c15_i32_65 : i32 to vector<128x256xi32>
    %222 = arith.shrui %220, %221 : vector<128x256xi32>
    %223 = arith.xori %220, %222 : vector<128x256xi32>
    %c-2073254261_i32_66 = arith.constant -2073254261 : i32
    %224 = vector.broadcast %c-2073254261_i32_66 : i32 to vector<128x256xi32>
    %225 = arith.muli %223, %224 : vector<128x256xi32>
    %c16_i32_67 = arith.constant 16 : i32
    %226 = vector.broadcast %c16_i32_67 : i32 to vector<128x256xi32>
    %227 = arith.shrui %225, %226 : vector<128x256xi32>
    %228 = arith.xori %225, %227 : vector<128x256xi32>
    %c8_i32_68 = arith.constant 8 : i32
    %229 = vector.broadcast %c8_i32_68 : i32 to vector<128x256xi32>
    %230 = arith.shrui %228, %229 : vector<128x256xi32>
    %cst_69 = arith.constant 0x4B800000 : f32
    %231 = vector.broadcast %cst_69 : f32 to vector<128x256xf32>
    %232 = arith.mulf %200, %231 : vector<128x256xf32>
    %233 = arith.fptosi %232 : vector<128x256xf32> to vector<128x256xi32>
    %234 = arith.cmpi slt, %230, %233 : vector<128x256xi32>
    %cst_70 = arith.constant 1.000000e+00 : f32
    %cst_71 = arith.constant 0.000000e+00 : f32
    %235 = vector.broadcast %cst_70 : f32 to vector<128x256xf32>
    %236 = vector.broadcast %cst_71 : f32 to vector<128x256xf32>
    %237 = arith.select %234, %235, %236 : vector<128x256xi1>, vector<128x256xf32>
    %238 = arith.truncf %237 : vector<128x256xf32> to vector<128x256xbf16>
    %cst_72 = arith.constant dense<0.000000e+00> : vector<128x128xf32>
    %239 = tpu.matmul %238, %6, %cst_72 {dimension_numbers = #tpu.dot_dimension_numbers<[1], [0], [0], [1], [0, 0, 1, 1], [], []>} : vector<128x256xbf16>, vector<256x128xbf16>, vector<128x128xf32> -> vector<128x128xf32>
    %240 = arith.extf %11 : vector<128x256xbf16> to vector<128x256xf32>
    %241 = arith.mulf %240, %8 : vector<128x256xf32>
    %242 = vector.shape_cast %241 : vector<128x256xf32> to vector<1x128x256xf32>
    %cst_73 = arith.constant dense<0.000000e+00> : vector<1xf32>
    %243 = vector.multi_reduction <add>, %242, %cst_73 [1, 2] : vector<1x128x256xf32> to vector<1xf32>
    %244 = vector.shape_cast %243 : vector<1xf32> to vector<1x1x1xf32>
    %245 = vector.extract %244[0, 0, 0] : f32 from vector<1x1x1xf32>
    %246 = arith.extf %56 : vector<128x128xbf16> to vector<128x128xf32>
    %247 = arith.mulf %246, %10 : vector<128x128xf32>
    %248 = vector.shape_cast %247 : vector<128x128xf32> to vector<1x128x128xf32>
    %cst_74 = arith.constant dense<0.000000e+00> : vector<1xf32>
    %249 = vector.multi_reduction <add>, %248, %cst_74 [1, 2] : vector<1x128x128xf32> to vector<1xf32>
    %250 = vector.shape_cast %249 : vector<1xf32> to vector<1x1x1xf32>
    %251 = vector.extract %250[0, 0, 0] : f32 from vector<1x1x1xf32>
    %252 = arith.extf %56 : vector<128x128xbf16> to vector<128x128xf32>
    %253 = arith.mulf %12, %252 : vector<128x128xf32>
    %254 = vector.shape_cast %253 : vector<128x128xf32> to vector<1x128x128xf32>
    %cst_75 = arith.constant dense<0.000000e+00> : vector<1xf32>
    %255 = vector.multi_reduction <add>, %254, %cst_75 [1, 2] : vector<1x128x128xf32> to vector<1xf32>
    %256 = vector.shape_cast %255 : vector<1xf32> to vector<1x1x1xf32>
    %257 = vector.extract %256[0, 0, 0] : f32 from vector<1x1x1xf32>
    %258 = arith.addf %245, %251 : f32
    %259 = arith.addf %258, %257 : f32
    %260 = arith.extf %238 : vector<128x256xbf16> to vector<128x256xf32>
    %261 = arith.mulf %260, %8 : vector<128x256xf32>
    %262 = vector.shape_cast %261 : vector<128x256xf32> to vector<1x128x256xf32>
    %cst_76 = arith.constant dense<0.000000e+00> : vector<1xf32>
    %263 = vector.multi_reduction <add>, %262, %cst_76 [1, 2] : vector<1x128x256xf32> to vector<1xf32>
    %264 = vector.shape_cast %263 : vector<1xf32> to vector<1x1x1xf32>
    %265 = vector.extract %264[0, 0, 0] : f32 from vector<1x1x1xf32>
    %266 = arith.extf %193 : vector<128x128xbf16> to vector<128x128xf32>
    %267 = arith.mulf %266, %10 : vector<128x128xf32>
    %268 = vector.shape_cast %267 : vector<128x128xf32> to vector<1x128x128xf32>
    %cst_77 = arith.constant dense<0.000000e+00> : vector<1xf32>
    %269 = vector.multi_reduction <add>, %268, %cst_77 [1, 2] : vector<1x128x128xf32> to vector<1xf32>
    %270 = vector.shape_cast %269 : vector<1xf32> to vector<1x1x1xf32>
    %271 = vector.extract %270[0, 0, 0] : f32 from vector<1x1x1xf32>
    %272 = arith.extf %193 : vector<128x128xbf16> to vector<128x128xf32>
    %273 = arith.mulf %239, %272 : vector<128x128xf32>
    %274 = vector.shape_cast %273 : vector<128x128xf32> to vector<1x128x128xf32>
    %cst_78 = arith.constant dense<0.000000e+00> : vector<1xf32>
    %275 = vector.multi_reduction <add>, %274, %cst_78 [1, 2] : vector<1x128x128xf32> to vector<1xf32>
    %276 = vector.shape_cast %275 : vector<1xf32> to vector<1x1x1xf32>
    %277 = vector.extract %276[0, 0, 0] : f32 from vector<1x1x1xf32>
    %278 = arith.addf %265, %271 : f32
    %279 = arith.addf %278, %277 : f32
    %280 = arith.subf %259, %279 : f32
    %281 = vector.broadcast %280 : f32 to vector<1x1x1xf32>
    %c0_79 = arith.constant 0 : index
    %c0_80 = arith.constant 0 : index
    %c0_81 = arith.constant 0 : index
    %282 = vector.load %arg7[%c0_79, %c0_80, %c0_81] : memref<1x1x1xf32, #tpu.memory_space<vmem>>, vector<1x1x1xf32>
    tpu.vector_store %arg7[%c0_79, %c0_80, %c0_81], %281 {strides = array<i32>} : memref<1x1x1xf32, #tpu.memory_space<vmem>>, vector<1x1x1xf32>,
    %283 = arith.extf %238 : vector<128x256xbf16> to vector<128x256xf32>
    %c0_82 = arith.constant 0 : index
    %c0_83 = arith.constant 0 : index
    %284 = vector.load %arg8[%c0_82, %c0_83] : memref<128x256xf32, #tpu.memory_space<vmem>>, vector<128x256xf32>
    tpu.vector_store %arg8[%c0_82, %c0_83], %283 {strides = array<i32>} : memref<128x256xf32, #tpu.memory_space<vmem>>, vector<128x256xf32>,
    return
  }
  func.func @transform_0(%arg0: i32) -> (i32, i32) {
    %c0_i32 = arith.constant 0 : i32
    %c0_i32_0 = arith.constant 0 : i32
    %c0_i32_1 = arith.constant 0 : i32
    return %c0_i32, %c0_i32_0 : i32, i32
  }
  func.func @transform_1(%arg0: i32) -> (i32, i32) {
    %c0_i32 = arith.constant 0 : i32
    %c0_i32_0 = arith.constant 0 : i32
    return %arg0, %c0_i32 : i32, i32
  }
  func.func @transform_2(%arg0: i32) -> (i32, i32) {
    %c0_i32 = arith.constant 0 : i32
    %c0_i32_0 = arith.constant 0 : i32
    return %arg0, %c0_i32 : i32, i32
  }
  func.func @transform_3(%arg0: i32) -> (i32, i32) {
    %c0_i32 = arith.constant 0 : i32
    %c0_i32_0 = arith.constant 0 : i32
    %c0_i32_1 = arith.constant 0 : i32
    return %c0_i32, %c0_i32_0 : i32, i32
  }
  func.func @transform_4(%arg0: i32) -> (i32, i32) {
    %c0_i32 = arith.constant 0 : i32
    %c0_i32_0 = arith.constant 0 : i32
    %c0_i32_1 = arith.constant 0 : i32
    return %c0_i32, %c0_i32_0 : i32, i32
  }
  func.func @transform_5(%arg0: i32) -> (i32, i32) {
    %c0_i32 = arith.constant 0 : i32
    %c0_i32_0 = arith.constant 0 : i32
    %c0_i32_1 = arith.constant 0 : i32
    return %c0_i32, %c0_i32_0 : i32, i32
  }
  func.func @transform_6(%arg0: i32) -> (i32, i32, i32) {
    %c0_i32 = arith.constant 0 : i32
    %c0_i32_0 = arith.constant 0 : i32
    %c0_i32_1 = arith.constant 0 : i32
    return %arg0, %c0_i32, %c0_i32_0 : i32, i32, i32
  }
  func.func @transform_7(%arg0: i32) -> (i32, i32) {
    %c0_i32 = arith.constant 0 : i32
    %c0_i32_0 = arith.constant 0 : i32
    return %arg0, %c0_i32 : i32, i32
  }
}

</mosaic_0001>

<llo_original>
// kernel: tpu_custom_call.1
$region0: #{tpu_custom_call.1}
  #allocation0 [shape = 'u32[]', space=smem, size = 0x4, offset = 0x4, fixed_abs, tag = 'smem constant byte address 0x4 - core index']
  #allocation1 [shape = 'u32[144,128]{1,0:T(1,128)}', space=vmem, size = 0x12000, scoped, tag = 'internal scratch']
  #allocation2 [shape = 's32[1,1]{1,0:T(1,128)S(1)}', space=vmem, size = 0x200, scoped, tag = 'scoped memory for tpu_custom_call.1']
  %s0 = inlined_call_operand.<no memory space> [shape: s32[1,1], index: 0, kind: input, shape index: {}]
  %s1 = inlined_call_operand.vmem [shape: f32[256,256], index: 1, kind: input, shape index: {}]
  %s2 = inlined_call_operand.vmem [shape: f32[256,256], index: 2, kind: input, shape index: {}, may-alias: {2,7}]
  %s3 = inlined_call_operand.vmem [shape: f32[1,256], index: 3, kind: input, shape index: {}]
  %s4 = inlined_call_operand.vmem [shape: f32[1,128], index: 4, kind: input, shape index: {}]
  %s5 = inlined_call_operand.hbm [shape: f32[256,128], index: 5, kind: input, shape index: {}]
  %s6 = inlined_call_operand.vmem [shape: f32[2,1,1], index: 6, kind: output, shape index: {0}]
  %s7 = inlined_call_operand.vmem [shape: f32[256,256], index: 7, kind: output, shape index: {1}, may-alias: {2,7}]
  %8 = xla_tuple %s6, %s7
  %s9 = sld [smem:[#allocation0]]
  $region69: #{tpu_custom_call.1} parent=0
    _
  %s11 = ssub.s32 1, %s9
  %s12 = scalar_select 0, %s11, %s9
  %v13 = vstv %s0
  %14 = vst [vmem:[#allocation2] sm:$0x1] %v13
  $region1: #{tpu_custom_call.1} parent=0
    #allocation3 [shape = 'u8[131072]{0}', space=vmem, size = 0x20000, scoped, tag = 'input window, operand 5, single buffered']
    #allocation4 [shape = 's32[2]{0}', space=sflag, size = 0x8, scoped, tag = 'scoped memory for tpu_custom_call.1']
    %15 = vsyncpa [#allocation4], 0
    loop: start=0, step=1, limit=4
    $region2: #{tpu_custom_call.1} parent=1 // loop_pre_header
      _
    $region3: #{tpu_custom_call.1} parent=1 // loop_header
      %s17 = sphi 0, %s21
      %p18 = scmp.ge.s32.totalorder %s17, 4
      %s25 = sphi 0, %s25
      %s27 = sphi 0, %s25
      %s28 = sphi 0, %s27
      %s42 = sphi 0, %s28
      %s48 = sphi 0, %s50
      %s51 = sphi 0, %s48
      %s52 = sphi 0, %s51
      %s68 = sphi 0, %s52
      %s74 = sphi 0, %s76
      %s77 = sphi 0, %s74
      %s78 = sphi 0, %s77
      %s94 = sphi 0, %s78
      %s98 = sphi 0, %s98
      %s100 = sphi 0, %s98
      %s101 = sphi 0, %s100
      %s115 = sphi 0, %s101
      %s119 = sphi 0, %s119
      %s121 = sphi 0, %s119
      %s122 = sphi 0, %s121
      %s136 = sphi 0, %s122
      %s140 = sphi 0, %s140
      %s142 = sphi 0, %s140
      %s143 = sphi 0, %s142
      %s157 = sphi 0, %s143
      %s163 = sphi 0, %s165
      %s166 = sphi 0, %s163
      %s167 = sphi 0, %s166
      %s183 = sphi 0, %s167
      %s189 = sphi 0, %s191
      %s192 = sphi 0, %s189
      %s193 = sphi 0, %s192
      %s209 = sphi 0, %s193
    $region4: #{tpu_custom_call.1} parent=1 // loop_header_branch
      %20 = sbr.rel (%p18) target = $region8
    $region5: #{tpu_custom_call.1} parent=1 // loop_body
      %s22 = ssub.s32 %s17, 1
      %s23 = ssub.s32 %s17, 2
      %s24 = sadd.s32 %s17, 1
      %s26 = sadd.s32 %s25, 1
      %p29 = scmp.eq.s32.totalorder %s17, 1
      %p30 = scmp.ne.s32.totalorder %s25, %s27
      %p31 = scmp.eq.s32.totalorder %s17, 0
      %p32 = por %p30, %p31
      %p33 = scmp.ne.s32.totalorder %s25, %s27
      %p34 = scmp.eq.s32.totalorder %s22, 1
      %p35 = por %p33, %p34
      %p36 = scmp.ne.s32.totalorder %s27, %s28
      %p37 = scmp.eq.s32.totalorder %s22, 0
      %p38 = por %p36, %p37
      %p39 = scmp.ne.s32.totalorder %s27, %s28
      %p40 = scmp.eq.s32.totalorder %s23, 1
      %p41 = por %p39, %p40
      %p43 = scmp.ne.s32.totalorder %s28, %s42
      %p44 = scmp.eq.s32.totalorder %s23, 0
      %p45 = por %p43, %p44
      %s46 = ssub.s32 %s17, %s24
      %p47 = scmp.eq.s32.totalorder %s46, 0
      %s49 = sadd.s32 %s48, 1
      %s50 = scalar_select %p47, %s48, %s49
      %p53 = pneg %p47
      %p54 = scmp.eq.s32.totalorder %s17, 1
      %p55 = por %p53, %p54
      %p56 = scmp.ne.s32.totalorder %s48, %s51
      %p57 = scmp.eq.s32.totalorder %s17, 0
      %p58 = por %p56, %p57
      %p59 = scmp.ne.s32.totalorder %s48, %s51
      %p60 = scmp.eq.s32.totalorder %s22, 1
      %p61 = por %p59, %p60
      %p62 = scmp.ne.s32.totalorder %s51, %s52
      %p63 = scmp.eq.s32.totalorder %s22, 0
      %p64 = por %p62, %p63
      %p65 = scmp.ne.s32.totalorder %s51, %s52
      %p66 = scmp.eq.s32.totalorder %s23, 1
      %p67 = por %p65, %p66
      %p69 = scmp.ne.s32.totalorder %s52, %s68
      %p70 = scmp.eq.s32.totalorder %s23, 0
      %p71 = por %p69, %p70
      %s72 = ssub.s32 %s17, %s24
      %p73 = scmp.eq.s32.totalorder %s72, 0
      %s75 = sadd.s32 %s74, 1
      %s76 = scalar_select %p73, %s74, %s75
      %p79 = pneg %p73
      %p80 = scmp.eq.s32.totalorder %s17, 1
      %p81 = por %p79, %p80
      %p82 = scmp.ne.s32.totalorder %s74, %s77
      %p83 = scmp.eq.s32.totalorder %s17, 0
      %p84 = por %p82, %p83
      %p85 = scmp.ne.s32.totalorder %s74, %s77
      %p86 = scmp.eq.s32.totalorder %s22, 1
      %p87 = por %p85, %p86
      %p88 = scmp.ne.s32.totalorder %s77, %s78
      %p89 = scmp.eq.s32.totalorder %s22, 0
      %p90 = por %p88, %p89
      %p91 = scmp.ne.s32.totalorder %s77, %s78
      %p92 = scmp.eq.s32.totalorder %s23, 1
      %p93 = por %p91, %p92
      %p95 = scmp.ne.s32.totalorder %s78, %s94
      %p96 = scmp.eq.s32.totalorder %s23, 0
      %p97 = por %p95, %p96
      %s99 = sadd.s32 %s98, 1
      %p102 = scmp.eq.s32.totalorder %s17, 1
      %p103 = scmp.ne.s32.totalorder %s98, %s100
      %p104 = scmp.eq.s32.totalorder %s17, 0
      %p105 = por %p103, %p104
      %p106 = scmp.ne.s32.totalorder %s98, %s100
      %p107 = scmp.eq.s32.totalorder %s22, 1
      %p108 = por %p106, %p107
      %p109 = scmp.ne.s32.totalorder %s100, %s101
      %p110 = scmp.eq.s32.totalorder %s22, 0
      %p111 = por %p109, %p110
      %p112 = scmp.ne.s32.totalorder %s100, %s101
      %p113 = scmp.eq.s32.totalorder %s23, 1
      %p114 = por %p112, %p113
      %p116 = scmp.ne.s32.totalorder %s101, %s115
      %p117 = scmp.eq.s32.totalorder %s23, 0
      %p118 = por %p116, %p117
      %s120 = sadd.s32 %s119, 1
      %p123 = scmp.eq.s32.totalorder %s17, 1
      %p124 = scmp.ne.s32.totalorder %s119, %s121
      %p125 = scmp.eq.s32.totalorder %s17, 0
      %p126 = por %p124, %p125
      %p127 = scmp.ne.s32.totalorder %s119, %s121
      %p128 = scmp.eq.s32.totalorder %s22, 1
      %p129 = por %p127, %p128
      %p130 = scmp.ne.s32.totalorder %s121, %s122
      %p131 = scmp.eq.s32.totalorder %s22, 0
      %p132 = por %p130, %p131
      %p133 = scmp.ne.s32.totalorder %s121, %s122
      %p134 = scmp.eq.s32.totalorder %s23, 1
      %p135 = por %p133, %p134
      %p137 = scmp.ne.s32.totalorder %s122, %s136
      %p138 = scmp.eq.s32.totalorder %s23, 0
      %p139 = por %p137, %p138
      %s141 = sadd.s32 %s140, 1
      %p144 = scmp.eq.s32.totalorder %s17, 1
      %p145 = scmp.ne.s32.totalorder %s140, %s142
      %p146 = scmp.eq.s32.totalorder %s17, 0
      %p147 = por %p145, %p146
      %p148 = scmp.ne.s32.totalorder %s140, %s142
      %p149 = scmp.eq.s32.totalorder %s22, 1
      %p150 = por %p148, %p149
      %p151 = scmp.ne.s32.totalorder %s142, %s143
      %p152 = scmp.eq.s32.totalorder %s22, 0
      %p153 = por %p151, %p152
      %p154 = scmp.ne.s32.totalorder %s142, %s143
      %p155 = scmp.eq.s32.totalorder %s23, 1
      %p156 = por %p154, %p155
      %p158 = scmp.ne.s32.totalorder %s143, %s157
      %p159 = scmp.eq.s32.totalorder %s23, 0
      %p160 = por %p158, %p159
      %s161 = ssub.s32 %s17, %s24
      %p162 = scmp.eq.s32.totalorder %s161, 0
      %s164 = sadd.s32 %s163, 1
      %s165 = scalar_select %p162, %s163, %s164
      %p168 = pneg %p162
      %p169 = scmp.eq.s32.totalorder %s17, 1
      %p170 = por %p168, %p169
      %p171 = scmp.ne.s32.totalorder %s163, %s166
      %p172 = scmp.eq.s32.totalorder %s17, 0
      %p173 = por %p171, %p172
      %p174 = scmp.ne.s32.totalorder %s163, %s166
      %p175 = scmp.eq.s32.totalorder %s22, 1
      %p176 = por %p174, %p175
      %p177 = scmp.ne.s32.totalorder %s166, %s167
      %p178 = scmp.eq.s32.totalorder %s22, 0
      %p179 = por %p177, %p178
      %p180 = scmp.ne.s32.totalorder %s166, %s167
      %p181 = scmp.eq.s32.totalorder %s23, 1
      %p182 = por %p180, %p181
      %p184 = scmp.ne.s32.totalorder %s167, %s183
      %p185 = scmp.eq.s32.totalorder %s23, 0
      %p186 = por %p184, %p185
      %s187 = ssub.s32 %s17, %s24
      %p188 = scmp.eq.s32.totalorder %s187, 0
      %s190 = sadd.s32 %s189, 1
      %s191 = scalar_select %p188, %s189, %s190
      %p194 = pneg %p188
      %p195 = scmp.eq.s32.totalorder %s17, 1
      %p196 = por %p194, %p195
      %p197 = scmp.ne.s32.totalorder %s189, %s192
      %p198 = scmp.eq.s32.totalorder %s17, 0
      %p199 = por %p197, %p198
      %p200 = scmp.ne.s32.totalorder %s189, %s192
      %p201 = scmp.eq.s32.totalorder %s22, 1
      %p202 = por %p200, %p201
      %p203 = scmp.ne.s32.totalorder %s192, %s193
      %p204 = scmp.eq.s32.totalorder %s22, 0
      %p205 = por %p203, %p204
      %p206 = scmp.ne.s32.totalorder %s192, %s193
      %p207 = scmp.eq.s32.totalorder %s23, 1
      %p208 = por %p206, %p207
      %p210 = scmp.ne.s32.totalorder %s193, %s209
      %p211 = scmp.eq.s32.totalorder %s23, 0
      %p212 = por %p210, %p211
      %p213 = scmp.le.s32.totalorder 1, %s17
      %p214 = scmp.lt.s32.totalorder %s17, 3
      %p215 = pnand %p213, %p214
      %p216 = pneg %p215
      // Predicated region
      $region9: #{tpu_custom_call.1} parent=5 // pred_check
        _
      $region10: #{tpu_custom_call.1} parent=5 // pred_check_branch
        %218 = sbr.rel (%p215) target = $region12
      $region11: #{tpu_custom_call.1} parent=5 // pred_region
        %s219 = ssub.s32 %s17, 1
        // Predicated region
        $region13: #{tpu_custom_call.1} parent=11 // pred_check
          %p220 = pneg %p38
        $region14: #{tpu_custom_call.1} parent=11 // pred_check_branch
          %222 = sbr.rel (%p220) target = $region16
        $region15: #{tpu_custom_call.1} parent=11 // pred_region
          _
        $region16: #{tpu_custom_call.1} parent=11 // pred_fallthru
          _
        // Predicated region
        $region17: #{tpu_custom_call.1} parent=11 // pred_check
          %p223 = pneg %p111
        $region18: #{tpu_custom_call.1} parent=11 // pred_check_branch
          %225 = sbr.rel (%p223) target = $region20
        $region19: #{tpu_custom_call.1} parent=11 // pred_region
          _
        $region20: #{tpu_custom_call.1} parent=11 // pred_fallthru
          _
        // Predicated region
        $region21: #{tpu_custom_call.1} parent=11 // pred_check
          %p226 = pneg %p132
        $region22: #{tpu_custom_call.1} parent=11 // pred_check_branch
          %228 = sbr.rel (%p226) target = $region24
        $region23: #{tpu_custom_call.1} parent=11 // pred_region
          _
        $region24: #{tpu_custom_call.1} parent=11 // pred_fallthru
          _
        // Predicated region
        $region25: #{tpu_custom_call.1} parent=11 // pred_check
          %p229 = pneg %p153
        $region26: #{tpu_custom_call.1} parent=11 // pred_check_branch
          %231 = sbr.rel (%p229) target = $region28
        $region27: #{tpu_custom_call.1} parent=11 // pred_region
          %s233 = ssub.s32 4096, 4096
          %234 = vsyncadd [#allocation4], %s233
          %s235 = sshll.u32 [#allocation3], 4
          %s236 = int_to_ptr.vmem [resolvable:$true] %s235
          %241 = dma.hbm_to_vmem [thread:$0]  %s5, 4096, %s236, [#allocation4], 128, 128, 8
        $region28: #{tpu_custom_call.1} parent=11 // pred_fallthru
          _
      $region12: #{tpu_custom_call.1} parent=5 // pred_fallthru
        _
      %p242 = scmp.lt.s32.totalorder %s17, 2
      // Predicated region
      $region29: #{tpu_custom_call.1} parent=5 // pred_check
        %p243 = pneg %p242
      $region30: #{tpu_custom_call.1} parent=5 // pred_check_branch
        %245 = sbr.rel (%p243) target = $region32
      $region31: #{tpu_custom_call.1} parent=5 // pred_region
        // Predicated region
        $region33: #{tpu_custom_call.1} parent=31 // pred_check
          %p246 = pneg %p58
        $region34: #{tpu_custom_call.1} parent=31 // pred_check_branch
          %248 = sbr.rel (%p246) target = $region36
        $region35: #{tpu_custom_call.1} parent=31 // pred_region
          %s249 = smul.u32 16, %s17
          %p250 = scmp.lt.s32.totalorder %s249, 31
          %s251 = scalar_select %p250, %s249, 31
          %s252 = smul.addr %s251, 2
          %s253 = smul.addr %s252, 8
          %s254 = scalar_lea.vmem %s1, %s253
          %s255 = smul.u32 16, %s17
        $region36: #{tpu_custom_call.1} parent=31 // pred_fallthru
          _
        // Predicated region
        $region37: #{tpu_custom_call.1} parent=31 // pred_check
          %p256 = pneg %p84
        $region38: #{tpu_custom_call.1} parent=31 // pred_check_branch
          %258 = sbr.rel (%p256) target = $region40
        $region39: #{tpu_custom_call.1} parent=31 // pred_region
          %s259 = smul.u32 16, %s17
          %p260 = scmp.lt.s32.totalorder %s259, 31
          %s261 = scalar_select %p260, %s259, 31
          %s262 = smul.addr %s261, 2
          %s263 = smul.addr %s262, 8
          %s264 = scalar_lea.vmem %s2, %s263
          %s265 = smul.u32 16, %s17
        $region40: #{tpu_custom_call.1} parent=31 // pred_fallthru
          _
      $region32: #{tpu_custom_call.1} parent=5 // pred_fallthru
        _
      %p266 = scmp.le.s32.totalorder 1, %s17
      %p267 = scmp.lt.s32.totalorder %s17, 3
      %p268 = pnand %p266, %p267
      %p269 = pneg %p268
      // Predicated region
      $region41: #{tpu_custom_call.1} parent=5 // pred_check
        _
      $region42: #{tpu_custom_call.1} parent=5 // pred_check_branch
        %271 = sbr.rel (%p268) target = $region44
      $region43: #{tpu_custom_call.1} parent=5 // pred_region
        %s272 = ssub.s32 %s17, 1
        // Predicated region
        $region45: #{tpu_custom_call.1} parent=43 // pred_check
          %p273 = pneg %p153
        $region46: #{tpu_custom_call.1} parent=43 // pred_check_branch
          %275 = sbr.rel (%p273) target = $region48
        $region47: #{tpu_custom_call.1} parent=43 // pred_region
          %276 = dma.done [#allocation4], 4096
        $region48: #{tpu_custom_call.1} parent=43 // pred_fallthru
          _
        %p277 = pneg %p38
        %p278 = pneg %p35
        %s279 = smul.u32 16, %s22
        %p280 = scmp.lt.s32.totalorder %s279, 31
        %s281 = scalar_select %p280, %s279, 31
        %s282 = smul.addr %s281, 2
        %s283 = smul.addr %s282, 8
        %s284 = scalar_lea.vmem %s1, %s283
        %p285 = pneg %p64
        %p286 = pneg %p61
        %s287 = smul.u32 16, %s22
        %p288 = scmp.lt.s32.totalorder %s287, 31
        %s289 = scalar_select %p288, %s287, 31
        %s290 = smul.addr %s289, 2
        %s291 = smul.addr %s290, 8
        %s292 = scalar_lea.vmem %s2, %s291
        %p293 = pneg %p90
        %p294 = pneg %p87
        %p295 = pneg %p111
        %p296 = pneg %p108
        %p297 = pneg %p132
        %p298 = pneg %p129
        %p299 = pneg %p153
        %p300 = pneg %p150
        %p301 = pneg %p179
        %p302 = pneg %p176
        %p303 = scmp.lt.s32.totalorder %s22, 1
        %s304 = scalar_select %p303, %s22, 1
        %s305 = scalar_lea.vmem %s6, %s304
        %p306 = pneg %p205
        %p307 = pneg %p202
        %s308 = smul.u32 16, %s22
        %p309 = scmp.lt.s32.totalorder %s308, 31
        %s310 = scalar_select %p309, %s308, 31
        %s311 = smul.addr %s310, 2
        %s312 = smul.addr %s311, 8
        %s313 = scalar_lea.vmem %s7, %s312
        %s314 = smul.u32 16, %s22
        %p315 = scmp.lt.s32.totalorder %s314, 31
        %s316 = scalar_select %p315, %s314, 31
        %s317 = smul.addr %s316, 2
        %s318 = smul.addr %s317, 8
        %s319 = scalar_lea.vmem %s1, %s318
        %s320 = smul.u32 16, %s22
        %s321 = smul.u32 16, %s22
        %p322 = scmp.lt.s32.totalorder %s321, 31
        %s323 = scalar_select %p322, %s321, 31
        %s324 = smul.addr %s323, 2
        %s325 = smul.addr %s324, 8
        %s326 = scalar_lea.vmem %s2, %s325
        %s327 = smul.u32 16, %s22
        %p328 = scmp.lt.s32.totalorder %s22, 1
        %s329 = scalar_select %p328, %s22, 1
        %s330 = scalar_lea.vmem %s6, %s329
        %s331 = smul.u32 16, %s22
        %p332 = scmp.lt.s32.totalorder %s331, 31
        %s333 = scalar_select %p332, %s331, 31
        %s334 = smul.addr %s333, 2
        %s335 = smul.addr %s334, 8
        %s336 = scalar_lea.vmem %s7, %s335
        %s337 = smul.u32 16, %s22
        %v339 = vld [vmem:[#allocation2] sm:$0x1]
        %s340 = smul.u32 %s22, 128
        %v341 = vld [vmem:[%s319] sm:$0xff]
        %v342 = vld [vmem:[%s319 + $0x8] sm:$0xff]
        %v343 = vld [vmem:[%s319 + $0x10] sm:$0xff]
        %v344 = vld [vmem:[%s319 + $0x18] sm:$0xff]
        %v345 = vld [vmem:[%s319 + $0x20] sm:$0xff]
        %v346 = vld [vmem:[%s319 + $0x28] sm:$0xff]
        %v347 = vld [vmem:[%s319 + $0x30] sm:$0xff]
        %v348 = vld [vmem:[%s319 + $0x38] sm:$0xff]
        %v349 = vld [vmem:[%s319 + $0x40] sm:$0xff]
        %v350 = vld [vmem:[%s319 + $0x48] sm:$0xff]
        %v351 = vld [vmem:[%s319 + $0x50] sm:$0xff]
        %v352 = vld [vmem:[%s319 + $0x58] sm:$0xff]
        %v353 = vld [vmem:[%s319 + $0x60] sm:$0xff]
        %v354 = vld [vmem:[%s319 + $0x68] sm:$0xff]
        %v355 = vld [vmem:[%s319 + $0x70] sm:$0xff]
        %v356 = vld [vmem:[%s319 + $0x78] sm:$0xff]
        %v357 = vld [vmem:[%s319 + $0x80] sm:$0xff]
        %v358 = vld [vmem:[%s319 + $0x88] sm:$0xff]
        %v359 = vld [vmem:[%s319 + $0x90] sm:$0xff]
        %v360 = vld [vmem:[%s319 + $0x98] sm:$0xff]
        %v361 = vld [vmem:[%s319 + $0xa0] sm:$0xff]
        %v362 = vld [vmem:[%s319 + $0xa8] sm:$0xff]
        %v363 = vld [vmem:[%s319 + $0xb0] sm:$0xff]
        %v364 = vld [vmem:[%s319 + $0xb8] sm:$0xff]
        %v365 = vld [vmem:[%s319 + $0xc0] sm:$0xff]
        %v366 = vld [vmem:[%s319 + $0xc8] sm:$0xff]
        %v367 = vld [vmem:[%s319 + $0xd0] sm:$0xff]
        %v368 = vld [vmem:[%s319 + $0xd8] sm:$0xff]
        %v369 = vld [vmem:[%s319 + $0xe0] sm:$0xff]
        %v370 = vld [vmem:[%s319 + $0xe8] sm:$0xff]
        %v371 = vld [vmem:[%s319 + $0xf0] sm:$0xff]
        %v372 = vld [vmem:[%s319 + $0xf8] sm:$0xff]
        %v373 = vld [vmem:[%s3] sm:$0x3]
        %v374 = vld [vmem:[%s4] sm:$0x1]
        %v375 = vld [vmem:[#allocation3] sm:$0xff]
        %v376 = vld [vmem:[#allocation3 + $0x8] sm:$0xff]
        %v377 = vld [vmem:[#allocation3 + $0x10] sm:$0xff]
        %v378 = vld [vmem:[#allocation3 + $0x18] sm:$0xff]
        %v379 = vld [vmem:[#allocation3 + $0x20] sm:$0xff]
        %v380 = vld [vmem:[#allocation3 + $0x28] sm:$0xff]
        %v381 = vld [vmem:[#allocation3 + $0x30] sm:$0xff]
        %v382 = vld [vmem:[#allocation3 + $0x38] sm:$0xff]
        %v383 = vld [vmem:[#allocation3 + $0x40] sm:$0xff]
        %v384 = vld [vmem:[#allocation3 + $0x48] sm:$0xff]
        %v385 = vld [vmem:[#allocation3 + $0x50] sm:$0xff]
        %v386 = vld [vmem:[#allocation3 + $0x58] sm:$0xff]
        %v387 = vld [vmem:[#allocation3 + $0x60] sm:$0xff]
        %v388 = vld [vmem:[#allocation3 + $0x68] sm:$0xff]
        %v389 = vld [vmem:[#allocation3 + $0x70] sm:$0xff]
        %v390 = vld [vmem:[#allocation3 + $0x78] sm:$0xff]
        %v391 = vld [vmem:[#allocation3 + $0x80] sm:$0xff]
        %v392 = vld [vmem:[#allocation3 + $0x88] sm:$0xff]
        %v393 = vld [vmem:[#allocation3 + $0x90] sm:$0xff]
        %v394 = vld [vmem:[#allocation3 + $0x98] sm:$0xff]
        %v395 = vld [vmem:[#allocation3 + $0xa0] sm:$0xff]
        %v396 = vld [vmem:[#allocation3 + $0xa8] sm:$0xff]
        %v397 = vld [vmem:[#allocation3 + $0xb0] sm:$0xff]
        %v398 = vld [vmem:[#allocation3 + $0xb8] sm:$0xff]
        %v399 = vld [vmem:[#allocation3 + $0xc0] sm:$0xff]
        %v400 = vld [vmem:[#allocation3 + $0xc8] sm:$0xff]
        %v401 = vld [vmem:[#allocation3 + $0xd0] sm:$0xff]
        %v402 = vld [vmem:[#allocation3 + $0xd8] sm:$0xff]
        %v403 = vld [vmem:[#allocation3 + $0xe0] sm:$0xff]
        %v404 = vld [vmem:[#allocation3 + $0xe8] sm:$0xff]
        %v405 = vld [vmem:[#allocation3 + $0xf0] sm:$0xff]
        %v406 = vld [vmem:[#allocation3 + $0xf8] sm:$0xff]
        %v407 = vpack.c.bf16 %v376, %v375
        %v408 = vpack.c.bf16 %v378, %v377
        %v409 = vpack.c.bf16 %v380, %v379
        %v410 = vpack.c.bf16 %v382, %v381
        %v411 = vpack.c.bf16 %v384, %v383
        %v412 = vpack.c.bf16 %v386, %v385
        %v413 = vpack.c.bf16 %v388, %v387
        %v414 = vpack.c.bf16 %v390, %v389
        %v415 = vpack.c.bf16 %v392, %v391
        %v416 = vpack.c.bf16 %v394, %v393
        %v417 = vpack.c.bf16 %v396, %v395
        %v418 = vpack.c.bf16 %v398, %v397
        %v419 = vpack.c.bf16 %v400, %v399
        %v420 = vpack.c.bf16 %v402, %v401
        %v421 = vpack.c.bf16 %v404, %v403
        %v422 = vpack.c.bf16 %v406, %v405
        %v424 = vlaneseq
        %v425 = vshrl.u32 %v424, 7
        %v426 = vsub.s32 0, %v425
        %v427 = vrot.slane %v373, %v426
        %v428 = vlaneseq
        %v429 = vshrl.u32 %v428, 7
        %v430 = vsub.s32 1, %v429
        %v431 = vrot.slane %v373, %v430
        %v435 = vlaneseq
        %v436 = vshrl.u32 %v435, 7
        %v437 = vsub.s32 0, %v436
        %v438 = vrot.slane %v374, %v437
        %v440 = vpack.c.bf16 %v343, %v341
        %v441 = vpack.c.bf16 %v344, %v342
        %v442 = vpack.c.bf16 %v347, %v345
        %v443 = vpack.c.bf16 %v348, %v346
        %v444 = vpack.c.bf16 %v351, %v349
        %v445 = vpack.c.bf16 %v352, %v350
        %v446 = vpack.c.bf16 %v355, %v353
        %v447 = vpack.c.bf16 %v356, %v354
        %v448 = vpack.c.bf16 %v359, %v357
        %v449 = vpack.c.bf16 %v360, %v358
        %v450 = vpack.c.bf16 %v363, %v361
        %v451 = vpack.c.bf16 %v364, %v362
        %v452 = vpack.c.bf16 %v367, %v365
        %v453 = vpack.c.bf16 %v368, %v366
        %v454 = vpack.c.bf16 %v371, %v369
        %v455 = vpack.c.bf16 %v372, %v370
        %456 = vmatprep.subr.bf16.mxu0 0
        %457 = vmatpush1.bf16.msra.mxu0 %v407
        %458 = vmatprep.subr.bf16.mxu0 0
        %459 = vmatpush1.bf16.msra.mxu0 %v408
        %460 = vmatprep.subr.bf16.mxu0 0
        %461 = vmatpush1.bf16.msra.mxu0 %v409
        %462 = vmatprep.subr.bf16.mxu0 0
        %463 = vmatpush1.bf16.msra.mxu0 %v410
        %464 = vmatprep.subr.bf16.mxu0 0
        %465 = vmatpush1.bf16.msra.mxu0 %v411
        %466 = vmatprep.subr.bf16.mxu0 0
        %467 = vmatpush1.bf16.msra.mxu0 %v412
        %468 = vmatprep.subr.bf16.mxu0 0
        %469 = vmatpush1.bf16.msra.mxu0 %v413
        %470 = vmatprep.subr.bf16.mxu0 0
        %471 = vmatpush1.bf16.msra.mxu0 %v414
        %472 = vmatprep.subr.bf16.mxu0 0
        %473 = vmatpush1.bf16.msra.mxu0 %v415
        %474 = vmatprep.subr.bf16.mxu0 0
        %475 = vmatpush1.bf16.msra.mxu0 %v416
        %476 = vmatprep.subr.bf16.mxu0 0
        %477 = vmatpush1.bf16.msra.mxu0 %v417
        %478 = vmatprep.subr.bf16.mxu0 0
        %479 = vmatpush1.bf16.msra.mxu0 %v418
        %480 = vmatprep.subr.bf16.mxu0 0
        %481 = vmatpush1.bf16.msra.mxu0 %v419
        %482 = vmatprep.subr.bf16.mxu0 0
        %483 = vmatpush1.bf16.msra.mxu0 %v420
        %484 = vmatprep.subr.bf16.mxu0 0
        %485 = vmatpush1.bf16.msra.mxu0 %v421
        %486 = vmatprep.subr.bf16.mxu0 0
        %487 = vmatpush1.bf16.msra.mxu0 %v422
        %488 = vmatprep.mubr.bf16.mxu0 %v441
        %489 = vmatmul.mubr.bf16.gmra.mrb[0].mxu0 %v440
        %v490 = vpop.f32.mrb[0].mxu0
        %v491 = vadd.f32 0.0, %v490
        %v492 = vpop.f32.mrb[0].mxu0
        %v493 = vpop.f32.mrb[0].mxu0
        %v494 = vadd.f32 0.0, %v493
        %v495 = vpop.f32.mrb[0].mxu0
        %496 = vmatprep.mubr.bf16.mxu0 %v443
        %497 = vmatmul.mubr.bf16.gmra.mrb[0].mxu0 %v442
        %v498 = vpop.f32.mrb[0].mxu0
        %v499 = vadd.f32 0.0, %v498
        %v500 = vpop.f32.mrb[0].mxu0
        %v501 = vpop.f32.mrb[0].mxu0
        %v502 = vadd.f32 0.0, %v501
        %v503 = vpop.f32.mrb[0].mxu0
        %504 = vmatprep.mubr.bf16.mxu0 %v445
        %505 = vmatmul.mubr.bf16.gmra.mrb[0].mxu0 %v444
        %v506 = vpop.f32.mrb[0].mxu0
        %v507 = vadd.f32 0.0, %v506
        %v508 = vpop.f32.mrb[0].mxu0
        %v509 = vpop.f32.mrb[0].mxu0
        %v510 = vadd.f32 0.0, %v509
        %v511 = vpop.f32.mrb[0].mxu0
        %512 = vmatprep.mubr.bf16.mxu0 %v447
        %513 = vmatmul.mubr.bf16.gmra.mrb[0].mxu0 %v446
        %v514 = vpop.f32.mrb[0].mxu0
        %v515 = vadd.f32 0.0, %v514
        %v516 = vpop.f32.mrb[0].mxu0
        %v517 = vpop.f32.mrb[0].mxu0
        %v518 = vadd.f32 0.0, %v517
        %v519 = vpop.f32.mrb[0].mxu0
        %520 = vmatprep.mubr.bf16.mxu0 %v449
        %521 = vmatmul.mubr.bf16.gmra.mrb[0].mxu0 %v448
        %v522 = vpop.f32.mrb[0].mxu0
        %v523 = vadd.f32 0.0, %v522
        %v524 = vpop.f32.mrb[0].mxu0
        %v525 = vpop.f32.mrb[0].mxu0
        %v526 = vadd.f32 0.0, %v525
        %v527 = vpop.f32.mrb[0].mxu0
        %528 = vmatprep.mubr.bf16.mxu0 %v451
        %529 = vmatmul.mubr.bf16.gmra.mrb[0].mxu0 %v450
        %v530 = vpop.f32.mrb[0].mxu0
        %v531 = vadd.f32 0.0, %v530
        %v532 = vpop.f32.mrb[0].mxu0
        %v533 = vpop.f32.mrb[0].mxu0
        %v534 = vadd.f32 0.0, %v533
        %v535 = vpop.f32.mrb[0].mxu0
        %536 = vmatprep.mubr.bf16.mxu0 %v453
        %537 = vmatmul.mubr.bf16.gmra.mrb[0].mxu0 %v452
        %v538 = vpop.f32.mrb[0].mxu0
        %v539 = vadd.f32 0.0, %v538
        %v540 = vpop.f32.mrb[0].mxu0
        %v541 = vpop.f32.mrb[0].mxu0
        %v542 = vadd.f32 0.0, %v541
        %v543 = vpop.f32.mrb[0].mxu0
        %544 = vmatprep.mubr.bf16.mxu0 %v455
        %545 = vmatmul.mubr.bf16.gmra.mrb[0].mxu0 %v454
        %v546 = vpop.f32.mrb[0].mxu0
        %v547 = vadd.f32 0.0, %v546
        %v548 = vpop.f32.mrb[0].mxu0
        %v549 = vpop.f32.mrb[0].mxu0
        %v550 = vadd.f32 0.0, %v549
        %v551 = vpop.f32.mrb[0].mxu0
        %552 = vdwg.mxu0
        %v553 = vadd.f32 %v438, %v491
        %v554 = vadd.f32 %v438, %v494
        %v555 = vadd.f32 %v438, %v499
        %v556 = vadd.f32 %v438, %v502
        %v557 = vadd.f32 %v438, %v507
        %v558 = vadd.f32 %v438, %v510
        %v559 = vadd.f32 %v438, %v515
        %v560 = vadd.f32 %v438, %v518
        %v561 = vadd.f32 %v438, %v523
        %v562 = vadd.f32 %v438, %v526
        %v563 = vadd.f32 %v438, %v531
        %v564 = vadd.f32 %v438, %v534
        %v565 = vadd.f32 %v438, %v539
        %v566 = vadd.f32 %v438, %v542
        %v567 = vadd.f32 %v438, %v547
        %v568 = vadd.f32 %v438, %v550
        %v569 = vxor.u32 %v553, 2147483648
        %v570 = vxor.u32 %v554, 2147483648
        %v571 = vxor.u32 %v555, 2147483648
        %v572 = vxor.u32 %v556, 2147483648
        %v573 = vxor.u32 %v557, 2147483648
        %v574 = vxor.u32 %v558, 2147483648
        %v575 = vxor.u32 %v559, 2147483648
        %v576 = vxor.u32 %v560, 2147483648
        %v577 = vxor.u32 %v561, 2147483648
        %v578 = vxor.u32 %v562, 2147483648
        %v579 = vxor.u32 %v563, 2147483648
        %v580 = vxor.u32 %v564, 2147483648
        %v581 = vxor.u32 %v565, 2147483648
        %v582 = vxor.u32 %v566, 2147483648
        %v583 = vxor.u32 %v567, 2147483648
        %v584 = vxor.u32 %v568, 2147483648
        %v585 = vmul.f32 %v569, 1.442695
        %v586 = vpow.pop %v585
        %v587 = vmul.f32 %v570, 1.442695
        %v588 = vpow.pop %v587
        %v589 = vmul.f32 %v571, 1.442695
        %v590 = vpow.pop %v589
        %v591 = vmul.f32 %v572, 1.442695
        %v592 = vpow.pop %v591
        %v593 = vmul.f32 %v573, 1.442695
        %v594 = vpow.pop %v593
        %v595 = vmul.f32 %v574, 1.442695
        %v596 = vpow.pop %v595
        %v597 = vmul.f32 %v575, 1.442695
        %v598 = vpow.pop %v597
        %v599 = vmul.f32 %v576, 1.442695
        %v600 = vpow.pop %v599
        %v601 = vmul.f32 %v577, 1.442695
        %v602 = vpow.pop %v601
        %v603 = vmul.f32 %v578, 1.442695
        %v604 = vpow.pop %v603
        %v605 = vmul.f32 %v579, 1.442695
        %v606 = vpow.pop %v605
        %v607 = vmul.f32 %v580, 1.442695
        %v608 = vpow.pop %v607
        %v609 = vmul.f32 %v581, 1.442695
        %v610 = vpow.pop %v609
        %v611 = vmul.f32 %v582, 1.442695
        %v612 = vpow.pop %v611
        %v613 = vmul.f32 %v583, 1.442695
        %v614 = vpow.pop %v613
        %v615 = vmul.f32 %v584, 1.442695
        %v616 = vpow.pop %v615
        %v617 = vadd.f32 %v586, 1.0
        %v618 = vadd.f32 %v588, 1.0
        %v619 = vadd.f32 %v590, 1.0
        %v620 = vadd.f32 %v592, 1.0
        %v621 = vadd.f32 %v594, 1.0
        %v622 = vadd.f32 %v596, 1.0
        %v623 = vadd.f32 %v598, 1.0
        %v624 = vadd.f32 %v600, 1.0
        %v625 = vadd.f32 %v602, 1.0
        %v626 = vadd.f32 %v604, 1.0
        %v627 = vadd.f32 %v606, 1.0
        %v628 = vadd.f32 %v608, 1.0
        %v629 = vadd.f32 %v610, 1.0
        %v630 = vadd.f32 %v612, 1.0
        %v631 = vadd.f32 %v614, 1.0
        %v632 = vadd.f32 %v616, 1.0
        %v633 = vrcp.pop %v617
        %v634 = vmul.f32 1.0, %v633
        %v635 = vrcp.pop %v618
        %v636 = vmul.f32 1.0, %v635
        %v637 = vrcp.pop %v619
        %v638 = vmul.f32 1.0, %v637
        %v639 = vrcp.pop %v620
        %v640 = vmul.f32 1.0, %v639
        %v641 = vrcp.pop %v621
        %v642 = vmul.f32 1.0, %v641
        %v643 = vrcp.pop %v622
        %v644 = vmul.f32 1.0, %v643
        %v645 = vrcp.pop %v623
        %v646 = vmul.f32 1.0, %v645
        %v647 = vrcp.pop %v624
        %v648 = vmul.f32 1.0, %v647
        %v649 = vrcp.pop %v625
        %v650 = vmul.f32 1.0, %v649
        %v651 = vrcp.pop %v626
        %v652 = vmul.f32 1.0, %v651
        %v653 = vrcp.pop %v627
        %v654 = vmul.f32 1.0, %v653
        %v655 = vrcp.pop %v628
        %v656 = vmul.f32 1.0, %v655
        %v657 = vrcp.pop %v629
        %v658 = vmul.f32 1.0, %v657
        %v659 = vrcp.pop %v630
        %v660 = vmul.f32 1.0, %v659
        %v661 = vrcp.pop %v631
        %v662 = vmul.f32 1.0, %v661
        %v663 = vrcp.pop %v632
        %v664 = vmul.f32 1.0, %v663
        %v665 = vmul.u32 %v339, 2654435769
        %v666 = vlaneseq
        %v667 = vshrl.u32 %v666, 7
        %v668 = vadd.s32 %v667, 8
        %v669 = vadd.s32 %v667, 16
        %v670 = vadd.s32 %v667, 24
        %v671 = vadd.s32 %v667, 32
        %v672 = vadd.s32 %v667, 40
        %v673 = vadd.s32 %v667, 48
        %v674 = vadd.s32 %v667, 56
        %v675 = vadd.s32 %v667, 64
        %v676 = vadd.s32 %v667, 72
        %v677 = vadd.s32 %v667, 80
        %v678 = vadd.s32 %v667, 88
        %v679 = vadd.s32 %v667, 96
        %v680 = vadd.s32 %v667, 104
        %v681 = vadd.s32 %v667, 112
        %v682 = vadd.s32 %v667, 120
        %v683 = vstv %s340
        %v684 = vadd.s32 %v667, %v683
        %v685 = vadd.s32 %v668, %v683
        %v686 = vadd.s32 %v669, %v683
        %v687 = vadd.s32 %v670, %v683
        %v688 = vadd.s32 %v671, %v683
        %v689 = vadd.s32 %v672, %v683
        %v690 = vadd.s32 %v673, %v683
        %v691 = vadd.s32 %v674, %v683
        %v692 = vadd.s32 %v675, %v683
        %v693 = vadd.s32 %v676, %v683
        %v694 = vadd.s32 %v677, %v683
        %v695 = vadd.s32 %v678, %v683
        %v696 = vadd.s32 %v679, %v683
        %v697 = vadd.s32 %v680, %v683
        %v698 = vadd.s32 %v681, %v683
        %v699 = vadd.s32 %v682, %v683
        %v700 = vlaneseq
        %v701 = vand.u32 %v700, 127
        %v702 = vmul.u32 %v684, 2246822507
        %v703 = vmul.u32 %v685, 2246822507
        %v704 = vmul.u32 %v686, 2246822507
        %v705 = vmul.u32 %v687, 2246822507
        %v706 = vmul.u32 %v688, 2246822507
        %v707 = vmul.u32 %v689, 2246822507
        %v708 = vmul.u32 %v690, 2246822507
        %v709 = vmul.u32 %v691, 2246822507
        %v710 = vmul.u32 %v692, 2246822507
        %v711 = vmul.u32 %v693, 2246822507
        %v712 = vmul.u32 %v694, 2246822507
        %v713 = vmul.u32 %v695, 2246822507
        %v714 = vmul.u32 %v696, 2246822507
        %v715 = vmul.u32 %v697, 2246822507
        %v716 = vmul.u32 %v698, 2246822507
        %v717 = vmul.u32 %v699, 2246822507
        %v718 = vmul.u32 %v701, 3266489909
        %v719 = vadd.s32 %v702, %v718
        %v720 = vadd.s32 %v703, %v718
        %v721 = vadd.s32 %v704, %v718
        %v722 = vadd.s32 %v705, %v718
        %v723 = vadd.s32 %v706, %v718
        %v724 = vadd.s32 %v707, %v718
        %v725 = vadd.s32 %v708, %v718
        %v726 = vadd.s32 %v709, %v718
        %v727 = vadd.s32 %v710, %v718
        %v728 = vadd.s32 %v711, %v718
        %v729 = vadd.s32 %v712, %v718
        %v730 = vadd.s32 %v713, %v718
        %v731 = vadd.s32 %v714, %v718
        %v732 = vadd.s32 %v715, %v718
        %v733 = vadd.s32 %v716, %v718
        %v734 = vadd.s32 %v717, %v718
        %v735 = vlaneseq
        %v736 = vshrl.u32 %v735, 7
        %v737 = vsub.s32 0, %v736
        %v738 = vrot.slane %v665, %v737
        %739 = vset.pattern.permute.xlu0 0
        %740 = vperm.xlu0 %739, %v738
        %v741 = vpop.permute.xlu0 %740
        %v742 = vxor.u32 %v719, %v741
        %v743 = vxor.u32 %v720, %v741
        %v744 = vxor.u32 %v721, %v741
        %v745 = vxor.u32 %v722, %v741
        %v746 = vxor.u32 %v723, %v741
        %v747 = vxor.u32 %v724, %v741
        %v748 = vxor.u32 %v725, %v741
        %v749 = vxor.u32 %v726, %v741
        %v750 = vxor.u32 %v727, %v741
        %v751 = vxor.u32 %v728, %v741
        %v752 = vxor.u32 %v729, %v741
        %v753 = vxor.u32 %v730, %v741
        %v754 = vxor.u32 %v731, %v741
        %v755 = vxor.u32 %v732, %v741
        %v756 = vxor.u32 %v733, %v741
        %v757 = vxor.u32 %v734, %v741
        %v758 = vshrl.u32 %v742, 16
        %v759 = vshrl.u32 %v743, 16
        %v760 = vshrl.u32 %v744, 16
        %v761 = vshrl.u32 %v745, 16
        %v762 = vshrl.u32 %v746, 16
        %v763 = vshrl.u32 %v747, 16
        %v764 = vshrl.u32 %v748, 16
        %v765 = vshrl.u32 %v749, 16
        %v766 = vshrl.u32 %v750, 16
        %v767 = vshrl.u32 %v751, 16
        %v768 = vshrl.u32 %v752, 16
        %v769 = vshrl.u32 %v753, 16
        %v770 = vshrl.u32 %v754, 16
        %v771 = vshrl.u32 %v755, 16
        %v772 = vshrl.u32 %v756, 16
        %v773 = vshrl.u32 %v757, 16
        %v774 = vxor.u32 %v742, %v758
        %v775 = vxor.u32 %v743, %v759
        %v776 = vxor.u32 %v744, %v760
        %v777 = vxor.u32 %v745, %v761
        %v778 = vxor.u32 %v746, %v762
        %v779 = vxor.u32 %v747, %v763
        %v780 = vxor.u32 %v748, %v764
        %v781 = vxor.u32 %v749, %v765
        %v782 = vxor.u32 %v750, %v766
        %v783 = vxor.u32 %v751, %v767
        %v784 = vxor.u32 %v752, %v768
        %v785 = vxor.u32 %v753, %v769
        %v786 = vxor.u32 %v754, %v770
        %v787 = vxor.u32 %v755, %v771
        %v788 = vxor.u32 %v756, %v772
        %v789 = vxor.u32 %v757, %v773
        %v790 = vmul.u32 %v774, 2146121005
        %v791 = vmul.u32 %v775, 2146121005
        %v792 = vmul.u32 %v776, 2146121005
        %v793 = vmul.u32 %v777, 2146121005
        %v794 = vmul.u32 %v778, 2146121005
        %v795 = vmul.u32 %v779, 2146121005
        %v796 = vmul.u32 %v780, 2146121005
        %v797 = vmul.u32 %v781, 2146121005
        %v798 = vmul.u32 %v782, 2146121005
        %v799 = vmul.u32 %v783, 2146121005
        %v800 = vmul.u32 %v784, 2146121005
        %v801 = vmul.u32 %v785, 2146121005
        %v802 = vmul.u32 %v786, 2146121005
        %v803 = vmul.u32 %v787, 2146121005
        %v804 = vmul.u32 %v788, 2146121005
        %v805 = vmul.u32 %v789, 2146121005
        %v806 = vshrl.u32 %v790, 15
        %v807 = vshrl.u32 %v791, 15
        %v808 = vshrl.u32 %v792, 15
        %v809 = vshrl.u32 %v793, 15
        %v810 = vshrl.u32 %v794, 15
        %v811 = vshrl.u32 %v795, 15
        %v812 = vshrl.u32 %v796, 15
        %v813 = vshrl.u32 %v797, 15
        %v814 = vshrl.u32 %v798, 15
        %v815 = vshrl.u32 %v799, 15
        %v816 = vshrl.u32 %v800, 15
        %v817 = vshrl.u32 %v801, 15
        %v818 = vshrl.u32 %v802, 15
        %v819 = vshrl.u32 %v803, 15
        %v820 = vshrl.u32 %v804, 15
        %v821 = vshrl.u32 %v805, 15
        %v822 = vxor.u32 %v790, %v806
        %v823 = vxor.u32 %v791, %v807
        %v824 = vxor.u32 %v792, %v808
        %v825 = vxor.u32 %v793, %v809
        %v826 = vxor.u32 %v794, %v810
        %v827 = vxor.u32 %v795, %v811
        %v828 = vxor.u32 %v796, %v812
        %v829 = vxor.u32 %v797, %v813
        %v830 = vxor.u32 %v798, %v814
        %v831 = vxor.u32 %v799, %v815
        %v832 = vxor.u32 %v800, %v816
        %v833 = vxor.u32 %v801, %v817
        %v834 = vxor.u32 %v802, %v818
        %v835 = vxor.u32 %v803, %v819
        %v836 = vxor.u32 %v804, %v820
        %v837 = vxor.u32 %v805, %v821
        %v838 = vmul.u32 %v822, 2221713035
        %v839 = vmul.u32 %v823, 2221713035
        %v840 = vmul.u32 %v824, 2221713035
        %v841 = vmul.u32 %v825, 2221713035
        %v842 = vmul.u32 %v826, 2221713035
        %v843 = vmul.u32 %v827, 2221713035
        %v844 = vmul.u32 %v828, 2221713035
        %v845 = vmul.u32 %v829, 2221713035
        %v846 = vmul.u32 %v830, 2221713035
        %v847 = vmul.u32 %v831, 2221713035
        %v848 = vmul.u32 %v832, 2221713035
        %v849 = vmul.u32 %v833, 2221713035
        %v850 = vmul.u32 %v834, 2221713035
        %v851 = vmul.u32 %v835, 2221713035
        %v852 = vmul.u32 %v836, 2221713035
        %v853 = vmul.u32 %v837, 2221713035
        %v854 = vshrl.u32 %v838, 16
        %v855 = vshrl.u32 %v839, 16
        %v856 = vshrl.u32 %v840, 16
        %v857 = vshrl.u32 %v841, 16
        %v858 = vshrl.u32 %v842, 16
        %v859 = vshrl.u32 %v843, 16
        %v860 = vshrl.u32 %v844, 16
        %v861 = vshrl.u32 %v845, 16
        %v862 = vshrl.u32 %v846, 16
        %v863 = vshrl.u32 %v847, 16
        %v864 = vshrl.u32 %v848, 16
        %v865 = vshrl.u32 %v849, 16
        %v866 = vshrl.u32 %v850, 16
        %v867 = vshrl.u32 %v851, 16
        %v868 = vshrl.u32 %v852, 16
        %v869 = vshrl.u32 %v853, 16
        %v870 = vxor.u32 %v838, %v854
        %v871 = vxor.u32 %v839, %v855
        %v872 = vxor.u32 %v840, %v856
        %v873 = vxor.u32 %v841, %v857
        %v874 = vxor.u32 %v842, %v858
        %v875 = vxor.u32 %v843, %v859
        %v876 = vxor.u32 %v844, %v860
        %v877 = vxor.u32 %v845, %v861
        %v878 = vxor.u32 %v846, %v862
        %v879 = vxor.u32 %v847, %v863
        %v880 = vxor.u32 %v848, %v864
        %v881 = vxor.u32 %v849, %v865
        %v882 = vxor.u32 %v850, %v866
        %v883 = vxor.u32 %v851, %v867
        %v884 = vxor.u32 %v852, %v868
        %v885 = vxor.u32 %v853, %v869
        %v886 = vshrl.u32 %v870, 8
        %v887 = vshrl.u32 %v871, 8
        %v888 = vshrl.u32 %v872, 8
        %v889 = vshrl.u32 %v873, 8
        %v890 = vshrl.u32 %v874, 8
        %v891 = vshrl.u32 %v875, 8
        %v892 = vshrl.u32 %v876, 8
        %v893 = vshrl.u32 %v877, 8
        %v894 = vshrl.u32 %v878, 8
        %v895 = vshrl.u32 %v879, 8
        %v896 = vshrl.u32 %v880, 8
        %v897 = vshrl.u32 %v881, 8
        %v898 = vshrl.u32 %v882, 8
        %v899 = vshrl.u32 %v883, 8
        %v900 = vshrl.u32 %v884, 8
        %v901 = vshrl.u32 %v885, 8
        %v902 = vmul.f32 %v634, 16777216.0
        %v903 = vmul.f32 %v636, 16777216.0
        %v904 = vmul.f32 %v638, 16777216.0
        %v905 = vmul.f32 %v640, 16777216.0
        %v906 = vmul.f32 %v642, 16777216.0
        %v907 = vmul.f32 %v644, 16777216.0
        %v908 = vmul.f32 %v646, 16777216.0
        %v909 = vmul.f32 %v648, 16777216.0
        %v910 = vmul.f32 %v650, 16777216.0
        %v911 = vmul.f32 %v652, 16777216.0
        %v912 = vmul.f32 %v654, 16777216.0
        %v913 = vmul.f32 %v656, 16777216.0
        %v914 = vmul.f32 %v658, 16777216.0
        %v915 = vmul.f32 %v660, 16777216.0
        %v916 = vmul.f32 %v662, 16777216.0
        %v917 = vmul.f32 %v664, 16777216.0
        %v918 = vcvt.f32.s32.to.zero.pseudo %v902
        %v919 = vcvt.f32.s32.to.zero.pseudo %v903
        %v920 = vcvt.f32.s32.to.zero.pseudo %v904
        %v921 = vcvt.f32.s32.to.zero.pseudo %v905
        %v922 = vcvt.f32.s32.to.zero.pseudo %v906
        %v923 = vcvt.f32.s32.to.zero.pseudo %v907
        %v924 = vcvt.f32.s32.to.zero.pseudo %v908
        %v925 = vcvt.f32.s32.to.zero.pseudo %v909
        %v926 = vcvt.f32.s32.to.zero.pseudo %v910
        %v927 = vcvt.f32.s32.to.zero.pseudo %v911
        %v928 = vcvt.f32.s32.to.zero.pseudo %v912
        %v929 = vcvt.f32.s32.to.zero.pseudo %v913
        %v930 = vcvt.f32.s32.to.zero.pseudo %v914
        %v931 = vcvt.f32.s32.to.zero.pseudo %v915
        %v932 = vcvt.f32.s32.to.zero.pseudo %v916
        %v933 = vcvt.f32.s32.to.zero.pseudo %v917
        %vm934 = vcmp.lt.s32.totalorder %v886, %v918
        %vm935 = vcmp.lt.s32.totalorder %v887, %v919
        %vm936 = vcmp.lt.s32.totalorder %v888, %v920
        %vm937 = vcmp.lt.s32.totalorder %v889, %v921
        %vm938 = vcmp.lt.s32.totalorder %v890, %v922
        %vm939 = vcmp.lt.s32.totalorder %v891, %v923
        %vm940 = vcmp.lt.s32.totalorder %v892, %v924
        %vm941 = vcmp.lt.s32.totalorder %v893, %v925
        %vm942 = vcmp.lt.s32.totalorder %v894, %v926
        %vm943 = vcmp.lt.s32.totalorder %v895, %v927
        %vm944 = vcmp.lt.s32.totalorder %v896, %v928
        %vm945 = vcmp.lt.s32.totalorder %v897, %v929
        %vm946 = vcmp.lt.s32.totalorder %v898, %v930
        %vm947 = vcmp.lt.s32.totalorder %v899, %v931
        %vm948 = vcmp.lt.s32.totalorder %v900, %v932
        %vm949 = vcmp.lt.s32.totalorder %v901, %v933
        %v950 = vsel %vm934, 1.0, 0.0
        %v951 = vsel %vm935, 1.0, 0.0
        %v952 = vsel %vm936, 1.0, 0.0
        %v953 = vsel %vm937, 1.0, 0.0
        %v954 = vsel %vm938, 1.0, 0.0
        %v955 = vsel %vm939, 1.0, 0.0
        %v956 = vsel %vm940, 1.0, 0.0
        %v957 = vsel %vm941, 1.0, 0.0
        %v958 = vsel %vm942, 1.0, 0.0
        %v959 = vsel %vm943, 1.0, 0.0
        %v960 = vsel %vm944, 1.0, 0.0
        %v961 = vsel %vm945, 1.0, 0.0
        %v962 = vsel %vm946, 1.0, 0.0
        %v963 = vsel %vm947, 1.0, 0.0
        %v964 = vsel %vm948, 1.0, 0.0
        %v965 = vsel %vm949, 1.0, 0.0
        %v966 = vpack.c.bf16 %v951, %v950
        %v967 = vpack.c.bf16 %v953, %v952
        %v968 = vpack.c.bf16 %v955, %v954
        %v969 = vpack.c.bf16 %v957, %v956
        %v970 = vpack.c.bf16 %v959, %v958
        %v971 = vpack.c.bf16 %v961, %v960
        %v972 = vpack.c.bf16 %v963, %v962
        %v973 = vpack.c.bf16 %v965, %v964
        %v974 = vld [vmem:[%s326] sm:$0xff]
        %v975 = vld [vmem:[%s326 + $0x8] sm:$0xff]
        %v976 = vld [vmem:[%s326 + $0x10] sm:$0xff]
        %v977 = vld [vmem:[%s326 + $0x18] sm:$0xff]
        %v978 = vld [vmem:[%s326 + $0x20] sm:$0xff]
        %v979 = vld [vmem:[%s326 + $0x28] sm:$0xff]
        %v980 = vld [vmem:[%s326 + $0x30] sm:$0xff]
        %v981 = vld [vmem:[%s326 + $0x38] sm:$0xff]
        %v982 = vld [vmem:[%s326 + $0x40] sm:$0xff]
        %v983 = vld [vmem:[%s326 + $0x48] sm:$0xff]
        %v984 = vld [vmem:[%s326 + $0x50] sm:$0xff]
        %v985 = vld [vmem:[%s326 + $0x58] sm:$0xff]
        %v986 = vld [vmem:[%s326 + $0x60] sm:$0xff]
        %v987 = vld [vmem:[%s326 + $0x68] sm:$0xff]
        %v988 = vld [vmem:[%s326 + $0x70] sm:$0xff]
        %v989 = vld [vmem:[%s326 + $0x78] sm:$0xff]
        %v990 = vld [vmem:[%s326 + $0x80] sm:$0xff]
        %v991 = vld [vmem:[%s326 + $0x88] sm:$0xff]
        %v992 = vld [vmem:[%s326 + $0x90] sm:$0xff]
        %v993 = vld [vmem:[%s326 + $0x98] sm:$0xff]
        %v994 = vld [vmem:[%s326 + $0xa0] sm:$0xff]
        %v995 = vld [vmem:[%s326 + $0xa8] sm:$0xff]
        %v996 = vld [vmem:[%s326 + $0xb0] sm:$0xff]
        %v997 = vld [vmem:[%s326 + $0xb8] sm:$0xff]
        %v998 = vld [vmem:[%s326 + $0xc0] sm:$0xff]
        %v999 = vld [vmem:[%s326 + $0xc8] sm:$0xff]
        %v1000 = vld [vmem:[%s326 + $0xd0] sm:$0xff]
        %v1001 = vld [vmem:[%s326 + $0xd8] sm:$0xff]
        %v1002 = vld [vmem:[%s326 + $0xe0] sm:$0xff]
        %v1003 = vld [vmem:[%s326 + $0xe8] sm:$0xff]
        %v1004 = vld [vmem:[%s326 + $0xf0] sm:$0xff]
        %v1005 = vld [vmem:[%s326 + $0xf8] sm:$0xff]
        %v1006 = vpack.c.bf16 %v976, %v974
        %v1007 = vpack.c.bf16 %v977, %v975
        %v1008 = vpack.c.bf16 %v980, %v978
        %v1009 = vpack.c.bf16 %v981, %v979
        %v1010 = vpack.c.bf16 %v984, %v982
        %v1011 = vpack.c.bf16 %v985, %v983
        %v1012 = vpack.c.bf16 %v988, %v986
        %v1013 = vpack.c.bf16 %v989, %v987
        %v1014 = vpack.c.bf16 %v992, %v990
        %v1015 = vpack.c.bf16 %v993, %v991
        %v1016 = vpack.c.bf16 %v996, %v994
        %v1017 = vpack.c.bf16 %v997, %v995
        %v1018 = vpack.c.bf16 %v1000, %v998
        %v1019 = vpack.c.bf16 %v1001, %v999
        %v1020 = vpack.c.bf16 %v1004, %v1002
        %v1021 = vpack.c.bf16 %v1005, %v1003
        %1022 = vmatprep.subr.bf16.mxu0 0
        %1023 = vmatpush1.bf16.msra.mxu0 %v407
        %1024 = vmatprep.subr.bf16.mxu0 0
        %1025 = vmatpush1.bf16.msra.mxu0 %v408
        %1026 = vmatprep.subr.bf16.mxu0 0
        %1027 = vmatpush1.bf16.msra.mxu0 %v409
        %1028 = vmatprep.subr.bf16.mxu0 0
        %1029 = vmatpush1.bf16.msra.mxu0 %v410
        %1030 = vmatprep.subr.bf16.mxu0 0
        %1031 = vmatpush1.bf16.msra.mxu0 %v411
        %1032 = vmatprep.subr.bf16.mxu0 0
        %1033 = vmatpush1.bf16.msra.mxu0 %v412
        %1034 = vmatprep.subr.bf16.mxu0 0
        %1035 = vmatpush1.bf16.msra.mxu0 %v413
        %1036 = vmatprep.subr.bf16.mxu0 0
        %1037 = vmatpush1.bf16.msra.mxu0 %v414
        %1038 = vmatprep.subr.bf16.mxu0 0
        %1039 = vmatpush1.bf16.msra.mxu0 %v415
        %1040 = vmatprep.subr.bf16.mxu0 0
        %1041 = vmatpush1.bf16.msra.mxu0 %v416
        %1042 = vmatprep.subr.bf16.mxu0 0
        %1043 = vmatpush1.bf16.msra.mxu0 %v417
        %1044 = vmatprep.subr.bf16.mxu0 0
        %1045 = vmatpush1.bf16.msra.mxu0 %v418
        %1046 = vmatprep.subr.bf16.mxu0 0
        %1047 = vmatpush1.bf16.msra.mxu0 %v419
        %1048 = vmatprep.subr.bf16.mxu0 0
        %1049 = vmatpush1.bf16.msra.mxu0 %v420
        %1050 = vmatprep.subr.bf16.mxu0 0
        %1051 = vmatpush1.bf16.msra.mxu0 %v421
        %1052 = vmatprep.subr.bf16.mxu0 0
        %1053 = vmatpush1.bf16.msra.mxu0 %v422
        %1054 = vmatprep.mubr.bf16.mxu0 %v1007
        %1055 = vmatmul.mubr.bf16.gmra.mrb[0].mxu0 %v1006
        %v1056 = vpop.f32.mrb[0].mxu0
        %v1057 = vadd.f32 0.0, %v1056
        %v1058 = vpop.f32.mrb[0].mxu0
        %v1059 = vpop.f32.mrb[0].mxu0
        %v1060 = vadd.f32 0.0, %v1059
        %v1061 = vpop.f32.mrb[0].mxu0
        %1062 = vmatprep.mubr.bf16.mxu0 %v1009
        %1063 = vmatmul.mubr.bf16.gmra.mrb[0].mxu0 %v1008
        %v1064 = vpop.f32.mrb[0].mxu0
        %v1065 = vadd.f32 0.0, %v1064
        %v1066 = vpop.f32.mrb[0].mxu0
        %v1067 = vpop.f32.mrb[0].mxu0
        %v1068 = vadd.f32 0.0, %v1067
        %v1069 = vpop.f32.mrb[0].mxu0
        %1070 = vmatprep.mubr.bf16.mxu0 %v1011
        %1071 = vmatmul.mubr.bf16.gmra.mrb[0].mxu0 %v1010
        %v1072 = vpop.f32.mrb[0].mxu0
        %v1073 = vadd.f32 0.0, %v1072
        %v1074 = vpop.f32.mrb[0].mxu0
        %v1075 = vpop.f32.mrb[0].mxu0
        %v1076 = vadd.f32 0.0, %v1075
        %v1077 = vpop.f32.mrb[0].mxu0
        %1078 = vmatprep.mubr.bf16.mxu0 %v1013
        %1079 = vmatmul.mubr.bf16.gmra.mrb[0].mxu0 %v1012
        %v1080 = vpop.f32.mrb[0].mxu0
        %v1081 = vadd.f32 0.0, %v1080
        %v1082 = vpop.f32.mrb[0].mxu0
        %v1083 = vpop.f32.mrb[0].mxu0
        %v1084 = vadd.f32 0.0, %v1083
        %v1085 = vpop.f32.mrb[0].mxu0
        %1086 = vmatprep.mubr.bf16.mxu0 %v1015
        %1087 = vmatmul.mubr.bf16.gmra.mrb[0].mxu0 %v1014
        %v1088 = vpop.f32.mrb[0].mxu0
        %v1089 = vadd.f32 0.0, %v1088
        %v1090 = vpop.f32.mrb[0].mxu0
        %v1091 = vpop.f32.mrb[0].mxu0
        %v1092 = vadd.f32 0.0, %v1091
        %v1093 = vpop.f32.mrb[0].mxu0
        %1094 = vmatprep.mubr.bf16.mxu0 %v1017
        %1095 = vmatmul.mubr.bf16.gmra.mrb[0].mxu0 %v1016
        %v1096 = vpop.f32.mrb[0].mxu0
        %v1097 = vadd.f32 0.0, %v1096
        %v1098 = vpop.f32.mrb[0].mxu0
        %v1099 = vpop.f32.mrb[0].mxu0
        %v1100 = vadd.f32 0.0, %v1099
        %v1101 = vpop.f32.mrb[0].mxu0
        %1102 = vmatprep.mubr.bf16.mxu0 %v1019
        %1103 = vmatmul.mubr.bf16.gmra.mrb[0].mxu0 %v1018
        %v1104 = vpop.f32.mrb[0].mxu0
        %v1105 = vadd.f32 0.0, %v1104
        %v1106 = vpop.f32.mrb[0].mxu0
        %v1107 = vpop.f32.mrb[0].mxu0
        %v1108 = vadd.f32 0.0, %v1107
        %v1109 = vpop.f32.mrb[0].mxu0
        %1110 = vmatprep.mubr.bf16.mxu0 %v1021
        %1111 = vmatmul.mubr.bf16.gmra.mrb[0].mxu0 %v1020
        %v1112 = vpop.f32.mrb[0].mxu0
        %v1113 = vadd.f32 0.0, %v1112
        %v1114 = vpop.f32.mrb[0].mxu0
        %v1115 = vpop.f32.mrb[0].mxu0
        %v1116 = vadd.f32 0.0, %v1115
        %v1117 = vpop.f32.mrb[0].mxu0
        %1118 = vdwg.mxu0
        %v1119 = vadd.f32 %v438, %v1057
        %v1120 = vadd.f32 %v438, %v1060
        %v1121 = vadd.f32 %v438, %v1065
        %v1122 = vadd.f32 %v438, %v1068
        %v1123 = vadd.f32 %v438, %v1073
        %v1124 = vadd.f32 %v438, %v1076
        %v1125 = vadd.f32 %v438, %v1081
        %v1126 = vadd.f32 %v438, %v1084
        %v1127 = vadd.f32 %v438, %v1089
        %v1128 = vadd.f32 %v438, %v1092
        %v1129 = vadd.f32 %v438, %v1097
        %v1130 = vadd.f32 %v438, %v1100
        %v1131 = vadd.f32 %v438, %v1105
        %v1132 = vadd.f32 %v438, %v1108
        %v1133 = vadd.f32 %v438, %v1113
        %v1134 = vadd.f32 %v438, %v1116
        %v1135 = vxor.u32 %v1119, 2147483648
        %v1136 = vxor.u32 %v1120, 2147483648
        %v1137 = vxor.u32 %v1121, 2147483648
        %v1138 = vxor.u32 %v1122, 2147483648
        %v1139 = vxor.u32 %v1123, 2147483648
        %v1140 = vxor.u32 %v1124, 2147483648
        %v1141 = vxor.u32 %v1125, 2147483648
        %v1142 = vxor.u32 %v1126, 2147483648
        %v1143 = vxor.u32 %v1127, 2147483648
        %v1144 = vxor.u32 %v1128, 2147483648
        %v1145 = vxor.u32 %v1129, 2147483648
        %v1146 = vxor.u32 %v1130, 2147483648
        %v1147 = vxor.u32 %v1131, 2147483648
        %v1148 = vxor.u32 %v1132, 2147483648
        %v1149 = vxor.u32 %v1133, 2147483648
        %v1150 = vxor.u32 %v1134, 2147483648
        %v1151 = vmul.f32 %v1135, 1.442695
        %v1152 = vpow.pop %v1151
        %v1153 = vmul.f32 %v1136, 1.442695
        %v1154 = vpow.pop %v1153
        %v1155 = vmul.f32 %v1137, 1.442695
        %v1156 = vpow.pop %v1155
        %v1157 = vmul.f32 %v1138, 1.442695
        %v1158 = vpow.pop %v1157
        %v1159 = vmul.f32 %v1139, 1.442695
        %v1160 = vpow.pop %v1159
        %v1161 = vmul.f32 %v1140, 1.442695
        %v1162 = vpow.pop %v1161
        %v1163 = vmul.f32 %v1141, 1.442695
        %v1164 = vpow.pop %v1163
        %v1165 = vmul.f32 %v1142, 1.442695
        %v1166 = vpow.pop %v1165
        %v1167 = vmul.f32 %v1143, 1.442695
        %v1168 = vpow.pop %v1167
        %v1169 = vmul.f32 %v1144, 1.442695
        %v1170 = vpow.pop %v1169
        %v1171 = vmul.f32 %v1145, 1.442695
        %v1172 = vpow.pop %v1171
        %v1173 = vmul.f32 %v1146, 1.442695
        %v1174 = vpow.pop %v1173
        %v1175 = vmul.f32 %v1147, 1.442695
        %v1176 = vpow.pop %v1175
        %v1177 = vmul.f32 %v1148, 1.442695
        %v1178 = vpow.pop %v1177
        %v1179 = vmul.f32 %v1149, 1.442695
        %v1180 = vpow.pop %v1179
        %v1181 = vmul.f32 %v1150, 1.442695
        %v1182 = vpow.pop %v1181
        %v1183 = vadd.f32 %v1152, 1.0
        %v1184 = vadd.f32 %v1154, 1.0
        %v1185 = vadd.f32 %v1156, 1.0
        %v1186 = vadd.f32 %v1158, 1.0
        %v1187 = vadd.f32 %v1160, 1.0
        %v1188 = vadd.f32 %v1162, 1.0
        %v1189 = vadd.f32 %v1164, 1.0
        %v1190 = vadd.f32 %v1166, 1.0
        %v1191 = vadd.f32 %v1168, 1.0
        %v1192 = vadd.f32 %v1170, 1.0
        %v1193 = vadd.f32 %v1172, 1.0
        %v1194 = vadd.f32 %v1174, 1.0
        %v1195 = vadd.f32 %v1176, 1.0
        %v1196 = vadd.f32 %v1178, 1.0
        %v1197 = vadd.f32 %v1180, 1.0
        %v1198 = vadd.f32 %v1182, 1.0
        %v1199 = vrcp.pop %v1183
        %v1200 = vmul.f32 1.0, %v1199
        %v1201 = vrcp.pop %v1184
        %v1202 = vmul.f32 1.0, %v1201
        %v1203 = vrcp.pop %v1185
        %v1204 = vmul.f32 1.0, %v1203
        %v1205 = vrcp.pop %v1186
        %v1206 = vmul.f32 1.0, %v1205
        %v1207 = vrcp.pop %v1187
        %v1208 = vmul.f32 1.0, %v1207
        %v1209 = vrcp.pop %v1188
        %v1210 = vmul.f32 1.0, %v1209
        %v1211 = vrcp.pop %v1189
        %v1212 = vmul.f32 1.0, %v1211
        %v1213 = vrcp.pop %v1190
        %v1214 = vmul.f32 1.0, %v1213
        %v1215 = vrcp.pop %v1191
        %v1216 = vmul.f32 1.0, %v1215
        %v1217 = vrcp.pop %v1192
        %v1218 = vmul.f32 1.0, %v1217
        %v1219 = vrcp.pop %v1193
        %v1220 = vmul.f32 1.0, %v1219
        %v1221 = vrcp.pop %v1194
        %v1222 = vmul.f32 1.0, %v1221
        %v1223 = vrcp.pop %v1195
        %v1224 = vmul.f32 1.0, %v1223
        %v1225 = vrcp.pop %v1196
        %v1226 = vmul.f32 1.0, %v1225
        %v1227 = vrcp.pop %v1197
        %v1228 = vmul.f32 1.0, %v1227
        %v1229 = vrcp.pop %v1198
        %v1230 = vmul.f32 1.0, %v1229
        %v1231 = vadd.s32 %v665, 668265263
        %v1232 = vlaneseq
        %v1233 = vshrl.u32 %v1232, 7
        %v1234 = vsub.s32 0, %v1233
        %v1235 = vrot.slane %v1231, %v1234
        %1236 = vset.pattern.permute.xlu0 0
        %1237 = vperm.xlu0 %1236, %v1235
        %v1238 = vpop.permute.xlu0 %1237
        %v1239 = vxor.u32 %v719, %v1238
        %v1240 = vxor.u32 %v720, %v1238
        %v1241 = vxor.u32 %v721, %v1238
        %v1242 = vxor.u32 %v722, %v1238
        %v1243 = vxor.u32 %v723, %v1238
        %v1244 = vxor.u32 %v724, %v1238
        %v1245 = vxor.u32 %v725, %v1238
        %v1246 = vxor.u32 %v726, %v1238
        %v1247 = vxor.u32 %v727, %v1238
        %v1248 = vxor.u32 %v728, %v1238
        %v1249 = vxor.u32 %v729, %v1238
        %v1250 = vxor.u32 %v730, %v1238
        %v1251 = vxor.u32 %v731, %v1238
        %v1252 = vxor.u32 %v732, %v1238
        %v1253 = vxor.u32 %v733, %v1238
        %v1254 = vxor.u32 %v734, %v1238
        %v1255 = vshrl.u32 %v1239, 16
        %v1256 = vshrl.u32 %v1240, 16
        %v1257 = vshrl.u32 %v1241, 16
        %v1258 = vshrl.u32 %v1242, 16
        %v1259 = vshrl.u32 %v1243, 16
        %v1260 = vshrl.u32 %v1244, 16
        %v1261 = vshrl.u32 %v1245, 16
        %v1262 = vshrl.u32 %v1246, 16
        %v1263 = vshrl.u32 %v1247, 16
        %v1264 = vshrl.u32 %v1248, 16
        %v1265 = vshrl.u32 %v1249, 16
        %v1266 = vshrl.u32 %v1250, 16
        %v1267 = vshrl.u32 %v1251, 16
        %v1268 = vshrl.u32 %v1252, 16
        %v1269 = vshrl.u32 %v1253, 16
        %v1270 = vshrl.u32 %v1254, 16
        %v1271 = vxor.u32 %v1239, %v1255
        %v1272 = vxor.u32 %v1240, %v1256
        %v1273 = vxor.u32 %v1241, %v1257
        %v1274 = vxor.u32 %v1242, %v1258
        %v1275 = vxor.u32 %v1243, %v1259
        %v1276 = vxor.u32 %v1244, %v1260
        %v1277 = vxor.u32 %v1245, %v1261
        %v1278 = vxor.u32 %v1246, %v1262
        %v1279 = vxor.u32 %v1247, %v1263
        %v1280 = vxor.u32 %v1248, %v1264
        %v1281 = vxor.u32 %v1249, %v1265
        %v1282 = vxor.u32 %v1250, %v1266
        %v1283 = vxor.u32 %v1251, %v1267
        %v1284 = vxor.u32 %v1252, %v1268
        %v1285 = vxor.u32 %v1253, %v1269
        %v1286 = vxor.u32 %v1254, %v1270
        %v1287 = vmul.u32 %v1271, 2146121005
        %v1288 = vmul.u32 %v1272, 2146121005
        %v1289 = vmul.u32 %v1273, 2146121005
        %v1290 = vmul.u32 %v1274, 2146121005
        %v1291 = vmul.u32 %v1275, 2146121005
        %v1292 = vmul.u32 %v1276, 2146121005
        %v1293 = vmul.u32 %v1277, 2146121005
        %v1294 = vmul.u32 %v1278, 2146121005
        %v1295 = vmul.u32 %v1279, 2146121005
        %v1296 = vmul.u32 %v1280, 2146121005
        %v1297 = vmul.u32 %v1281, 2146121005
        %v1298 = vmul.u32 %v1282, 2146121005
        %v1299 = vmul.u32 %v1283, 2146121005
        %v1300 = vmul.u32 %v1284, 2146121005
        %v1301 = vmul.u32 %v1285, 2146121005
        %v1302 = vmul.u32 %v1286, 2146121005
        %v1303 = vshrl.u32 %v1287, 15
        %v1304 = vshrl.u32 %v1288, 15
        %v1305 = vshrl.u32 %v1289, 15
        %v1306 = vshrl.u32 %v1290, 15
        %v1307 = vshrl.u32 %v1291, 15
        %v1308 = vshrl.u32 %v1292, 15
        %v1309 = vshrl.u32 %v1293, 15
        %v1310 = vshrl.u32 %v1294, 15
        %v1311 = vshrl.u32 %v1295, 15
        %v1312 = vshrl.u32 %v1296, 15
        %v1313 = vshrl.u32 %v1297, 15
        %v1314 = vshrl.u32 %v1298, 15
        %v1315 = vshrl.u32 %v1299, 15
        %v1316 = vshrl.u32 %v1300, 15
        %v1317 = vshrl.u32 %v1301, 15
        %v1318 = vshrl.u32 %v1302, 15
        %v1319 = vxor.u32 %v1287, %v1303
        %v1320 = vxor.u32 %v1288, %v1304
        %v1321 = vxor.u32 %v1289, %v1305
        %v1322 = vxor.u32 %v1290, %v1306
        %v1323 = vxor.u32 %v1291, %v1307
        %v1324 = vxor.u32 %v1292, %v1308
        %v1325 = vxor.u32 %v1293, %v1309
        %v1326 = vxor.u32 %v1294, %v1310
        %v1327 = vxor.u32 %v1295, %v1311
        %v1328 = vxor.u32 %v1296, %v1312
        %v1329 = vxor.u32 %v1297, %v1313
        %v1330 = vxor.u32 %v1298, %v1314
        %v1331 = vxor.u32 %v1299, %v1315
        %v1332 = vxor.u32 %v1300, %v1316
        %v1333 = vxor.u32 %v1301, %v1317
        %v1334 = vxor.u32 %v1302, %v1318
        %v1335 = vmul.u32 %v1319, 2221713035
        %v1336 = vmul.u32 %v1320, 2221713035
        %v1337 = vmul.u32 %v1321, 2221713035
        %v1338 = vmul.u32 %v1322, 2221713035
        %v1339 = vmul.u32 %v1323, 2221713035
        %v1340 = vmul.u32 %v1324, 2221713035
        %v1341 = vmul.u32 %v1325, 2221713035
        %v1342 = vmul.u32 %v1326, 2221713035
        %v1343 = vmul.u32 %v1327, 2221713035
        %v1344 = vmul.u32 %v1328, 2221713035
        %v1345 = vmul.u32 %v1329, 2221713035
        %v1346 = vmul.u32 %v1330, 2221713035
        %v1347 = vmul.u32 %v1331, 2221713035
        %v1348 = vmul.u32 %v1332, 2221713035
        %v1349 = vmul.u32 %v1333, 2221713035
        %v1350 = vmul.u32 %v1334, 2221713035
        %v1351 = vshrl.u32 %v1335, 16
        %v1352 = vshrl.u32 %v1336, 16
        %v1353 = vshrl.u32 %v1337, 16
        %v1354 = vshrl.u32 %v1338, 16
        %v1355 = vshrl.u32 %v1339, 16
        %v1356 = vshrl.u32 %v1340, 16
        %v1357 = vshrl.u32 %v1341, 16
        %v1358 = vshrl.u32 %v1342, 16
        %v1359 = vshrl.u32 %v1343, 16
        %v1360 = vshrl.u32 %v1344, 16
        %v1361 = vshrl.u32 %v1345, 16
        %v1362 = vshrl.u32 %v1346, 16
        %v1363 = vshrl.u32 %v1347, 16
        %v1364 = vshrl.u32 %v1348, 16
        %v1365 = vshrl.u32 %v1349, 16
        %v1366 = vshrl.u32 %v1350, 16
        %v1367 = vxor.u32 %v1335, %v1351
        %v1368 = vxor.u32 %v1336, %v1352
        %v1369 = vxor.u32 %v1337, %v1353
        %v1370 = vxor.u32 %v1338, %v1354
        %v1371 = vxor.u32 %v1339, %v1355
        %v1372 = vxor.u32 %v1340, %v1356
        %v1373 = vxor.u32 %v1341, %v1357
        %v1374 = vxor.u32 %v1342, %v1358
        %v1375 = vxor.u32 %v1343, %v1359
        %v1376 = vxor.u32 %v1344, %v1360
        %v1377 = vxor.u32 %v1345, %v1361
        %v1378 = vxor.u32 %v1346, %v1362
        %v1379 = vxor.u32 %v1347, %v1363
        %v1380 = vxor.u32 %v1348, %v1364
        %v1381 = vxor.u32 %v1349, %v1365
        %v1382 = vxor.u32 %v1350, %v1366
        %v1383 = vshrl.u32 %v1367, 8
        %v1384 = vshrl.u32 %v1368, 8
        %v1385 = vshrl.u32 %v1369, 8
        %v1386 = vshrl.u32 %v1370, 8
        %v1387 = vshrl.u32 %v1371, 8
        %v1388 = vshrl.u32 %v1372, 8
        %v1389 = vshrl.u32 %v1373, 8
        %v1390 = vshrl.u32 %v1374, 8
        %v1391 = vshrl.u32 %v1375, 8
        %v1392 = vshrl.u32 %v1376, 8
        %v1393 = vshrl.u32 %v1377, 8
        %v1394 = vshrl.u32 %v1378, 8
        %v1395 = vshrl.u32 %v1379, 8
        %v1396 = vshrl.u32 %v1380, 8
        %v1397 = vshrl.u32 %v1381, 8
        %v1398 = vshrl.u32 %v1382, 8
        %v1399 = vmul.f32 %v1200, 16777216.0
        %v1400 = vmul.f32 %v1202, 16777216.0
        %v1401 = vmul.f32 %v1204, 16777216.0
        %v1402 = vmul.f32 %v1206, 16777216.0
        %v1403 = vmul.f32 %v1208, 16777216.0
        %v1404 = vmul.f32 %v1210, 16777216.0
        %v1405 = vmul.f32 %v1212, 16777216.0
        %v1406 = vmul.f32 %v1214, 16777216.0
        %v1407 = vmul.f32 %v1216, 16777216.0
        %v1408 = vmul.f32 %v1218, 16777216.0
        %v1409 = vmul.f32 %v1220, 16777216.0
        %v1410 = vmul.f32 %v1222, 16777216.0
        %v1411 = vmul.f32 %v1224, 16777216.0
        %v1412 = vmul.f32 %v1226, 16777216.0
        %v1413 = vmul.f32 %v1228, 16777216.0
        %v1414 = vmul.f32 %v1230, 16777216.0
        %v1415 = vcvt.f32.s32.to.zero.pseudo %v1399
        %v1416 = vcvt.f32.s32.to.zero.pseudo %v1400
        %v1417 = vcvt.f32.s32.to.zero.pseudo %v1401
        %v1418 = vcvt.f32.s32.to.zero.pseudo %v1402
        %v1419 = vcvt.f32.s32.to.zero.pseudo %v1403
        %v1420 = vcvt.f32.s32.to.zero.pseudo %v1404
        %v1421 = vcvt.f32.s32.to.zero.pseudo %v1405
        %v1422 = vcvt.f32.s32.to.zero.pseudo %v1406
        %v1423 = vcvt.f32.s32.to.zero.pseudo %v1407
        %v1424 = vcvt.f32.s32.to.zero.pseudo %v1408
        %v1425 = vcvt.f32.s32.to.zero.pseudo %v1409
        %v1426 = vcvt.f32.s32.to.zero.pseudo %v1410
        %v1427 = vcvt.f32.s32.to.zero.pseudo %v1411
        %v1428 = vcvt.f32.s32.to.zero.pseudo %v1412
        %v1429 = vcvt.f32.s32.to.zero.pseudo %v1413
        %v1430 = vcvt.f32.s32.to.zero.pseudo %v1414
        %vm1431 = vcmp.lt.s32.totalorder %v1383, %v1415
        %vm1432 = vcmp.lt.s32.totalorder %v1384, %v1416
        %vm1433 = vcmp.lt.s32.totalorder %v1385, %v1417
        %vm1434 = vcmp.lt.s32.totalorder %v1386, %v1418
        %vm1435 = vcmp.lt.s32.totalorder %v1387, %v1419
        %vm1436 = vcmp.lt.s32.totalorder %v1388, %v1420
        %vm1437 = vcmp.lt.s32.totalorder %v1389, %v1421
        %vm1438 = vcmp.lt.s32.totalorder %v1390, %v1422
        %vm1439 = vcmp.lt.s32.totalorder %v1391, %v1423
        %vm1440 = vcmp.lt.s32.totalorder %v1392, %v1424
        %vm1441 = vcmp.lt.s32.totalorder %v1393, %v1425
        %vm1442 = vcmp.lt.s32.totalorder %v1394, %v1426
        %vm1443 = vcmp.lt.s32.totalorder %v1395, %v1427
        %vm1444 = vcmp.lt.s32.totalorder %v1396, %v1428
        %vm1445 = vcmp.lt.s32.totalorder %v1397, %v1429
        %vm1446 = vcmp.lt.s32.totalorder %v1398, %v1430
        %v1447 = vsel %vm1431, 1.0, 0.0
        %v1448 = vsel %vm1432, 1.0, 0.0
        %v1449 = vsel %vm1433, 1.0, 0.0
        %v1450 = vsel %vm1434, 1.0, 0.0
        %v1451 = vsel %vm1435, 1.0, 0.0
        %v1452 = vsel %vm1436, 1.0, 0.0
        %v1453 = vsel %vm1437, 1.0, 0.0
        %v1454 = vsel %vm1438, 1.0, 0.0
        %v1455 = vsel %vm1439, 1.0, 0.0
        %v1456 = vsel %vm1440, 1.0, 0.0
        %v1457 = vsel %vm1441, 1.0, 0.0
        %v1458 = vsel %vm1442, 1.0, 0.0
        %v1459 = vsel %vm1443, 1.0, 0.0
        %v1460 = vsel %vm1444, 1.0, 0.0
        %v1461 = vsel %vm1445, 1.0, 0.0
        %v1462 = vsel %vm1446, 1.0, 0.0
        %v1463 = vpack.c.bf16 %v1448, %v1447
        %v1464 = vpack.c.bf16 %v1450, %v1449
        %v1465 = vpack.c.bf16 %v1452, %v1451
        %v1466 = vpack.c.bf16 %v1454, %v1453
        %v1467 = vpack.c.bf16 %v1456, %v1455
        %v1468 = vpack.c.bf16 %v1458, %v1457
        %v1469 = vpack.c.bf16 %v1460, %v1459
        %v1470 = vpack.c.bf16 %v1462, %v1461
        %1471 = vmatprep.subr.bf16.mxu0 0
        %1472 = vmatpush1.bf16.xpose.msra.mxu0 %v407
        %1473 = vmatprep.subr.bf16.mxu0 0
        %1474 = vmatpush1.bf16.xpose.msra.mxu0 %v408
        %1475 = vmatprep.subr.bf16.mxu0 0
        %1476 = vmatpush1.bf16.xpose.msra.mxu0 %v409
        %1477 = vmatprep.subr.bf16.mxu0 0
        %1478 = vmatpush1.bf16.xpose.msra.mxu0 %v410
        %1479 = vmatprep.subr.bf16.mxu0 0
        %1480 = vmatpush1.bf16.xpose.msra.mxu0 %v411
        %1481 = vmatprep.subr.bf16.mxu0 0
        %1482 = vmatpush1.bf16.xpose.msra.mxu0 %v412
        %1483 = vmatprep.subr.bf16.mxu0 0
        %1484 = vmatpush1.bf16.xpose.msra.mxu0 %v413
        %1485 = vmatprep.subr.bf16.mxu0 0
        %1486 = vmatpush1.bf16.xpose.msra.mxu0 %v414
        %1487 = vmatprep.subr.bf16.mxu0 0
        %1488 = vmatpush1.bf16.xpose.msra.mxu0 %v415
        %1489 = vmatprep.subr.bf16.mxu0 0
        %1490 = vmatpush1.bf16.xpose.msra.mxu0 %v416
        %1491 = vmatprep.subr.bf16.mxu0 0
        %1492 = vmatpush1.bf16.xpose.msra.mxu0 %v417
        %1493 = vmatprep.subr.bf16.mxu0 0
        %1494 = vmatpush1.bf16.xpose.msra.mxu0 %v418
        %1495 = vmatprep.subr.bf16.mxu0 0
        %1496 = vmatpush1.bf16.xpose.msra.mxu0 %v419
        %1497 = vmatprep.subr.bf16.mxu0 0
        %1498 = vmatpush1.bf16.xpose.msra.mxu0 %v420
        %1499 = vmatprep.subr.bf16.mxu0 0
        %1500 = vmatpush1.bf16.xpose.msra.mxu0 %v421
        %1501 = vmatprep.subr.bf16.mxu0 0
        %1502 = vmatpush1.bf16.xpose.msra.mxu0 %v422
        %1503 = vmatprep.mubr.bf16.mxu0 0
        %1504 = vmatmul.mubr.bf16.gmra.mrb[0].mxu0 %v1463
        %v1505 = vpop.f32.mrb[0].mxu0
        %v1506 = vadd.f32 0.0, %v1505
        %v1507 = vpop.f32.mrb[0].mxu0
        %v1508 = vadd.f32 0.0, %v1507
        %v1509 = vpop.f32.mrb[0].mxu0
        %v1510 = vadd.f32 0.0, %v1509
        %v1511 = vpop.f32.mrb[0].mxu0
        %v1512 = vadd.f32 0.0, %v1511
        %1513 = vmatprep.mubr.bf16.mxu0 0
        %1514 = vmatmul.mubr.bf16.gmra.mrb[0].mxu0 %v1464
        %v1515 = vpop.f32.mrb[0].mxu0
        %v1516 = vadd.f32 0.0, %v1515
        %v1517 = vpop.f32.mrb[0].mxu0
        %v1518 = vadd.f32 0.0, %v1517
        %v1519 = vpop.f32.mrb[0].mxu0
        %v1520 = vadd.f32 0.0, %v1519
        %v1521 = vpop.f32.mrb[0].mxu0
        %v1522 = vadd.f32 0.0, %v1521
        %1523 = vmatprep.mubr.bf16.mxu0 0
        %1524 = vmatmul.mubr.bf16.gmra.mrb[0].mxu0 %v1465
        %v1525 = vpop.f32.mrb[0].mxu0
        %v1526 = vadd.f32 0.0, %v1525
        %v1527 = vpop.f32.mrb[0].mxu0
        %v1528 = vadd.f32 0.0, %v1527
        %v1529 = vpop.f32.mrb[0].mxu0
        %v1530 = vadd.f32 0.0, %v1529
        %v1531 = vpop.f32.mrb[0].mxu0
        %v1532 = vadd.f32 0.0, %v1531
        %1533 = vmatprep.mubr.bf16.mxu0 0
        %1534 = vmatmul.mubr.bf16.gmra.mrb[0].mxu0 %v1466
        %v1535 = vpop.f32.mrb[0].mxu0
        %v1536 = vadd.f32 0.0, %v1535
        %v1537 = vpop.f32.mrb[0].mxu0
        %v1538 = vadd.f32 0.0, %v1537
        %v1539 = vpop.f32.mrb[0].mxu0
        %v1540 = vadd.f32 0.0, %v1539
        %v1541 = vpop.f32.mrb[0].mxu0
        %v1542 = vadd.f32 0.0, %v1541
        %1543 = vmatprep.mubr.bf16.mxu0 0
        %1544 = vmatmul.mubr.bf16.gmra.mrb[0].mxu0 %v1467
        %v1545 = vpop.f32.mrb[0].mxu0
        %v1546 = vadd.f32 0.0, %v1545
        %v1547 = vpop.f32.mrb[0].mxu0
        %v1548 = vadd.f32 0.0, %v1547
        %v1549 = vpop.f32.mrb[0].mxu0
        %v1550 = vadd.f32 0.0, %v1549
        %v1551 = vpop.f32.mrb[0].mxu0
        %v1552 = vadd.f32 0.0, %v1551
        %1553 = vmatprep.mubr.bf16.mxu0 0
        %1554 = vmatmul.mubr.bf16.gmra.mrb[0].mxu0 %v1468
        %v1555 = vpop.f32.mrb[0].mxu0
        %v1556 = vadd.f32 0.0, %v1555
        %v1557 = vpop.f32.mrb[0].mxu0
        %v1558 = vadd.f32 0.0, %v1557
        %v1559 = vpop.f32.mrb[0].mxu0
        %v1560 = vadd.f32 0.0, %v1559
        %v1561 = vpop.f32.mrb[0].mxu0
        %v1562 = vadd.f32 0.0, %v1561
        %1563 = vmatprep.mubr.bf16.mxu0 0
        %1564 = vmatmul.mubr.bf16.gmra.mrb[0].mxu0 %v1469
        %v1565 = vpop.f32.mrb[0].mxu0
        %v1566 = vadd.f32 0.0, %v1565
        %v1567 = vpop.f32.mrb[0].mxu0
        %v1568 = vadd.f32 0.0, %v1567
        %v1569 = vpop.f32.mrb[0].mxu0
        %v1570 = vadd.f32 0.0, %v1569
        %v1571 = vpop.f32.mrb[0].mxu0
        %v1572 = vadd.f32 0.0, %v1571
        %1573 = vmatprep.mubr.bf16.mxu0 0
        %1574 = vmatmul.mubr.bf16.gmra.mrb[0].mxu0 %v1470
        %v1575 = vpop.f32.mrb[0].mxu0
        %v1576 = vadd.f32 0.0, %v1575
        %v1577 = vpop.f32.mrb[0].mxu0
        %v1578 = vadd.f32 0.0, %v1577
        %v1579 = vpop.f32.mrb[0].mxu0
        %v1580 = vadd.f32 0.0, %v1579
        %v1581 = vpop.f32.mrb[0].mxu0
        %v1582 = vadd.f32 0.0, %v1581
        %1583 = vdwg.mxu0
        %v1584 = vadd.f32 %v427, %v1506
        %v1585 = vadd.f32 %v431, %v1508
        %v1586 = vadd.f32 %v427, %v1510
        %v1587 = vadd.f32 %v431, %v1512
        %v1588 = vadd.f32 %v427, %v1516
        %v1589 = vadd.f32 %v431, %v1518
        %v1590 = vadd.f32 %v427, %v1520
        %v1591 = vadd.f32 %v431, %v1522
        %v1592 = vadd.f32 %v427, %v1526
        %v1593 = vadd.f32 %v431, %v1528
        %v1594 = vadd.f32 %v427, %v1530
        %v1595 = vadd.f32 %v431, %v1532
        %v1596 = vadd.f32 %v427, %v1536
        %v1597 = vadd.f32 %v431, %v1538
        %v1598 = vadd.f32 %v427, %v1540
        %v1599 = vadd.f32 %v431, %v1542
        %v1600 = vadd.f32 %v427, %v1546
        %v1601 = vadd.f32 %v431, %v1548
        %v1602 = vadd.f32 %v427, %v1550
        %v1603 = vadd.f32 %v431, %v1552
        %v1604 = vadd.f32 %v427, %v1556
        %v1605 = vadd.f32 %v431, %v1558
        %v1606 = vadd.f32 %v427, %v1560
        %v1607 = vadd.f32 %v431, %v1562
        %v1608 = vadd.f32 %v427, %v1566
        %v1609 = vadd.f32 %v431, %v1568
        %v1610 = vadd.f32 %v427, %v1570
        %v1611 = vadd.f32 %v431, %v1572
        %v1612 = vadd.f32 %v427, %v1576
        %v1613 = vadd.f32 %v431, %v1578
        %v1614 = vadd.f32 %v427, %v1580
        %v1615 = vadd.f32 %v431, %v1582
        %v1616 = vxor.u32 %v1584, 2147483648
        %v1617 = vxor.u32 %v1585, 2147483648
        %v1618 = vxor.u32 %v1586, 2147483648
        %v1619 = vxor.u32 %v1587, 2147483648
        %v1620 = vxor.u32 %v1588, 2147483648
        %v1621 = vxor.u32 %v1589, 2147483648
        %v1622 = vxor.u32 %v1590, 2147483648
        %v1623 = vxor.u32 %v1591, 2147483648
        %v1624 = vxor.u32 %v1592, 2147483648
        %v1625 = vxor.u32 %v1593, 2147483648
        %v1626 = vxor.u32 %v1594, 2147483648
        %v1627 = vxor.u32 %v1595, 2147483648
        %v1628 = vxor.u32 %v1596, 2147483648
        %v1629 = vxor.u32 %v1597, 2147483648
        %v1630 = vxor.u32 %v1598, 2147483648
        %v1631 = vxor.u32 %v1599, 2147483648
        %v1632 = vxor.u32 %v1600, 2147483648
        %v1633 = vxor.u32 %v1601, 2147483648
        %v1634 = vxor.u32 %v1602, 2147483648
        %v1635 = vxor.u32 %v1603, 2147483648
        %v1636 = vxor.u32 %v1604, 2147483648
        %v1637 = vxor.u32 %v1605, 2147483648
        %v1638 = vxor.u32 %v1606, 2147483648
        %v1639 = vxor.u32 %v1607, 2147483648
        %v1640 = vxor.u32 %v1608, 2147483648
        %v1641 = vxor.u32 %v1609, 2147483648
        %v1642 = vxor.u32 %v1610, 2147483648
        %v1643 = vxor.u32 %v1611, 2147483648
        %v1644 = vxor.u32 %v1612, 2147483648
        %v1645 = vxor.u32 %v1613, 2147483648
        %v1646 = vxor.u32 %v1614, 2147483648
        %v1647 = vxor.u32 %v1615, 2147483648
        %v1648 = vmul.f32 %v1616, 1.442695
        %v1649 = vpow.pop %v1648
        %v1650 = vmul.f32 %v1617, 1.442695
        %v1651 = vpow.pop %v1650
        %v1652 = vmul.f32 %v1618, 1.442695
        %v1653 = vpow.pop %v1652
        %v1654 = vmul.f32 %v1619, 1.442695
        %v1655 = vpow.pop %v1654
        %v1656 = vmul.f32 %v1620, 1.442695
        %v1657 = vpow.pop %v1656
        %v1658 = vmul.f32 %v1621, 1.442695
        %v1659 = vpow.pop %v1658
        %v1660 = vmul.f32 %v1622, 1.442695
        %v1661 = vpow.pop %v1660
        %v1662 = vmul.f32 %v1623, 1.442695
        %v1663 = vpow.pop %v1662
        %v1664 = vmul.f32 %v1624, 1.442695
        %v1665 = vpow.pop %v1664
        %v1666 = vmul.f32 %v1625, 1.442695
        %v1667 = vpow.pop %v1666
        %v1668 = vmul.f32 %v1626, 1.442695
        %v1669 = vpow.pop %v1668
        %v1670 = vmul.f32 %v1627, 1.442695
        %v1671 = vpow.pop %v1670
        %v1672 = vmul.f32 %v1628, 1.442695
        %v1673 = vpow.pop %v1672
        %v1674 = vmul.f32 %v1629, 1.442695
        %v1675 = vpow.pop %v1674
        %v1676 = vmul.f32 %v1630, 1.442695
        %v1677 = vpow.pop %v1676
        %v1678 = vmul.f32 %v1631, 1.442695
        %v1679 = vpow.pop %v1678
        %v1680 = vmul.f32 %v1632, 1.442695
        %v1681 = vpow.pop %v1680
        %v1682 = vmul.f32 %v1633, 1.442695
        %v1683 = vpow.pop %v1682
        %v1684 = vmul.f32 %v1634, 1.442695
        %v1685 = vpow.pop %v1684
        %v1686 = vmul.f32 %v1635, 1.442695
        %v1687 = vpow.pop %v1686
        %v1688 = vmul.f32 %v1636, 1.442695
        %v1689 = vpow.pop %v1688
        %v1690 = vmul.f32 %v1637, 1.442695
        %v1691 = vpow.pop %v1690
        %v1692 = vmul.f32 %v1638, 1.442695
        %v1693 = vpow.pop %v1692
        %v1694 = vmul.f32 %v1639, 1.442695
        %v1695 = vpow.pop %v1694
        %v1696 = vmul.f32 %v1640, 1.442695
        %v1697 = vpow.pop %v1696
        %v1698 = vmul.f32 %v1641, 1.442695
        %v1699 = vpow.pop %v1698
        %v1700 = vmul.f32 %v1642, 1.442695
        %v1701 = vpow.pop %v1700
        %v1702 = vmul.f32 %v1643, 1.442695
        %v1703 = vpow.pop %v1702
        %v1704 = vmul.f32 %v1644, 1.442695
        %v1705 = vpow.pop %v1704
        %v1706 = vmul.f32 %v1645, 1.442695
        %v1707 = vpow.pop %v1706
        %v1708 = vmul.f32 %v1646, 1.442695
        %v1709 = vpow.pop %v1708
        %v1710 = vmul.f32 %v1647, 1.442695
        %v1711 = vpow.pop %v1710
        %v1712 = vadd.f32 %v1649, 1.0
        %v1713 = vadd.f32 %v1651, 1.0
        %v1714 = vadd.f32 %v1653, 1.0
        %v1715 = vadd.f32 %v1655, 1.0
        %v1716 = vadd.f32 %v1657, 1.0
        %v1717 = vadd.f32 %v1659, 1.0
        %v1718 = vadd.f32 %v1661, 1.0
        %v1719 = vadd.f32 %v1663, 1.0
        %v1720 = vadd.f32 %v1665, 1.0
        %v1721 = vadd.f32 %v1667, 1.0
        %v1722 = vadd.f32 %v1669, 1.0
        %v1723 = vadd.f32 %v1671, 1.0
        %v1724 = vadd.f32 %v1673, 1.0
        %v1725 = vadd.f32 %v1675, 1.0
        %v1726 = vadd.f32 %v1677, 1.0
        %v1727 = vadd.f32 %v1679, 1.0
        %v1728 = vadd.f32 %v1681, 1.0
        %v1729 = vadd.f32 %v1683, 1.0
        %v1730 = vadd.f32 %v1685, 1.0
        %v1731 = vadd.f32 %v1687, 1.0
        %v1732 = vadd.f32 %v1689, 1.0
        %v1733 = vadd.f32 %v1691, 1.0
        %v1734 = vadd.f32 %v1693, 1.0
        %v1735 = vadd.f32 %v1695, 1.0
        %v1736 = vadd.f32 %v1697, 1.0
        %v1737 = vadd.f32 %v1699, 1.0
        %v1738 = vadd.f32 %v1701, 1.0
        %v1739 = vadd.f32 %v1703, 1.0
        %v1740 = vadd.f32 %v1705, 1.0
        %v1741 = vadd.f32 %v1707, 1.0
        %v1742 = vadd.f32 %v1709, 1.0
        %v1743 = vadd.f32 %v1711, 1.0
        %v1744 = vrcp.pop %v1712
        %v1745 = vmul.f32 1.0, %v1744
        %v1746 = vrcp.pop %v1713
        %v1747 = vmul.f32 1.0, %v1746
        %v1748 = vrcp.pop %v1714
        %v1749 = vmul.f32 1.0, %v1748
        %v1750 = vrcp.pop %v1715
        %v1751 = vmul.f32 1.0, %v1750
        %v1752 = vrcp.pop %v1716
        %v1753 = vmul.f32 1.0, %v1752
        %v1754 = vrcp.pop %v1717
        %v1755 = vmul.f32 1.0, %v1754
        %v1756 = vrcp.pop %v1718
        %v1757 = vmul.f32 1.0, %v1756
        %v1758 = vrcp.pop %v1719
        %v1759 = vmul.f32 1.0, %v1758
        %v1760 = vrcp.pop %v1720
        %v1761 = vmul.f32 1.0, %v1760
        %v1762 = vrcp.pop %v1721
        %v1763 = vmul.f32 1.0, %v1762
        %v1764 = vrcp.pop %v1722
        %v1765 = vmul.f32 1.0, %v1764
        %v1766 = vrcp.pop %v1723
        %v1767 = vmul.f32 1.0, %v1766
        %v1768 = vrcp.pop %v1724
        %v1769 = vmul.f32 1.0, %v1768
        %v1770 = vrcp.pop %v1725
        %v1771 = vmul.f32 1.0, %v1770
        %v1772 = vrcp.pop %v1726
        %v1773 = vmul.f32 1.0, %v1772
        %v1774 = vrcp.pop %v1727
        %v1775 = vmul.f32 1.0, %v1774
        %v1776 = vrcp.pop %v1728
        %v1777 = vmul.f32 1.0, %v1776
        %v1778 = vrcp.pop %v1729
        %v1779 = vmul.f32 1.0, %v1778
        %v1780 = vrcp.pop %v1730
        %v1781 = vmul.f32 1.0, %v1780
        %v1782 = vrcp.pop %v1731
        %v1783 = vmul.f32 1.0, %v1782
        %v1784 = vrcp.pop %v1732
        %v1785 = vmul.f32 1.0, %v1784
        %v1786 = vrcp.pop %v1733
        %v1787 = vmul.f32 1.0, %v1786
        %v1788 = vrcp.pop %v1734
        %v1789 = vmul.f32 1.0, %v1788
        %v1790 = vrcp.pop %v1735
        %v1791 = vmul.f32 1.0, %v1790
        %v1792 = vrcp.pop %v1736
        %v1793 = vmul.f32 1.0, %v1792
        %v1794 = vrcp.pop %v1737
        %v1795 = vmul.f32 1.0, %v1794
        %v1796 = vrcp.pop %v1738
        %v1797 = vmul.f32 1.0, %v1796
        %v1798 = vrcp.pop %v1739
        %v1799 = vmul.f32 1.0, %v1798
        %v1800 = vrcp.pop %v1740
        %v1801 = vmul.f32 1.0, %v1800
        %v1802 = vrcp.pop %v1741
        %v1803 = vmul.f32 1.0, %v1802
        %v1804 = vrcp.pop %v1742
        %v1805 = vmul.f32 1.0, %v1804
        %v1806 = vrcp.pop %v1743
        %v1807 = vmul.f32 1.0, %v1806
        %v1808 = vadd.s32 %v665, 1336530526
        %v1809 = vadd.s32 %v701, 128
        %v1810 = vmul.u32 %v1809, 3266489909
        %v1811 = vadd.s32 %v702, %v1810
        %v1812 = vadd.s32 %v703, %v1810
        %v1813 = vadd.s32 %v704, %v1810
        %v1814 = vadd.s32 %v705, %v1810
        %v1815 = vadd.s32 %v706, %v1810
        %v1816 = vadd.s32 %v707, %v1810
        %v1817 = vadd.s32 %v708, %v1810
        %v1818 = vadd.s32 %v709, %v1810
        %v1819 = vadd.s32 %v710, %v1810
        %v1820 = vadd.s32 %v711, %v1810
        %v1821 = vadd.s32 %v712, %v1810
        %v1822 = vadd.s32 %v713, %v1810
        %v1823 = vadd.s32 %v714, %v1810
        %v1824 = vadd.s32 %v715, %v1810
        %v1825 = vadd.s32 %v716, %v1810
        %v1826 = vadd.s32 %v717, %v1810
        %v1827 = vlaneseq
        %v1828 = vshrl.u32 %v1827, 7
        %v1829 = vsub.s32 0, %v1828
        %v1830 = vrot.slane %v1808, %v1829
        %1831 = vset.pattern.permute.xlu0 0
        %1832 = vperm.xlu0 %1831, %v1830
        %v1833 = vpop.permute.xlu0 %1832
        %v1834 = vxor.u32 %v719, %v1833
        %v1835 = vxor.u32 %v1811, %v1833
        %v1836 = vxor.u32 %v720, %v1833
        %v1837 = vxor.u32 %v1812, %v1833
        %v1838 = vxor.u32 %v721, %v1833
        %v1839 = vxor.u32 %v1813, %v1833
        %v1840 = vxor.u32 %v722, %v1833
        %v1841 = vxor.u32 %v1814, %v1833
        %v1842 = vxor.u32 %v723, %v1833
        %v1843 = vxor.u32 %v1815, %v1833
        %v1844 = vxor.u32 %v724, %v1833
        %v1845 = vxor.u32 %v1816, %v1833
        %v1846 = vxor.u32 %v725, %v1833
        %v1847 = vxor.u32 %v1817, %v1833
        %v1848 = vxor.u32 %v726, %v1833
        %v1849 = vxor.u32 %v1818, %v1833
        %v1850 = vxor.u32 %v727, %v1833
        %v1851 = vxor.u32 %v1819, %v1833
        %v1852 = vxor.u32 %v728, %v1833
        %v1853 = vxor.u32 %v1820, %v1833
        %v1854 = vxor.u32 %v729, %v1833
        %v1855 = vxor.u32 %v1821, %v1833
        %v1856 = vxor.u32 %v730, %v1833
        %v1857 = vxor.u32 %v1822, %v1833
        %v1858 = vxor.u32 %v731, %v1833
        %v1859 = vxor.u32 %v1823, %v1833
        %v1860 = vxor.u32 %v732, %v1833
        %v1861 = vxor.u32 %v1824, %v1833
        %v1862 = vxor.u32 %v733, %v1833
        %v1863 = vxor.u32 %v1825, %v1833
        %v1864 = vxor.u32 %v734, %v1833
        %v1865 = vxor.u32 %v1826, %v1833
        %v1866 = vshrl.u32 %v1834, 16
        %v1867 = vshrl.u32 %v1835, 16
        %v1868 = vshrl.u32 %v1836, 16
        %v1869 = vshrl.u32 %v1837, 16
        %v1870 = vshrl.u32 %v1838, 16
        %v1871 = vshrl.u32 %v1839, 16
        %v1872 = vshrl.u32 %v1840, 16
        %v1873 = vshrl.u32 %v1841, 16
        %v1874 = vshrl.u32 %v1842, 16
        %v1875 = vshrl.u32 %v1843, 16
        %v1876 = vshrl.u32 %v1844, 16
        %v1877 = vshrl.u32 %v1845, 16
        %v1878 = vshrl.u32 %v1846, 16
        %v1879 = vshrl.u32 %v1847, 16
        %v1880 = vshrl.u32 %v1848, 16
        %v1881 = vshrl.u32 %v1849, 16
        %v1882 = vshrl.u32 %v1850, 16
        %v1883 = vshrl.u32 %v1851, 16
        %v1884 = vshrl.u32 %v1852, 16
        %v1885 = vshrl.u32 %v1853, 16
        %v1886 = vshrl.u32 %v1854, 16
        %v1887 = vshrl.u32 %v1855, 16
        %v1888 = vshrl.u32 %v1856, 16
        %v1889 = vshrl.u32 %v1857, 16
        %v1890 = vshrl.u32 %v1858, 16
        %v1891 = vshrl.u32 %v1859, 16
        %v1892 = vshrl.u32 %v1860, 16
        %v1893 = vshrl.u32 %v1861, 16
        %v1894 = vshrl.u32 %v1862, 16
        %v1895 = vshrl.u32 %v1863, 16
        %v1896 = vshrl.u32 %v1864, 16
        %v1897 = vshrl.u32 %v1865, 16
        %v1898 = vxor.u32 %v1834, %v1866
        %v1899 = vxor.u32 %v1835, %v1867
        %v1900 = vxor.u32 %v1836, %v1868
        %v1901 = vxor.u32 %v1837, %v1869
        %v1902 = vxor.u32 %v1838, %v1870
        %v1903 = vxor.u32 %v1839, %v1871
        %v1904 = vxor.u32 %v1840, %v1872
        %v1905 = vxor.u32 %v1841, %v1873
        %v1906 = vxor.u32 %v1842, %v1874
        %v1907 = vxor.u32 %v1843, %v1875
        %v1908 = vxor.u32 %v1844, %v1876
        %v1909 = vxor.u32 %v1845, %v1877
        %v1910 = vxor.u32 %v1846, %v1878
        %v1911 = vxor.u32 %v1847, %v1879
        %v1912 = vxor.u32 %v1848, %v1880
        %v1913 = vxor.u32 %v1849, %v1881
        %v1914 = vxor.u32 %v1850, %v1882
        %v1915 = vxor.u32 %v1851, %v1883
        %v1916 = vxor.u32 %v1852, %v1884
        %v1917 = vxor.u32 %v1853, %v1885
        %v1918 = vxor.u32 %v1854, %v1886
        %v1919 = vxor.u32 %v1855, %v1887
        %v1920 = vxor.u32 %v1856, %v1888
        %v1921 = vxor.u32 %v1857, %v1889
        %v1922 = vxor.u32 %v1858, %v1890
        %v1923 = vxor.u32 %v1859, %v1891
        %v1924 = vxor.u32 %v1860, %v1892
        %v1925 = vxor.u32 %v1861, %v1893
        %v1926 = vxor.u32 %v1862, %v1894
        %v1927 = vxor.u32 %v1863, %v1895
        %v1928 = vxor.u32 %v1864, %v1896
        %v1929 = vxor.u32 %v1865, %v1897
        %v1930 = vmul.u32 %v1898, 2146121005
        %v1931 = vmul.u32 %v1899, 2146121005
        %v1932 = vmul.u32 %v1900, 2146121005
        %v1933 = vmul.u32 %v1901, 2146121005
        %v1934 = vmul.u32 %v1902, 2146121005
        %v1935 = vmul.u32 %v1903, 2146121005
        %v1936 = vmul.u32 %v1904, 2146121005
        %v1937 = vmul.u32 %v1905, 2146121005
        %v1938 = vmul.u32 %v1906, 2146121005
        %v1939 = vmul.u32 %v1907, 2146121005
        %v1940 = vmul.u32 %v1908, 2146121005
        %v1941 = vmul.u32 %v1909, 2146121005
        %v1942 = vmul.u32 %v1910, 2146121005
        %v1943 = vmul.u32 %v1911, 2146121005
        %v1944 = vmul.u32 %v1912, 2146121005
        %v1945 = vmul.u32 %v1913, 2146121005
        %v1946 = vmul.u32 %v1914, 2146121005
        %v1947 = vmul.u32 %v1915, 2146121005
        %v1948 = vmul.u32 %v1916, 2146121005
        %v1949 = vmul.u32 %v1917, 2146121005
        %v1950 = vmul.u32 %v1918, 2146121005
        %v1951 = vmul.u32 %v1919, 2146121005
        %v1952 = vmul.u32 %v1920, 2146121005
        %v1953 = vmul.u32 %v1921, 2146121005
        %v1954 = vmul.u32 %v1922, 2146121005
        %v1955 = vmul.u32 %v1923, 2146121005
        %v1956 = vmul.u32 %v1924, 2146121005
        %v1957 = vmul.u32 %v1925, 2146121005
        %v1958 = vmul.u32 %v1926, 2146121005
        %v1959 = vmul.u32 %v1927, 2146121005
        %v1960 = vmul.u32 %v1928, 2146121005
        %v1961 = vmul.u32 %v1929, 2146121005
        %v1962 = vshrl.u32 %v1930, 15
        %v1963 = vshrl.u32 %v1931, 15
        %v1964 = vshrl.u32 %v1932, 15
        %v1965 = vshrl.u32 %v1933, 15
        %v1966 = vshrl.u32 %v1934, 15
        %v1967 = vshrl.u32 %v1935, 15
        %v1968 = vshrl.u32 %v1936, 15
        %v1969 = vshrl.u32 %v1937, 15
        %v1970 = vshrl.u32 %v1938, 15
        %v1971 = vshrl.u32 %v1939, 15
        %v1972 = vshrl.u32 %v1940, 15
        %v1973 = vshrl.u32 %v1941, 15
        %v1974 = vshrl.u32 %v1942, 15
        %v1975 = vshrl.u32 %v1943, 15
        %v1976 = vshrl.u32 %v1944, 15
        %v1977 = vshrl.u32 %v1945, 15
        %v1978 = vshrl.u32 %v1946, 15
        %v1979 = vshrl.u32 %v1947, 15
        %v1980 = vshrl.u32 %v1948, 15
        %v1981 = vshrl.u32 %v1949, 15
        %v1982 = vshrl.u32 %v1950, 15
        %v1983 = vshrl.u32 %v1951, 15
        %v1984 = vshrl.u32 %v1952, 15
        %v1985 = vshrl.u32 %v1953, 15
        %v1986 = vshrl.u32 %v1954, 15
        %v1987 = vshrl.u32 %v1955, 15
        %v1988 = vshrl.u32 %v1956, 15
        %v1989 = vshrl.u32 %v1957, 15
        %v1990 = vshrl.u32 %v1958, 15
        %v1991 = vshrl.u32 %v1959, 15
        %v1992 = vshrl.u32 %v1960, 15
        %v1993 = vshrl.u32 %v1961, 15
        %v1994 = vxor.u32 %v1930, %v1962
        %v1995 = vxor.u32 %v1931, %v1963
        %v1996 = vxor.u32 %v1932, %v1964
        %v1997 = vxor.u32 %v1933, %v1965
        %v1998 = vxor.u32 %v1934, %v1966
        %v1999 = vxor.u32 %v1935, %v1967
        %v2000 = vxor.u32 %v1936, %v1968
        %v2001 = vxor.u32 %v1937, %v1969
        %v2002 = vxor.u32 %v1938, %v1970
        %v2003 = vxor.u32 %v1939, %v1971
        %v2004 = vxor.u32 %v1940, %v1972
        %v2005 = vxor.u32 %v1941, %v1973
        %v2006 = vxor.u32 %v1942, %v1974
        %v2007 = vxor.u32 %v1943, %v1975
        %v2008 = vxor.u32 %v1944, %v1976
        %v2009 = vxor.u32 %v1945, %v1977
        %v2010 = vxor.u32 %v1946, %v1978
        %v2011 = vxor.u32 %v1947, %v1979
        %v2012 = vxor.u32 %v1948, %v1980
        %v2013 = vxor.u32 %v1949, %v1981
        %v2014 = vxor.u32 %v1950, %v1982
        %v2015 = vxor.u32 %v1951, %v1983
        %v2016 = vxor.u32 %v1952, %v1984
        %v2017 = vxor.u32 %v1953, %v1985
        %v2018 = vxor.u32 %v1954, %v1986
        %v2019 = vxor.u32 %v1955, %v1987
        %v2020 = vxor.u32 %v1956, %v1988
        %v2021 = vxor.u32 %v1957, %v1989
        %v2022 = vxor.u32 %v1958, %v1990
        %v2023 = vxor.u32 %v1959, %v1991
        %v2024 = vxor.u32 %v1960, %v1992
        %v2025 = vxor.u32 %v1961, %v1993
        %v2026 = vmul.u32 %v1994, 2221713035
        %v2027 = vmul.u32 %v1995, 2221713035
        %v2028 = vmul.u32 %v1996, 2221713035
        %v2029 = vmul.u32 %v1997, 2221713035
        %v2030 = vmul.u32 %v1998, 2221713035
        %v2031 = vmul.u32 %v1999, 2221713035
        %v2032 = vmul.u32 %v2000, 2221713035
        %v2033 = vmul.u32 %v2001, 2221713035
        %v2034 = vmul.u32 %v2002, 2221713035
        %v2035 = vmul.u32 %v2003, 2221713035
        %v2036 = vmul.u32 %v2004, 2221713035
        %v2037 = vmul.u32 %v2005, 2221713035
        %v2038 = vmul.u32 %v2006, 2221713035
        %v2039 = vmul.u32 %v2007, 2221713035
        %v2040 = vmul.u32 %v2008, 2221713035
        %v2041 = vmul.u32 %v2009, 2221713035
        %v2042 = vmul.u32 %v2010, 2221713035
        %v2043 = vmul.u32 %v2011, 2221713035
        %v2044 = vmul.u32 %v2012, 2221713035
        %v2045 = vmul.u32 %v2013, 2221713035
        %v2046 = vmul.u32 %v2014, 2221713035
        %v2047 = vmul.u32 %v2015, 2221713035
        %v2048 = vmul.u32 %v2016, 2221713035
        %v2049 = vmul.u32 %v2017, 2221713035
        %v2050 = vmul.u32 %v2018, 2221713035
        %v2051 = vmul.u32 %v2019, 2221713035
        %v2052 = vmul.u32 %v2020, 2221713035
        %v2053 = vmul.u32 %v2021, 2221713035
        %v2054 = vmul.u32 %v2022, 2221713035
        %v2055 = vmul.u32 %v2023, 2221713035
        %v2056 = vmul.u32 %v2024, 2221713035
        %v2057 = vmul.u32 %v2025, 2221713035
        %v2058 = vshrl.u32 %v2026, 16
        %v2059 = vshrl.u32 %v2027, 16
        %v2060 = vshrl.u32 %v2028, 16
        %v2061 = vshrl.u32 %v2029, 16
        %v2062 = vshrl.u32 %v2030, 16
        %v2063 = vshrl.u32 %v2031, 16
        %v2064 = vshrl.u32 %v2032, 16
        %v2065 = vshrl.u32 %v2033, 16
        %v2066 = vshrl.u32 %v2034, 16
        %v2067 = vshrl.u32 %v2035, 16
        %v2068 = vshrl.u32 %v2036, 16
        %v2069 = vshrl.u32 %v2037, 16
        %v2070 = vshrl.u32 %v2038, 16
        %v2071 = vshrl.u32 %v2039, 16
        %v2072 = vshrl.u32 %v2040, 16
        %v2073 = vshrl.u32 %v2041, 16
        %v2074 = vshrl.u32 %v2042, 16
        %v2075 = vshrl.u32 %v2043, 16
        %v2076 = vshrl.u32 %v2044, 16
        %v2077 = vshrl.u32 %v2045, 16
        %v2078 = vshrl.u32 %v2046, 16
        %v2079 = vshrl.u32 %v2047, 16
        %v2080 = vshrl.u32 %v2048, 16
        %v2081 = vshrl.u32 %v2049, 16
        %v2082 = vshrl.u32 %v2050, 16
        %v2083 = vshrl.u32 %v2051, 16
        %v2084 = vshrl.u32 %v2052, 16
        %v2085 = vshrl.u32 %v2053, 16
        %v2086 = vshrl.u32 %v2054, 16
        %v2087 = vshrl.u32 %v2055, 16
        %v2088 = vshrl.u32 %v2056, 16
        %v2089 = vshrl.u32 %v2057, 16
        %v2090 = vxor.u32 %v2026, %v2058
        %v2091 = vxor.u32 %v2027, %v2059
        %v2092 = vxor.u32 %v2028, %v2060
        %v2093 = vxor.u32 %v2029, %v2061
        %v2094 = vxor.u32 %v2030, %v2062
        %v2095 = vxor.u32 %v2031, %v2063
        %v2096 = vxor.u32 %v2032, %v2064
        %v2097 = vxor.u32 %v2033, %v2065
        %v2098 = vxor.u32 %v2034, %v2066
        %v2099 = vxor.u32 %v2035, %v2067
        %v2100 = vxor.u32 %v2036, %v2068
        %v2101 = vxor.u32 %v2037, %v2069
        %v2102 = vxor.u32 %v2038, %v2070
        %v2103 = vxor.u32 %v2039, %v2071
        %v2104 = vxor.u32 %v2040, %v2072
        %v2105 = vxor.u32 %v2041, %v2073
        %v2106 = vxor.u32 %v2042, %v2074
        %v2107 = vxor.u32 %v2043, %v2075
        %v2108 = vxor.u32 %v2044, %v2076
        %v2109 = vxor.u32 %v2045, %v2077
        %v2110 = vxor.u32 %v2046, %v2078
        %v2111 = vxor.u32 %v2047, %v2079
        %v2112 = vxor.u32 %v2048, %v2080
        %v2113 = vxor.u32 %v2049, %v2081
        %v2114 = vxor.u32 %v2050, %v2082
        %v2115 = vxor.u32 %v2051, %v2083
        %v2116 = vxor.u32 %v2052, %v2084
        %v2117 = vxor.u32 %v2053, %v2085
        %v2118 = vxor.u32 %v2054, %v2086
        %v2119 = vxor.u32 %v2055, %v2087
        %v2120 = vxor.u32 %v2056, %v2088
        %v2121 = vxor.u32 %v2057, %v2089
        %v2122 = vshrl.u32 %v2090, 8
        %v2123 = vshrl.u32 %v2091, 8
        %v2124 = vshrl.u32 %v2092, 8
        %v2125 = vshrl.u32 %v2093, 8
        %v2126 = vshrl.u32 %v2094, 8
        %v2127 = vshrl.u32 %v2095, 8
        %v2128 = vshrl.u32 %v2096, 8
        %v2129 = vshrl.u32 %v2097, 8
        %v2130 = vshrl.u32 %v2098, 8
        %v2131 = vshrl.u32 %v2099, 8
        %v2132 = vshrl.u32 %v2100, 8
        %v2133 = vshrl.u32 %v2101, 8
        %v2134 = vshrl.u32 %v2102, 8
        %v2135 = vshrl.u32 %v2103, 8
        %v2136 = vshrl.u32 %v2104, 8
        %v2137 = vshrl.u32 %v2105, 8
        %v2138 = vshrl.u32 %v2106, 8
        %v2139 = vshrl.u32 %v2107, 8
        %v2140 = vshrl.u32 %v2108, 8
        %v2141 = vshrl.u32 %v2109, 8
        %v2142 = vshrl.u32 %v2110, 8
        %v2143 = vshrl.u32 %v2111, 8
        %v2144 = vshrl.u32 %v2112, 8
        %v2145 = vshrl.u32 %v2113, 8
        %v2146 = vshrl.u32 %v2114, 8
        %v2147 = vshrl.u32 %v2115, 8
        %v2148 = vshrl.u32 %v2116, 8
        %v2149 = vshrl.u32 %v2117, 8
        %v2150 = vshrl.u32 %v2118, 8
        %v2151 = vshrl.u32 %v2119, 8
        %v2152 = vshrl.u32 %v2120, 8
        %v2153 = vshrl.u32 %v2121, 8
        %v2154 = vmul.f32 %v1745, 16777216.0
        %v2155 = vmul.f32 %v1747, 16777216.0
        %v2156 = vmul.f32 %v1749, 16777216.0
        %v2157 = vmul.f32 %v1751, 16777216.0
        %v2158 = vmul.f32 %v1753, 16777216.0
        %v2159 = vmul.f32 %v1755, 16777216.0
        %v2160 = vmul.f32 %v1757, 16777216.0
        %v2161 = vmul.f32 %v1759, 16777216.0
        %v2162 = vmul.f32 %v1761, 16777216.0
        %v2163 = vmul.f32 %v1763, 16777216.0
        %v2164 = vmul.f32 %v1765, 16777216.0
        %v2165 = vmul.f32 %v1767, 16777216.0
        %v2166 = vmul.f32 %v1769, 16777216.0
        %v2167 = vmul.f32 %v1771, 16777216.0
        %v2168 = vmul.f32 %v1773, 16777216.0
        %v2169 = vmul.f32 %v1775, 16777216.0
        %v2170 = vmul.f32 %v1777, 16777216.0
        %v2171 = vmul.f32 %v1779, 16777216.0
        %v2172 = vmul.f32 %v1781, 16777216.0
        %v2173 = vmul.f32 %v1783, 16777216.0
        %v2174 = vmul.f32 %v1785, 16777216.0
        %v2175 = vmul.f32 %v1787, 16777216.0
        %v2176 = vmul.f32 %v1789, 16777216.0
        %v2177 = vmul.f32 %v1791, 16777216.0
        %v2178 = vmul.f32 %v1793, 16777216.0
        %v2179 = vmul.f32 %v1795, 16777216.0
        %v2180 = vmul.f32 %v1797, 16777216.0
        %v2181 = vmul.f32 %v1799, 16777216.0
        %v2182 = vmul.f32 %v1801, 16777216.0
        %v2183 = vmul.f32 %v1803, 16777216.0
        %v2184 = vmul.f32 %v1805, 16777216.0
        %v2185 = vmul.f32 %v1807, 16777216.0
        %v2186 = vcvt.f32.s32.to.zero.pseudo %v2154
        %v2187 = vcvt.f32.s32.to.zero.pseudo %v2155
        %v2188 = vcvt.f32.s32.to.zero.pseudo %v2156
        %v2189 = vcvt.f32.s32.to.zero.pseudo %v2157
        %v2190 = vcvt.f32.s32.to.zero.pseudo %v2158
        %v2191 = vcvt.f32.s32.to.zero.pseudo %v2159
        %v2192 = vcvt.f32.s32.to.zero.pseudo %v2160
        %v2193 = vcvt.f32.s32.to.zero.pseudo %v2161
        %v2194 = vcvt.f32.s32.to.zero.pseudo %v2162
        %v2195 = vcvt.f32.s32.to.zero.pseudo %v2163
        %v2196 = vcvt.f32.s32.to.zero.pseudo %v2164
        %v2197 = vcvt.f32.s32.to.zero.pseudo %v2165
        %v2198 = vcvt.f32.s32.to.zero.pseudo %v2166
        %v2199 = vcvt.f32.s32.to.zero.pseudo %v2167
        %v2200 = vcvt.f32.s32.to.zero.pseudo %v2168
        %v2201 = vcvt.f32.s32.to.zero.pseudo %v2169
        %v2202 = vcvt.f32.s32.to.zero.pseudo %v2170
        %v2203 = vcvt.f32.s32.to.zero.pseudo %v2171
        %v2204 = vcvt.f32.s32.to.zero.pseudo %v2172
        %v2205 = vcvt.f32.s32.to.zero.pseudo %v2173
        %v2206 = vcvt.f32.s32.to.zero.pseudo %v2174
        %v2207 = vcvt.f32.s32.to.zero.pseudo %v2175
        %v2208 = vcvt.f32.s32.to.zero.pseudo %v2176
        %v2209 = vcvt.f32.s32.to.zero.pseudo %v2177
        %v2210 = vcvt.f32.s32.to.zero.pseudo %v2178
        %v2211 = vcvt.f32.s32.to.zero.pseudo %v2179
        %v2212 = vcvt.f32.s32.to.zero.pseudo %v2180
        %v2213 = vcvt.f32.s32.to.zero.pseudo %v2181
        %v2214 = vcvt.f32.s32.to.zero.pseudo %v2182
        %v2215 = vcvt.f32.s32.to.zero.pseudo %v2183
        %v2216 = vcvt.f32.s32.to.zero.pseudo %v2184
        %v2217 = vcvt.f32.s32.to.zero.pseudo %v2185
        %vm2218 = vcmp.lt.s32.totalorder %v2122, %v2186
        %vm2219 = vcmp.lt.s32.totalorder %v2123, %v2187
        %vm2220 = vcmp.lt.s32.totalorder %v2124, %v2188
        %vm2221 = vcmp.lt.s32.totalorder %v2125, %v2189
        %vm2222 = vcmp.lt.s32.totalorder %v2126, %v2190
        %vm2223 = vcmp.lt.s32.totalorder %v2127, %v2191
        %vm2224 = vcmp.lt.s32.totalorder %v2128, %v2192
        %vm2225 = vcmp.lt.s32.totalorder %v2129, %v2193
        %vm2226 = vcmp.lt.s32.totalorder %v2130, %v2194
        %vm2227 = vcmp.lt.s32.totalorder %v2131, %v2195
        %vm2228 = vcmp.lt.s32.totalorder %v2132, %v2196
        %vm2229 = vcmp.lt.s32.totalorder %v2133, %v2197
        %vm2230 = vcmp.lt.s32.totalorder %v2134, %v2198
        %vm2231 = vcmp.lt.s32.totalorder %v2135, %v2199
        %vm2232 = vcmp.lt.s32.totalorder %v2136, %v2200
        %vm2233 = vcmp.lt.s32.totalorder %v2137, %v2201
        %vm2234 = vcmp.lt.s32.totalorder %v2138, %v2202
        %vm2235 = vcmp.lt.s32.totalorder %v2139, %v2203
        %vm2236 = vcmp.lt.s32.totalorder %v2140, %v2204
        %vm2237 = vcmp.lt.s32.totalorder %v2141, %v2205
        %vm2238 = vcmp.lt.s32.totalorder %v2142, %v2206
        %vm2239 = vcmp.lt.s32.totalorder %v2143, %v2207
        %vm2240 = vcmp.lt.s32.totalorder %v2144, %v2208
        %vm2241 = vcmp.lt.s32.totalorder %v2145, %v2209
        %vm2242 = vcmp.lt.s32.totalorder %v2146, %v2210
        %vm2243 = vcmp.lt.s32.totalorder %v2147, %v2211
        %vm2244 = vcmp.lt.s32.totalorder %v2148, %v2212
        %vm2245 = vcmp.lt.s32.totalorder %v2149, %v2213
        %vm2246 = vcmp.lt.s32.totalorder %v2150, %v2214
        %vm2247 = vcmp.lt.s32.totalorder %v2151, %v2215
        %vm2248 = vcmp.lt.s32.totalorder %v2152, %v2216
        %vm2249 = vcmp.lt.s32.totalorder %v2153, %v2217
        %v2250 = vsel %vm2218, 1.0, 0.0
        %v2251 = vsel %vm2219, 1.0, 0.0
        %v2252 = vsel %vm2220, 1.0, 0.0
        %v2253 = vsel %vm2221, 1.0, 0.0
        %v2254 = vsel %vm2222, 1.0, 0.0
        %v2255 = vsel %vm2223, 1.0, 0.0
        %v2256 = vsel %vm2224, 1.0, 0.0
        %v2257 = vsel %vm2225, 1.0, 0.0
        %v2258 = vsel %vm2226, 1.0, 0.0
        %v2259 = vsel %vm2227, 1.0, 0.0
        %v2260 = vsel %vm2228, 1.0, 0.0
        %v2261 = vsel %vm2229, 1.0, 0.0
        %v2262 = vsel %vm2230, 1.0, 0.0
        %v2263 = vsel %vm2231, 1.0, 0.0
        %v2264 = vsel %vm2232, 1.0, 0.0
        %v2265 = vsel %vm2233, 1.0, 0.0
        %v2266 = vsel %vm2234, 1.0, 0.0
        %v2267 = vsel %vm2235, 1.0, 0.0
        %v2268 = vsel %vm2236, 1.0, 0.0
        %v2269 = vsel %vm2237, 1.0, 0.0
        %v2270 = vsel %vm2238, 1.0, 0.0
        %v2271 = vsel %vm2239, 1.0, 0.0
        %v2272 = vsel %vm2240, 1.0, 0.0
        %v2273 = vsel %vm2241, 1.0, 0.0
        %v2274 = vsel %vm2242, 1.0, 0.0
        %v2275 = vsel %vm2243, 1.0, 0.0
        %v2276 = vsel %vm2244, 1.0, 0.0
        %v2277 = vsel %vm2245, 1.0, 0.0
        %v2278 = vsel %vm2246, 1.0, 0.0
        %v2279 = vsel %vm2247, 1.0, 0.0
        %v2280 = vsel %vm2248, 1.0, 0.0
        %v2281 = vsel %vm2249, 1.0, 0.0
        %v2282 = vpack.c.bf16 %v2252, %v2250
        %v2283 = vpack.c.bf16 %v2253, %v2251
        %v2284 = vpack.c.bf16 %v2256, %v2254
        %v2285 = vpack.c.bf16 %v2257, %v2255
        %v2286 = vpack.c.bf16 %v2260, %v2258
        %v2287 = vpack.c.bf16 %v2261, %v2259
        %v2288 = vpack.c.bf16 %v2264, %v2262
        %v2289 = vpack.c.bf16 %v2265, %v2263
        %v2290 = vpack.c.bf16 %v2268, %v2266
        %v2291 = vpack.c.bf16 %v2269, %v2267
        %v2292 = vpack.c.bf16 %v2272, %v2270
        %v2293 = vpack.c.bf16 %v2273, %v2271
        %v2294 = vpack.c.bf16 %v2276, %v2274
        %v2295 = vpack.c.bf16 %v2277, %v2275
        %v2296 = vpack.c.bf16 %v2280, %v2278
        %v2297 = vpack.c.bf16 %v2281, %v2279
        %2298 = vmatprep.subr.bf16.mxu0 0
        %2299 = vmatpush1.bf16.msra.mxu0 %v407
        %2300 = vmatprep.subr.bf16.mxu0 0
        %2301 = vmatpush1.bf16.msra.mxu0 %v408
        %2302 = vmatprep.subr.bf16.mxu0 0
        %2303 = vmatpush1.bf16.msra.mxu0 %v409
        %2304 = vmatprep.subr.bf16.mxu0 0
        %2305 = vmatpush1.bf16.msra.mxu0 %v410
        %2306 = vmatprep.subr.bf16.mxu0 0
        %2307 = vmatpush1.bf16.msra.mxu0 %v411
        %2308 = vmatprep.subr.bf16.mxu0 0
        %2309 = vmatpush1.bf16.msra.mxu0 %v412
        %2310 = vmatprep.subr.bf16.mxu0 0
        %2311 = vmatpush1.bf16.msra.mxu0 %v413
        %2312 = vmatprep.subr.bf16.mxu0 0
        %2313 = vmatpush1.bf16.msra.mxu0 %v414
        %2314 = vmatprep.subr.bf16.mxu0 0
        %2315 = vmatpush1.bf16.msra.mxu0 %v415
        %2316 = vmatprep.subr.bf16.mxu0 0
        %2317 = vmatpush1.bf16.msra.mxu0 %v416
        %2318 = vmatprep.subr.bf16.mxu0 0
        %2319 = vmatpush1.bf16.msra.mxu0 %v417
        %2320 = vmatprep.subr.bf16.mxu0 0
        %2321 = vmatpush1.bf16.msra.mxu0 %v418
        %2322 = vmatprep.subr.bf16.mxu0 0
        %2323 = vmatpush1.bf16.msra.mxu0 %v419
        %2324 = vmatprep.subr.bf16.mxu0 0
        %2325 = vmatpush1.bf16.msra.mxu0 %v420
        %2326 = vmatprep.subr.bf16.mxu0 0
        %2327 = vmatpush1.bf16.msra.mxu0 %v421
        %2328 = vmatprep.subr.bf16.mxu0 0
        %2329 = vmatpush1.bf16.msra.mxu0 %v422
        %2330 = vmatprep.mubr.bf16.mxu0 %v2283
        %2331 = vmatmul.mubr.bf16.gmra.mrb[0].mxu0 %v2282
        %v2332 = vpop.f32.mrb[0].mxu0
        %v2333 = vadd.f32 0.0, %v2332
        %v2334 = vpop.f32.mrb[0].mxu0
        %v2335 = vpop.f32.mrb[0].mxu0
        %v2336 = vadd.f32 0.0, %v2335
        %v2337 = vpop.f32.mrb[0].mxu0
        %2338 = vmatprep.mubr.bf16.mxu0 %v2285
        %2339 = vmatmul.mubr.bf16.gmra.mrb[0].mxu0 %v2284
        %v2340 = vpop.f32.mrb[0].mxu0
        %v2341 = vadd.f32 0.0, %v2340
        %v2342 = vpop.f32.mrb[0].mxu0
        %v2343 = vpop.f32.mrb[0].mxu0
        %v2344 = vadd.f32 0.0, %v2343
        %v2345 = vpop.f32.mrb[0].mxu0
        %2346 = vmatprep.mubr.bf16.mxu0 %v2287
        %2347 = vmatmul.mubr.bf16.gmra.mrb[0].mxu0 %v2286
        %v2348 = vpop.f32.mrb[0].mxu0
        %v2349 = vadd.f32 0.0, %v2348
        %v2350 = vpop.f32.mrb[0].mxu0
        %v2351 = vpop.f32.mrb[0].mxu0
        %v2352 = vadd.f32 0.0, %v2351
        %v2353 = vpop.f32.mrb[0].mxu0
        %2354 = vmatprep.mubr.bf16.mxu0 %v2289
        %2355 = vmatmul.mubr.bf16.gmra.mrb[0].mxu0 %v2288
        %v2356 = vpop.f32.mrb[0].mxu0
        %v2357 = vadd.f32 0.0, %v2356
        %v2358 = vpop.f32.mrb[0].mxu0
        %v2359 = vpop.f32.mrb[0].mxu0
        %v2360 = vadd.f32 0.0, %v2359
        %v2361 = vpop.f32.mrb[0].mxu0
        %2362 = vmatprep.mubr.bf16.mxu0 %v2291
        %2363 = vmatmul.mubr.bf16.gmra.mrb[0].mxu0 %v2290
        %v2364 = vpop.f32.mrb[0].mxu0
        %v2365 = vadd.f32 0.0, %v2364
        %v2366 = vpop.f32.mrb[0].mxu0
        %v2367 = vpop.f32.mrb[0].mxu0
        %v2368 = vadd.f32 0.0, %v2367
        %v2369 = vpop.f32.mrb[0].mxu0
        %2370 = vmatprep.mubr.bf16.mxu0 %v2293
        %2371 = vmatmul.mubr.bf16.gmra.mrb[0].mxu0 %v2292
        %v2372 = vpop.f32.mrb[0].mxu0
        %v2373 = vadd.f32 0.0, %v2372
        %v2374 = vpop.f32.mrb[0].mxu0
        %v2375 = vpop.f32.mrb[0].mxu0
        %v2376 = vadd.f32 0.0, %v2375
        %v2377 = vpop.f32.mrb[0].mxu0
        %2378 = vmatprep.mubr.bf16.mxu0 %v2295
        %2379 = vmatmul.mubr.bf16.gmra.mrb[0].mxu0 %v2294
        %v2380 = vpop.f32.mrb[0].mxu0
        %v2381 = vadd.f32 0.0, %v2380
        %v2382 = vpop.f32.mrb[0].mxu0
        %v2383 = vpop.f32.mrb[0].mxu0
        %v2384 = vadd.f32 0.0, %v2383
        %v2385 = vpop.f32.mrb[0].mxu0
        %2386 = vmatprep.mubr.bf16.mxu0 %v2297
        %2387 = vmatmul.mubr.bf16.gmra.mrb[0].mxu0 %v2296
        %v2388 = vpop.f32.mrb[0].mxu0
        %v2389 = vadd.f32 0.0, %v2388
        %v2390 = vpop.f32.mrb[0].mxu0
        %v2391 = vpop.f32.mrb[0].mxu0
        %v2392 = vadd.f32 0.0, %v2391
        %v2393 = vpop.f32.mrb[0].mxu0
        %2394 = vdwg.mxu0
        %v2395 = vadd.f32 %v438, %v2333
        %v2396 = vadd.f32 %v438, %v2336
        %v2397 = vadd.f32 %v438, %v2341
        %v2398 = vadd.f32 %v438, %v2344
        %v2399 = vadd.f32 %v438, %v2349
        %v2400 = vadd.f32 %v438, %v2352
        %v2401 = vadd.f32 %v438, %v2357
        %v2402 = vadd.f32 %v438, %v2360
        %v2403 = vadd.f32 %v438, %v2365
        %v2404 = vadd.f32 %v438, %v2368
        %v2405 = vadd.f32 %v438, %v2373
        %v2406 = vadd.f32 %v438, %v2376
        %v2407 = vadd.f32 %v438, %v2381
        %v2408 = vadd.f32 %v438, %v2384
        %v2409 = vadd.f32 %v438, %v2389
        %v2410 = vadd.f32 %v438, %v2392
        %v2411 = vxor.u32 %v2395, 2147483648
        %v2412 = vxor.u32 %v2396, 2147483648
        %v2413 = vxor.u32 %v2397, 2147483648
        %v2414 = vxor.u32 %v2398, 2147483648
        %v2415 = vxor.u32 %v2399, 2147483648
        %v2416 = vxor.u32 %v2400, 2147483648
        %v2417 = vxor.u32 %v2401, 2147483648
        %v2418 = vxor.u32 %v2402, 2147483648
        %v2419 = vxor.u32 %v2403, 2147483648
        %v2420 = vxor.u32 %v2404, 2147483648
        %v2421 = vxor.u32 %v2405, 2147483648
        %v2422 = vxor.u32 %v2406, 2147483648
        %v2423 = vxor.u32 %v2407, 2147483648
        %v2424 = vxor.u32 %v2408, 2147483648
        %v2425 = vxor.u32 %v2409, 2147483648
        %v2426 = vxor.u32 %v2410, 2147483648
        %v2427 = vmul.f32 %v2411, 1.442695
        %v2428 = vpow.pop %v2427
        %v2429 = vmul.f32 %v2412, 1.442695
        %v2430 = vpow.pop %v2429
        %v2431 = vmul.f32 %v2413, 1.442695
        %v2432 = vpow.pop %v2431
        %v2433 = vmul.f32 %v2414, 1.442695
        %v2434 = vpow.pop %v2433
        %v2435 = vmul.f32 %v2415, 1.442695
        %v2436 = vpow.pop %v2435
        %v2437 = vmul.f32 %v2416, 1.442695
        %v2438 = vpow.pop %v2437
        %v2439 = vmul.f32 %v2417, 1.442695
        %v2440 = vpow.pop %v2439
        %v2441 = vmul.f32 %v2418, 1.442695
        %v2442 = vpow.pop %v2441
        %v2443 = vmul.f32 %v2419, 1.442695
        %v2444 = vpow.pop %v2443
        %v2445 = vmul.f32 %v2420, 1.442695
        %v2446 = vpow.pop %v2445
        %v2447 = vmul.f32 %v2421, 1.442695
        %v2448 = vpow.pop %v2447
        %v2449 = vmul.f32 %v2422, 1.442695
        %v2450 = vpow.pop %v2449
        %v2451 = vmul.f32 %v2423, 1.442695
        %v2452 = vpow.pop %v2451
        %v2453 = vmul.f32 %v2424, 1.442695
        %v2454 = vpow.pop %v2453
        %v2455 = vmul.f32 %v2425, 1.442695
        %v2456 = vpow.pop %v2455
        %v2457 = vmul.f32 %v2426, 1.442695
        %v2458 = vpow.pop %v2457
        %v2459 = vadd.f32 %v2428, 1.0
        %v2460 = vadd.f32 %v2430, 1.0
        %v2461 = vadd.f32 %v2432, 1.0
        %v2462 = vadd.f32 %v2434, 1.0
        %v2463 = vadd.f32 %v2436, 1.0
        %v2464 = vadd.f32 %v2438, 1.0
        %v2465 = vadd.f32 %v2440, 1.0
        %v2466 = vadd.f32 %v2442, 1.0
        %v2467 = vadd.f32 %v2444, 1.0
        %v2468 = vadd.f32 %v2446, 1.0
        %v2469 = vadd.f32 %v2448, 1.0
        %v2470 = vadd.f32 %v2450, 1.0
        %v2471 = vadd.f32 %v2452, 1.0
        %v2472 = vadd.f32 %v2454, 1.0
        %v2473 = vadd.f32 %v2456, 1.0
        %v2474 = vadd.f32 %v2458, 1.0
        %v2475 = vrcp.pop %v2459
        %v2476 = vmul.f32 1.0, %v2475
        %v2477 = vrcp.pop %v2460
        %v2478 = vmul.f32 1.0, %v2477
        %v2479 = vrcp.pop %v2461
        %v2480 = vmul.f32 1.0, %v2479
        %v2481 = vrcp.pop %v2462
        %v2482 = vmul.f32 1.0, %v2481
        %v2483 = vrcp.pop %v2463
        %v2484 = vmul.f32 1.0, %v2483
        %v2485 = vrcp.pop %v2464
        %v2486 = vmul.f32 1.0, %v2485
        %v2487 = vrcp.pop %v2465
        %v2488 = vmul.f32 1.0, %v2487
        %v2489 = vrcp.pop %v2466
        %v2490 = vmul.f32 1.0, %v2489
        %v2491 = vrcp.pop %v2467
        %v2492 = vmul.f32 1.0, %v2491
        %v2493 = vrcp.pop %v2468
        %v2494 = vmul.f32 1.0, %v2493
        %v2495 = vrcp.pop %v2469
        %v2496 = vmul.f32 1.0, %v2495
        %v2497 = vrcp.pop %v2470
        %v2498 = vmul.f32 1.0, %v2497
        %v2499 = vrcp.pop %v2471
        %v2500 = vmul.f32 1.0, %v2499
        %v2501 = vrcp.pop %v2472
        %v2502 = vmul.f32 1.0, %v2501
        %v2503 = vrcp.pop %v2473
        %v2504 = vmul.f32 1.0, %v2503
        %v2505 = vrcp.pop %v2474
        %v2506 = vmul.f32 1.0, %v2505
        %v2507 = vadd.s32 %v665, 2004795789
        %v2508 = vlaneseq
        %v2509 = vshrl.u32 %v2508, 7
        %v2510 = vsub.s32 0, %v2509
        %v2511 = vrot.slane %v2507, %v2510
        %2512 = vset.pattern.permute.xlu0 0
        %2513 = vperm.xlu0 %2512, %v2511
        %v2514 = vpop.permute.xlu0 %2513
        %v2515 = vxor.u32 %v719, %v2514
        %v2516 = vxor.u32 %v720, %v2514
        %v2517 = vxor.u32 %v721, %v2514
        %v2518 = vxor.u32 %v722, %v2514
        %v2519 = vxor.u32 %v723, %v2514
        %v2520 = vxor.u32 %v724, %v2514
        %v2521 = vxor.u32 %v725, %v2514
        %v2522 = vxor.u32 %v726, %v2514
        %v2523 = vxor.u32 %v727, %v2514
        %v2524 = vxor.u32 %v728, %v2514
        %v2525 = vxor.u32 %v729, %v2514
        %v2526 = vxor.u32 %v730, %v2514
        %v2527 = vxor.u32 %v731, %v2514
        %v2528 = vxor.u32 %v732, %v2514
        %v2529 = vxor.u32 %v733, %v2514
        %v2530 = vxor.u32 %v734, %v2514
        %v2531 = vshrl.u32 %v2515, 16
        %v2532 = vshrl.u32 %v2516, 16
        %v2533 = vshrl.u32 %v2517, 16
        %v2534 = vshrl.u32 %v2518, 16
        %v2535 = vshrl.u32 %v2519, 16
        %v2536 = vshrl.u32 %v2520, 16
        %v2537 = vshrl.u32 %v2521, 16
        %v2538 = vshrl.u32 %v2522, 16
        %v2539 = vshrl.u32 %v2523, 16
        %v2540 = vshrl.u32 %v2524, 16
        %v2541 = vshrl.u32 %v2525, 16
        %v2542 = vshrl.u32 %v2526, 16
        %v2543 = vshrl.u32 %v2527, 16
        %v2544 = vshrl.u32 %v2528, 16
        %v2545 = vshrl.u32 %v2529, 16
        %v2546 = vshrl.u32 %v2530, 16
        %v2547 = vxor.u32 %v2515, %v2531
        %v2548 = vxor.u32 %v2516, %v2532
        %v2549 = vxor.u32 %v2517, %v2533
        %v2550 = vxor.u32 %v2518, %v2534
        %v2551 = vxor.u32 %v2519, %v2535
        %v2552 = vxor.u32 %v2520, %v2536
        %v2553 = vxor.u32 %v2521, %v2537
        %v2554 = vxor.u32 %v2522, %v2538
        %v2555 = vxor.u32 %v2523, %v2539
        %v2556 = vxor.u32 %v2524, %v2540
        %v2557 = vxor.u32 %v2525, %v2541
        %v2558 = vxor.u32 %v2526, %v2542
        %v2559 = vxor.u32 %v2527, %v2543
        %v2560 = vxor.u32 %v2528, %v2544
        %v2561 = vxor.u32 %v2529, %v2545
        %v2562 = vxor.u32 %v2530, %v2546
        %v2563 = vmul.u32 %v2547, 2146121005
        %v2564 = vmul.u32 %v2548, 2146121005
        %v2565 = vmul.u32 %v2549, 2146121005
        %v2566 = vmul.u32 %v2550, 2146121005
        %v2567 = vmul.u32 %v2551, 2146121005
        %v2568 = vmul.u32 %v2552, 2146121005
        %v2569 = vmul.u32 %v2553, 2146121005
        %v2570 = vmul.u32 %v2554, 2146121005
        %v2571 = vmul.u32 %v2555, 2146121005
        %v2572 = vmul.u32 %v2556, 2146121005
        %v2573 = vmul.u32 %v2557, 2146121005
        %v2574 = vmul.u32 %v2558, 2146121005
        %v2575 = vmul.u32 %v2559, 2146121005
        %v2576 = vmul.u32 %v2560, 2146121005
        %v2577 = vmul.u32 %v2561, 2146121005
        %v2578 = vmul.u32 %v2562, 2146121005
        %v2579 = vshrl.u32 %v2563, 15
        %v2580 = vshrl.u32 %v2564, 15
        %v2581 = vshrl.u32 %v2565, 15
        %v2582 = vshrl.u32 %v2566, 15
        %v2583 = vshrl.u32 %v2567, 15
        %v2584 = vshrl.u32 %v2568, 15
        %v2585 = vshrl.u32 %v2569, 15
        %v2586 = vshrl.u32 %v2570, 15
        %v2587 = vshrl.u32 %v2571, 15
        %v2588 = vshrl.u32 %v2572, 15
        %v2589 = vshrl.u32 %v2573, 15
        %v2590 = vshrl.u32 %v2574, 15
        %v2591 = vshrl.u32 %v2575, 15
        %v2592 = vshrl.u32 %v2576, 15
        %v2593 = vshrl.u32 %v2577, 15
        %v2594 = vshrl.u32 %v2578, 15
        %v2595 = vxor.u32 %v2563, %v2579
        %v2596 = vxor.u32 %v2564, %v2580
        %v2597 = vxor.u32 %v2565, %v2581
        %v2598 = vxor.u32 %v2566, %v2582
        %v2599 = vxor.u32 %v2567, %v2583
        %v2600 = vxor.u32 %v2568, %v2584
        %v2601 = vxor.u32 %v2569, %v2585
        %v2602 = vxor.u32 %v2570, %v2586
        %v2603 = vxor.u32 %v2571, %v2587
        %v2604 = vxor.u32 %v2572, %v2588
        %v2605 = vxor.u32 %v2573, %v2589
        %v2606 = vxor.u32 %v2574, %v2590
        %v2607 = vxor.u32 %v2575, %v2591
        %v2608 = vxor.u32 %v2576, %v2592
        %v2609 = vxor.u32 %v2577, %v2593
        %v2610 = vxor.u32 %v2578, %v2594
        %v2611 = vmul.u32 %v2595, 2221713035
        %v2612 = vmul.u32 %v2596, 2221713035
        %v2613 = vmul.u32 %v2597, 2221713035
        %v2614 = vmul.u32 %v2598, 2221713035
        %v2615 = vmul.u32 %v2599, 2221713035
        %v2616 = vmul.u32 %v2600, 2221713035
        %v2617 = vmul.u32 %v2601, 2221713035
        %v2618 = vmul.u32 %v2602, 2221713035
        %v2619 = vmul.u32 %v2603, 2221713035
        %v2620 = vmul.u32 %v2604, 2221713035
        %v2621 = vmul.u32 %v2605, 2221713035
        %v2622 = vmul.u32 %v2606, 2221713035
        %v2623 = vmul.u32 %v2607, 2221713035
        %v2624 = vmul.u32 %v2608, 2221713035
        %v2625 = vmul.u32 %v2609, 2221713035
        %v2626 = vmul.u32 %v2610, 2221713035
        %v2627 = vshrl.u32 %v2611, 16
        %v2628 = vshrl.u32 %v2612, 16
        %v2629 = vshrl.u32 %v2613, 16
        %v2630 = vshrl.u32 %v2614, 16
        %v2631 = vshrl.u32 %v2615, 16
        %v2632 = vshrl.u32 %v2616, 16
        %v2633 = vshrl.u32 %v2617, 16
        %v2634 = vshrl.u32 %v2618, 16
        %v2635 = vshrl.u32 %v2619, 16
        %v2636 = vshrl.u32 %v2620, 16
        %v2637 = vshrl.u32 %v2621, 16
        %v2638 = vshrl.u32 %v2622, 16
        %v2639 = vshrl.u32 %v2623, 16
        %v2640 = vshrl.u32 %v2624, 16
        %v2641 = vshrl.u32 %v2625, 16
        %v2642 = vshrl.u32 %v2626, 16
        %v2643 = vxor.u32 %v2611, %v2627
        %v2644 = vxor.u32 %v2612, %v2628
        %v2645 = vxor.u32 %v2613, %v2629
        %v2646 = vxor.u32 %v2614, %v2630
        %v2647 = vxor.u32 %v2615, %v2631
        %v2648 = vxor.u32 %v2616, %v2632
        %v2649 = vxor.u32 %v2617, %v2633
        %v2650 = vxor.u32 %v2618, %v2634
        %v2651 = vxor.u32 %v2619, %v2635
        %v2652 = vxor.u32 %v2620, %v2636
        %v2653 = vxor.u32 %v2621, %v2637
        %v2654 = vxor.u32 %v2622, %v2638
        %v2655 = vxor.u32 %v2623, %v2639
        %v2656 = vxor.u32 %v2624, %v2640
        %v2657 = vxor.u32 %v2625, %v2641
        %v2658 = vxor.u32 %v2626, %v2642
        %v2659 = vshrl.u32 %v2643, 8
        %v2660 = vshrl.u32 %v2644, 8
        %v2661 = vshrl.u32 %v2645, 8
        %v2662 = vshrl.u32 %v2646, 8
        %v2663 = vshrl.u32 %v2647, 8
        %v2664 = vshrl.u32 %v2648, 8
        %v2665 = vshrl.u32 %v2649, 8
        %v2666 = vshrl.u32 %v2650, 8
        %v2667 = vshrl.u32 %v2651, 8
        %v2668 = vshrl.u32 %v2652, 8
        %v2669 = vshrl.u32 %v2653, 8
        %v2670 = vshrl.u32 %v2654, 8
        %v2671 = vshrl.u32 %v2655, 8
        %v2672 = vshrl.u32 %v2656, 8
        %v2673 = vshrl.u32 %v2657, 8
        %v2674 = vshrl.u32 %v2658, 8
        %v2675 = vmul.f32 %v2476, 16777216.0
        %v2676 = vmul.f32 %v2478, 16777216.0
        %v2677 = vmul.f32 %v2480, 16777216.0
        %v2678 = vmul.f32 %v2482, 16777216.0
        %v2679 = vmul.f32 %v2484, 16777216.0
        %v2680 = vmul.f32 %v2486, 16777216.0
        %v2681 = vmul.f32 %v2488, 16777216.0
        %v2682 = vmul.f32 %v2490, 16777216.0
        %v2683 = vmul.f32 %v2492, 16777216.0
        %v2684 = vmul.f32 %v2494, 16777216.0
        %v2685 = vmul.f32 %v2496, 16777216.0
        %v2686 = vmul.f32 %v2498, 16777216.0
        %v2687 = vmul.f32 %v2500, 16777216.0
        %v2688 = vmul.f32 %v2502, 16777216.0
        %v2689 = vmul.f32 %v2504, 16777216.0
        %v2690 = vmul.f32 %v2506, 16777216.0
        %v2691 = vcvt.f32.s32.to.zero.pseudo %v2675
        %v2692 = vcvt.f32.s32.to.zero.pseudo %v2676
        %v2693 = vcvt.f32.s32.to.zero.pseudo %v2677
        %v2694 = vcvt.f32.s32.to.zero.pseudo %v2678
        %v2695 = vcvt.f32.s32.to.zero.pseudo %v2679
        %v2696 = vcvt.f32.s32.to.zero.pseudo %v2680
        %v2697 = vcvt.f32.s32.to.zero.pseudo %v2681
        %v2698 = vcvt.f32.s32.to.zero.pseudo %v2682
        %v2699 = vcvt.f32.s32.to.zero.pseudo %v2683
        %v2700 = vcvt.f32.s32.to.zero.pseudo %v2684
        %v2701 = vcvt.f32.s32.to.zero.pseudo %v2685
        %v2702 = vcvt.f32.s32.to.zero.pseudo %v2686
        %v2703 = vcvt.f32.s32.to.zero.pseudo %v2687
        %v2704 = vcvt.f32.s32.to.zero.pseudo %v2688
        %v2705 = vcvt.f32.s32.to.zero.pseudo %v2689
        %v2706 = vcvt.f32.s32.to.zero.pseudo %v2690
        %vm2707 = vcmp.lt.s32.totalorder %v2659, %v2691
        %vm2708 = vcmp.lt.s32.totalorder %v2660, %v2692
        %vm2709 = vcmp.lt.s32.totalorder %v2661, %v2693
        %vm2710 = vcmp.lt.s32.totalorder %v2662, %v2694
        %vm2711 = vcmp.lt.s32.totalorder %v2663, %v2695
        %vm2712 = vcmp.lt.s32.totalorder %v2664, %v2696
        %vm2713 = vcmp.lt.s32.totalorder %v2665, %v2697
        %vm2714 = vcmp.lt.s32.totalorder %v2666, %v2698
        %vm2715 = vcmp.lt.s32.totalorder %v2667, %v2699
        %vm2716 = vcmp.lt.s32.totalorder %v2668, %v2700
        %vm2717 = vcmp.lt.s32.totalorder %v2669, %v2701
        %vm2718 = vcmp.lt.s32.totalorder %v2670, %v2702
        %vm2719 = vcmp.lt.s32.totalorder %v2671, %v2703
        %vm2720 = vcmp.lt.s32.totalorder %v2672, %v2704
        %vm2721 = vcmp.lt.s32.totalorder %v2673, %v2705
        %vm2722 = vcmp.lt.s32.totalorder %v2674, %v2706
        %v2723 = vsel %vm2707, 1.0, 0.0
        %v2724 = vsel %vm2708, 1.0, 0.0
        %v2725 = vsel %vm2709, 1.0, 0.0
        %v2726 = vsel %vm2710, 1.0, 0.0
        %v2727 = vsel %vm2711, 1.0, 0.0
        %v2728 = vsel %vm2712, 1.0, 0.0
        %v2729 = vsel %vm2713, 1.0, 0.0
        %v2730 = vsel %vm2714, 1.0, 0.0
        %v2731 = vsel %vm2715, 1.0, 0.0
        %v2732 = vsel %vm2716, 1.0, 0.0
        %v2733 = vsel %vm2717, 1.0, 0.0
        %v2734 = vsel %vm2718, 1.0, 0.0
        %v2735 = vsel %vm2719, 1.0, 0.0
        %v2736 = vsel %vm2720, 1.0, 0.0
        %v2737 = vsel %vm2721, 1.0, 0.0
        %v2738 = vsel %vm2722, 1.0, 0.0
        %v2739 = vpack.c.bf16 %v2724, %v2723
        %v2740 = vpack.c.bf16 %v2726, %v2725
        %v2741 = vpack.c.bf16 %v2728, %v2727
        %v2742 = vpack.c.bf16 %v2730, %v2729
        %v2743 = vpack.c.bf16 %v2732, %v2731
        %v2744 = vpack.c.bf16 %v2734, %v2733
        %v2745 = vpack.c.bf16 %v2736, %v2735
        %v2746 = vpack.c.bf16 %v2738, %v2737
        %2747 = vmatprep.subr.bf16.mxu0 0
        %2748 = vmatpush1.bf16.xpose.msra.mxu0 %v407
        %2749 = vmatprep.subr.bf16.mxu0 0
        %2750 = vmatpush1.bf16.xpose.msra.mxu0 %v408
        %2751 = vmatprep.subr.bf16.mxu0 0
        %2752 = vmatpush1.bf16.xpose.msra.mxu0 %v409
        %2753 = vmatprep.subr.bf16.mxu0 0
        %2754 = vmatpush1.bf16.xpose.msra.mxu0 %v410
        %2755 = vmatprep.subr.bf16.mxu0 0
        %2756 = vmatpush1.bf16.xpose.msra.mxu0 %v411
        %2757 = vmatprep.subr.bf16.mxu0 0
        %2758 = vmatpush1.bf16.xpose.msra.mxu0 %v412
        %2759 = vmatprep.subr.bf16.mxu0 0
        %2760 = vmatpush1.bf16.xpose.msra.mxu0 %v413
        %2761 = vmatprep.subr.bf16.mxu0 0
        %2762 = vmatpush1.bf16.xpose.msra.mxu0 %v414
        %2763 = vmatprep.subr.bf16.mxu0 0
        %2764 = vmatpush1.bf16.xpose.msra.mxu0 %v415
        %2765 = vmatprep.subr.bf16.mxu0 0
        %2766 = vmatpush1.bf16.xpose.msra.mxu0 %v416
        %2767 = vmatprep.subr.bf16.mxu0 0
        %2768 = vmatpush1.bf16.xpose.msra.mxu0 %v417
        %2769 = vmatprep.subr.bf16.mxu0 0
        %2770 = vmatpush1.bf16.xpose.msra.mxu0 %v418
        %2771 = vmatprep.subr.bf16.mxu0 0
        %2772 = vmatpush1.bf16.xpose.msra.mxu0 %v419
        %2773 = vmatprep.subr.bf16.mxu0 0
        %2774 = vmatpush1.bf16.xpose.msra.mxu0 %v420
        %2775 = vmatprep.subr.bf16.mxu0 0
        %2776 = vmatpush1.bf16.xpose.msra.mxu0 %v421
        %2777 = vmatprep.subr.bf16.mxu0 0
        %2778 = vmatpush1.bf16.xpose.msra.mxu0 %v422
        %2779 = vmatprep.mubr.bf16.mxu0 0
        %2780 = vmatmul.mubr.bf16.gmra.mrb[0].mxu0 %v2739
        %v2781 = vpop.f32.mrb[0].mxu0
        %v2782 = vadd.f32 0.0, %v2781
        %v2783 = vpop.f32.mrb[0].mxu0
        %v2784 = vadd.f32 0.0, %v2783
        %v2785 = vpop.f32.mrb[0].mxu0
        %v2786 = vadd.f32 0.0, %v2785
        %v2787 = vpop.f32.mrb[0].mxu0
        %v2788 = vadd.f32 0.0, %v2787
        %2789 = vmatprep.mubr.bf16.mxu0 0
        %2790 = vmatmul.mubr.bf16.gmra.mrb[0].mxu0 %v2740
        %v2791 = vpop.f32.mrb[0].mxu0
        %v2792 = vadd.f32 0.0, %v2791
        %v2793 = vpop.f32.mrb[0].mxu0
        %v2794 = vadd.f32 0.0, %v2793
        %v2795 = vpop.f32.mrb[0].mxu0
        %v2796 = vadd.f32 0.0, %v2795
        %v2797 = vpop.f32.mrb[0].mxu0
        %v2798 = vadd.f32 0.0, %v2797
        %2799 = vmatprep.mubr.bf16.mxu0 0
        %2800 = vmatmul.mubr.bf16.gmra.mrb[0].mxu0 %v2741
        %v2801 = vpop.f32.mrb[0].mxu0
        %v2802 = vadd.f32 0.0, %v2801
        %v2803 = vpop.f32.mrb[0].mxu0
        %v2804 = vadd.f32 0.0, %v2803
        %v2805 = vpop.f32.mrb[0].mxu0
        %v2806 = vadd.f32 0.0, %v2805
        %v2807 = vpop.f32.mrb[0].mxu0
        %v2808 = vadd.f32 0.0, %v2807
        %2809 = vmatprep.mubr.bf16.mxu0 0
        %2810 = vmatmul.mubr.bf16.gmra.mrb[0].mxu0 %v2742
        %v2811 = vpop.f32.mrb[0].mxu0
        %v2812 = vadd.f32 0.0, %v2811
        %v2813 = vpop.f32.mrb[0].mxu0
        %v2814 = vadd.f32 0.0, %v2813
        %v2815 = vpop.f32.mrb[0].mxu0
        %v2816 = vadd.f32 0.0, %v2815
        %v2817 = vpop.f32.mrb[0].mxu0
        %v2818 = vadd.f32 0.0, %v2817
        %2819 = vmatprep.mubr.bf16.mxu0 0
        %2820 = vmatmul.mubr.bf16.gmra.mrb[0].mxu0 %v2743
        %v2821 = vpop.f32.mrb[0].mxu0
        %v2822 = vadd.f32 0.0, %v2821
        %v2823 = vpop.f32.mrb[0].mxu0
        %v2824 = vadd.f32 0.0, %v2823
        %v2825 = vpop.f32.mrb[0].mxu0
        %v2826 = vadd.f32 0.0, %v2825
        %v2827 = vpop.f32.mrb[0].mxu0
        %v2828 = vadd.f32 0.0, %v2827
        %2829 = vmatprep.mubr.bf16.mxu0 0
        %2830 = vmatmul.mubr.bf16.gmra.mrb[0].mxu0 %v2744
        %v2831 = vpop.f32.mrb[0].mxu0
        %v2832 = vadd.f32 0.0, %v2831
        %v2833 = vpop.f32.mrb[0].mxu0
        %v2834 = vadd.f32 0.0, %v2833
        %v2835 = vpop.f32.mrb[0].mxu0
        %v2836 = vadd.f32 0.0, %v2835
        %v2837 = vpop.f32.mrb[0].mxu0
        %v2838 = vadd.f32 0.0, %v2837
        %2839 = vmatprep.mubr.bf16.mxu0 0
        %2840 = vmatmul.mubr.bf16.gmra.mrb[0].mxu0 %v2745
        %v2841 = vpop.f32.mrb[0].mxu0
        %v2842 = vadd.f32 0.0, %v2841
        %v2843 = vpop.f32.mrb[0].mxu0
        %v2844 = vadd.f32 0.0, %v2843
        %v2845 = vpop.f32.mrb[0].mxu0
        %v2846 = vadd.f32 0.0, %v2845
        %v2847 = vpop.f32.mrb[0].mxu0
        %v2848 = vadd.f32 0.0, %v2847
        %2849 = vmatprep.mubr.bf16.mxu0 0
        %2850 = vmatmul.mubr.bf16.gmra.mrb[0].mxu0 %v2746
        %v2851 = vpop.f32.mrb[0].mxu0
        %v2852 = vadd.f32 0.0, %v2851
        %v2853 = vpop.f32.mrb[0].mxu0
        %v2854 = vadd.f32 0.0, %v2853
        %v2855 = vpop.f32.mrb[0].mxu0
        %v2856 = vadd.f32 0.0, %v2855
        %v2857 = vpop.f32.mrb[0].mxu0
        %v2858 = vadd.f32 0.0, %v2857
        %2859 = vdwg.mxu0
        %v2860 = vadd.f32 %v427, %v2782
        %v2861 = vadd.f32 %v431, %v2784
        %v2862 = vadd.f32 %v427, %v2786
        %v2863 = vadd.f32 %v431, %v2788
        %v2864 = vadd.f32 %v427, %v2792
        %v2865 = vadd.f32 %v431, %v2794
        %v2866 = vadd.f32 %v427, %v2796
        %v2867 = vadd.f32 %v431, %v2798
        %v2868 = vadd.f32 %v427, %v2802
        %v2869 = vadd.f32 %v431, %v2804
        %v2870 = vadd.f32 %v427, %v2806
        %v2871 = vadd.f32 %v431, %v2808
        %v2872 = vadd.f32 %v427, %v2812
        %v2873 = vadd.f32 %v431, %v2814
        %v2874 = vadd.f32 %v427, %v2816
        %v2875 = vadd.f32 %v431, %v2818
        %v2876 = vadd.f32 %v427, %v2822
        %v2877 = vadd.f32 %v431, %v2824
        %v2878 = vadd.f32 %v427, %v2826
        %v2879 = vadd.f32 %v431, %v2828
        %v2880 = vadd.f32 %v427, %v2832
        %v2881 = vadd.f32 %v431, %v2834
        %v2882 = vadd.f32 %v427, %v2836
        %v2883 = vadd.f32 %v431, %v2838
        %v2884 = vadd.f32 %v427, %v2842
        %v2885 = vadd.f32 %v431, %v2844
        %v2886 = vadd.f32 %v427, %v2846
        %v2887 = vadd.f32 %v431, %v2848
        %v2888 = vadd.f32 %v427, %v2852
        %v2889 = vadd.f32 %v431, %v2854
        %v2890 = vadd.f32 %v427, %v2856
        %v2891 = vadd.f32 %v431, %v2858
        %v2892 = vxor.u32 %v2860, 2147483648
        %v2893 = vxor.u32 %v2861, 2147483648
        %v2894 = vxor.u32 %v2862, 2147483648
        %v2895 = vxor.u32 %v2863, 2147483648
        %v2896 = vxor.u32 %v2864, 2147483648
        %v2897 = vxor.u32 %v2865, 2147483648
        %v2898 = vxor.u32 %v2866, 2147483648
        %v2899 = vxor.u32 %v2867, 2147483648
        %v2900 = vxor.u32 %v2868, 2147483648
        %v2901 = vxor.u32 %v2869, 2147483648
        %v2902 = vxor.u32 %v2870, 2147483648
        %v2903 = vxor.u32 %v2871, 2147483648
        %v2904 = vxor.u32 %v2872, 2147483648
        %v2905 = vxor.u32 %v2873, 2147483648
        %v2906 = vxor.u32 %v2874, 2147483648
        %v2907 = vxor.u32 %v2875, 2147483648
        %v2908 = vxor.u32 %v2876, 2147483648
        %v2909 = vxor.u32 %v2877, 2147483648
        %v2910 = vxor.u32 %v2878, 2147483648
        %v2911 = vxor.u32 %v2879, 2147483648
        %v2912 = vxor.u32 %v2880, 2147483648
        %v2913 = vxor.u32 %v2881, 2147483648
        %v2914 = vxor.u32 %v2882, 2147483648
        %v2915 = vxor.u32 %v2883, 2147483648
        %v2916 = vxor.u32 %v2884, 2147483648
        %v2917 = vxor.u32 %v2885, 2147483648
        %v2918 = vxor.u32 %v2886, 2147483648
        %v2919 = vxor.u32 %v2887, 2147483648
        %v2920 = vxor.u32 %v2888, 2147483648
        %v2921 = vxor.u32 %v2889, 2147483648
        %v2922 = vxor.u32 %v2890, 2147483648
        %v2923 = vxor.u32 %v2891, 2147483648
        %v2924 = vmul.f32 %v2892, 1.442695
        %v2925 = vpow.pop %v2924
        %v2926 = vmul.f32 %v2893, 1.442695
        %v2927 = vpow.pop %v2926
        %v2928 = vmul.f32 %v2894, 1.442695
        %v2929 = vpow.pop %v2928
        %v2930 = vmul.f32 %v2895, 1.442695
        %v2931 = vpow.pop %v2930
        %v2932 = vmul.f32 %v2896, 1.442695
        %v2933 = vpow.pop %v2932
        %v2934 = vmul.f32 %v2897, 1.442695
        %v2935 = vpow.pop %v2934
        %v2936 = vmul.f32 %v2898, 1.442695
        %v2937 = vpow.pop %v2936
        %v2938 = vmul.f32 %v2899, 1.442695
        %v2939 = vpow.pop %v2938
        %v2940 = vmul.f32 %v2900, 1.442695
        %v2941 = vpow.pop %v2940
        %v2942 = vmul.f32 %v2901, 1.442695
        %v2943 = vpow.pop %v2942
        %v2944 = vmul.f32 %v2902, 1.442695
        %v2945 = vpow.pop %v2944
        %v2946 = vmul.f32 %v2903, 1.442695
        %v2947 = vpow.pop %v2946
        %v2948 = vmul.f32 %v2904, 1.442695
        %v2949 = vpow.pop %v2948
        %v2950 = vmul.f32 %v2905, 1.442695
        %v2951 = vpow.pop %v2950
        %v2952 = vmul.f32 %v2906, 1.442695
        %v2953 = vpow.pop %v2952
        %v2954 = vmul.f32 %v2907, 1.442695
        %v2955 = vpow.pop %v2954
        %v2956 = vmul.f32 %v2908, 1.442695
        %v2957 = vpow.pop %v2956
        %v2958 = vmul.f32 %v2909, 1.442695
        %v2959 = vpow.pop %v2958
        %v2960 = vmul.f32 %v2910, 1.442695
        %v2961 = vpow.pop %v2960
        %v2962 = vmul.f32 %v2911, 1.442695
        %v2963 = vpow.pop %v2962
        %v2964 = vmul.f32 %v2912, 1.442695
        %v2965 = vpow.pop %v2964
        %v2966 = vmul.f32 %v2913, 1.442695
        %v2967 = vpow.pop %v2966
        %v2968 = vmul.f32 %v2914, 1.442695
        %v2969 = vpow.pop %v2968
        %v2970 = vmul.f32 %v2915, 1.442695
        %v2971 = vpow.pop %v2970
        %v2972 = vmul.f32 %v2916, 1.442695
        %v2973 = vpow.pop %v2972
        %v2974 = vmul.f32 %v2917, 1.442695
        %v2975 = vpow.pop %v2974
        %v2976 = vmul.f32 %v2918, 1.442695
        %v2977 = vpow.pop %v2976
        %v2978 = vmul.f32 %v2919, 1.442695
        %v2979 = vpow.pop %v2978
        %v2980 = vmul.f32 %v2920, 1.442695
        %v2981 = vpow.pop %v2980
        %v2982 = vmul.f32 %v2921, 1.442695
        %v2983 = vpow.pop %v2982
        %v2984 = vmul.f32 %v2922, 1.442695
        %v2985 = vpow.pop %v2984
        %v2986 = vmul.f32 %v2923, 1.442695
        %v2987 = vpow.pop %v2986
        %v2988 = vadd.f32 %v2925, 1.0
        %v2989 = vadd.f32 %v2927, 1.0
        %v2990 = vadd.f32 %v2929, 1.0
        %v2991 = vadd.f32 %v2931, 1.0
        %v2992 = vadd.f32 %v2933, 1.0
        %v2993 = vadd.f32 %v2935, 1.0
        %v2994 = vadd.f32 %v2937, 1.0
        %v2995 = vadd.f32 %v2939, 1.0
        %v2996 = vadd.f32 %v2941, 1.0
        %v2997 = vadd.f32 %v2943, 1.0
        %v2998 = vadd.f32 %v2945, 1.0
        %v2999 = vadd.f32 %v2947, 1.0
        %v3000 = vadd.f32 %v2949, 1.0
        %v3001 = vadd.f32 %v2951, 1.0
        %v3002 = vadd.f32 %v2953, 1.0
        %v3003 = vadd.f32 %v2955, 1.0
        %v3004 = vadd.f32 %v2957, 1.0
        %v3005 = vadd.f32 %v2959, 1.0
        %v3006 = vadd.f32 %v2961, 1.0
        %v3007 = vadd.f32 %v2963, 1.0
        %v3008 = vadd.f32 %v2965, 1.0
        %v3009 = vadd.f32 %v2967, 1.0
        %v3010 = vadd.f32 %v2969, 1.0
        %v3011 = vadd.f32 %v2971, 1.0
        %v3012 = vadd.f32 %v2973, 1.0
        %v3013 = vadd.f32 %v2975, 1.0
        %v3014 = vadd.f32 %v2977, 1.0
        %v3015 = vadd.f32 %v2979, 1.0
        %v3016 = vadd.f32 %v2981, 1.0
        %v3017 = vadd.f32 %v2983, 1.0
        %v3018 = vadd.f32 %v2985, 1.0
        %v3019 = vadd.f32 %v2987, 1.0
        %v3020 = vrcp.pop %v2988
        %v3021 = vmul.f32 1.0, %v3020
        %v3022 = vrcp.pop %v2989
        %v3023 = vmul.f32 1.0, %v3022
        %v3024 = vrcp.pop %v2990
        %v3025 = vmul.f32 1.0, %v3024
        %v3026 = vrcp.pop %v2991
        %v3027 = vmul.f32 1.0, %v3026
        %v3028 = vrcp.pop %v2992
        %v3029 = vmul.f32 1.0, %v3028
        %v3030 = vrcp.pop %v2993
        %v3031 = vmul.f32 1.0, %v3030
        %v3032 = vrcp.pop %v2994
        %v3033 = vmul.f32 1.0, %v3032
        %v3034 = vrcp.pop %v2995
        %v3035 = vmul.f32 1.0, %v3034
        %v3036 = vrcp.pop %v2996
        %v3037 = vmul.f32 1.0, %v3036
        %v3038 = vrcp.pop %v2997
        %v3039 = vmul.f32 1.0, %v3038
        %v3040 = vrcp.pop %v2998
        %v3041 = vmul.f32 1.0, %v3040
        %v3042 = vrcp.pop %v2999
        %v3043 = vmul.f32 1.0, %v3042
        %v3044 = vrcp.pop %v3000
        %v3045 = vmul.f32 1.0, %v3044
        %v3046 = vrcp.pop %v3001
        %v3047 = vmul.f32 1.0, %v3046
        %v3048 = vrcp.pop %v3002
        %v3049 = vmul.f32 1.0, %v3048
        %v3050 = vrcp.pop %v3003
        %v3051 = vmul.f32 1.0, %v3050
        %v3052 = vrcp.pop %v3004
        %v3053 = vmul.f32 1.0, %v3052
        %v3054 = vrcp.pop %v3005
        %v3055 = vmul.f32 1.0, %v3054
        %v3056 = vrcp.pop %v3006
        %v3057 = vmul.f32 1.0, %v3056
        %v3058 = vrcp.pop %v3007
        %v3059 = vmul.f32 1.0, %v3058
        %v3060 = vrcp.pop %v3008
        %v3061 = vmul.f32 1.0, %v3060
        %v3062 = vrcp.pop %v3009
        %v3063 = vmul.f32 1.0, %v3062
        %v3064 = vrcp.pop %v3010
        %v3065 = vmul.f32 1.0, %v3064
        %v3066 = vrcp.pop %v3011
        %v3067 = vmul.f32 1.0, %v3066
        %v3068 = vrcp.pop %v3012
        %v3069 = vmul.f32 1.0, %v3068
        %v3070 = vrcp.pop %v3013
        %v3071 = vmul.f32 1.0, %v3070
        %v3072 = vrcp.pop %v3014
        %v3073 = vmul.f32 1.0, %v3072
        %v3074 = vrcp.pop %v3015
        %v3075 = vmul.f32 1.0, %v3074
        %v3076 = vrcp.pop %v3016
        %v3077 = vmul.f32 1.0, %v3076
        %v3078 = vrcp.pop %v3017
        %v3079 = vmul.f32 1.0, %v3078
        %v3080 = vrcp.pop %v3018
        %v3081 = vmul.f32 1.0, %v3080
        %v3082 = vrcp.pop %v3019
        %v3083 = vmul.f32 1.0, %v3082
        %v3084 = vadd.s32 %v665, 2673061052
        %v3085 = vlaneseq
        %v3086 = vshrl.u32 %v3085, 7
        %v3087 = vsub.s32 0, %v3086
        %v3088 = vrot.slane %v3084, %v3087
        %3089 = vset.pattern.permute.xlu0 0
        %3090 = vperm.xlu0 %3089, %v3088
        %v3091 = vpop.permute.xlu0 %3090
        %v3092 = vxor.u32 %v719, %v3091
        %v3093 = vxor.u32 %v1811, %v3091
        %v3094 = vxor.u32 %v720, %v3091
        %v3095 = vxor.u32 %v1812, %v3091
        %v3096 = vxor.u32 %v721, %v3091
        %v3097 = vxor.u32 %v1813, %v3091
        %v3098 = vxor.u32 %v722, %v3091
        %v3099 = vxor.u32 %v1814, %v3091
        %v3100 = vxor.u32 %v723, %v3091
        %v3101 = vxor.u32 %v1815, %v3091
        %v3102 = vxor.u32 %v724, %v3091
        %v3103 = vxor.u32 %v1816, %v3091
        %v3104 = vxor.u32 %v725, %v3091
        %v3105 = vxor.u32 %v1817, %v3091
        %v3106 = vxor.u32 %v726, %v3091
        %v3107 = vxor.u32 %v1818, %v3091
        %v3108 = vxor.u32 %v727, %v3091
        %v3109 = vxor.u32 %v1819, %v3091
        %v3110 = vxor.u32 %v728, %v3091
        %v3111 = vxor.u32 %v1820, %v3091
        %v3112 = vxor.u32 %v729, %v3091
        %v3113 = vxor.u32 %v1821, %v3091
        %v3114 = vxor.u32 %v730, %v3091
        %v3115 = vxor.u32 %v1822, %v3091
        %v3116 = vxor.u32 %v731, %v3091
        %v3117 = vxor.u32 %v1823, %v3091
        %v3118 = vxor.u32 %v732, %v3091
        %v3119 = vxor.u32 %v1824, %v3091
        %v3120 = vxor.u32 %v733, %v3091
        %v3121 = vxor.u32 %v1825, %v3091
        %v3122 = vxor.u32 %v734, %v3091
        %v3123 = vxor.u32 %v1826, %v3091
        %v3124 = vshrl.u32 %v3092, 16
        %v3125 = vshrl.u32 %v3093, 16
        %v3126 = vshrl.u32 %v3094, 16
        %v3127 = vshrl.u32 %v3095, 16
        %v3128 = vshrl.u32 %v3096, 16
        %v3129 = vshrl.u32 %v3097, 16
        %v3130 = vshrl.u32 %v3098, 16
        %v3131 = vshrl.u32 %v3099, 16
        %v3132 = vshrl.u32 %v3100, 16
        %v3133 = vshrl.u32 %v3101, 16
        %v3134 = vshrl.u32 %v3102, 16
        %v3135 = vshrl.u32 %v3103, 16
        %v3136 = vshrl.u32 %v3104, 16
        %v3137 = vshrl.u32 %v3105, 16
        %v3138 = vshrl.u32 %v3106, 16
        %v3139 = vshrl.u32 %v3107, 16
        %v3140 = vshrl.u32 %v3108, 16
        %v3141 = vshrl.u32 %v3109, 16
        %v3142 = vshrl.u32 %v3110, 16
        %v3143 = vshrl.u32 %v3111, 16
        %v3144 = vshrl.u32 %v3112, 16
        %v3145 = vshrl.u32 %v3113, 16
        %v3146 = vshrl.u32 %v3114, 16
        %v3147 = vshrl.u32 %v3115, 16
        %v3148 = vshrl.u32 %v3116, 16
        %v3149 = vshrl.u32 %v3117, 16
        %v3150 = vshrl.u32 %v3118, 16
        %v3151 = vshrl.u32 %v3119, 16
        %v3152 = vshrl.u32 %v3120, 16
        %v3153 = vshrl.u32 %v3121, 16
        %v3154 = vshrl.u32 %v3122, 16
        %v3155 = vshrl.u32 %v3123, 16
        %v3156 = vxor.u32 %v3092, %v3124
        %v3157 = vxor.u32 %v3093, %v3125
        %v3158 = vxor.u32 %v3094, %v3126
        %v3159 = vxor.u32 %v3095, %v3127
        %v3160 = vxor.u32 %v3096, %v3128
        %v3161 = vxor.u32 %v3097, %v3129
        %v3162 = vxor.u32 %v3098, %v3130
        %v3163 = vxor.u32 %v3099, %v3131
        %v3164 = vxor.u32 %v3100, %v3132
        %v3165 = vxor.u32 %v3101, %v3133
        %v3166 = vxor.u32 %v3102, %v3134
        %v3167 = vxor.u32 %v3103, %v3135
        %v3168 = vxor.u32 %v3104, %v3136
        %v3169 = vxor.u32 %v3105, %v3137
        %v3170 = vxor.u32 %v3106, %v3138
        %v3171 = vxor.u32 %v3107, %v3139
        %v3172 = vxor.u32 %v3108, %v3140
        %v3173 = vxor.u32 %v3109, %v3141
        %v3174 = vxor.u32 %v3110, %v3142
        %v3175 = vxor.u32 %v3111, %v3143
        %v3176 = vxor.u32 %v3112, %v3144
        %v3177 = vxor.u32 %v3113, %v3145
        %v3178 = vxor.u32 %v3114, %v3146
        %v3179 = vxor.u32 %v3115, %v3147
        %v3180 = vxor.u32 %v3116, %v3148
        %v3181 = vxor.u32 %v3117, %v3149
        %v3182 = vxor.u32 %v3118, %v3150
        %v3183 = vxor.u32 %v3119, %v3151
        %v3184 = vxor.u32 %v3120, %v3152
        %v3185 = vxor.u32 %v3121, %v3153
        %v3186 = vxor.u32 %v3122, %v3154
        %v3187 = vxor.u32 %v3123, %v3155
        %v3188 = vmul.u32 %v3156, 2146121005
        %v3189 = vmul.u32 %v3157, 2146121005
        %v3190 = vmul.u32 %v3158, 2146121005
        %v3191 = vmul.u32 %v3159, 2146121005
        %v3192 = vmul.u32 %v3160, 2146121005
        %v3193 = vmul.u32 %v3161, 2146121005
        %v3194 = vmul.u32 %v3162, 2146121005
        %v3195 = vmul.u32 %v3163, 2146121005
        %v3196 = vmul.u32 %v3164, 2146121005
        %v3197 = vmul.u32 %v3165, 2146121005
        %v3198 = vmul.u32 %v3166, 2146121005
        %v3199 = vmul.u32 %v3167, 2146121005
        %v3200 = vmul.u32 %v3168, 2146121005
        %v3201 = vmul.u32 %v3169, 2146121005
        %v3202 = vmul.u32 %v3170, 2146121005
        %v3203 = vmul.u32 %v3171, 2146121005
        %v3204 = vmul.u32 %v3172, 2146121005
        %v3205 = vmul.u32 %v3173, 2146121005
        %v3206 = vmul.u32 %v3174, 2146121005
        %v3207 = vmul.u32 %v3175, 2146121005
        %v3208 = vmul.u32 %v3176, 2146121005
        %v3209 = vmul.u32 %v3177, 2146121005
        %v3210 = vmul.u32 %v3178, 2146121005
        %v3211 = vmul.u32 %v3179, 2146121005
        %v3212 = vmul.u32 %v3180, 2146121005
        %v3213 = vmul.u32 %v3181, 2146121005
        %v3214 = vmul.u32 %v3182, 2146121005
        %v3215 = vmul.u32 %v3183, 2146121005
        %v3216 = vmul.u32 %v3184, 2146121005
        %v3217 = vmul.u32 %v3185, 2146121005
        %v3218 = vmul.u32 %v3186, 2146121005
        %v3219 = vmul.u32 %v3187, 2146121005
        %v3220 = vshrl.u32 %v3188, 15
        %v3221 = vshrl.u32 %v3189, 15
        %v3222 = vshrl.u32 %v3190, 15
        %v3223 = vshrl.u32 %v3191, 15
        %v3224 = vshrl.u32 %v3192, 15
        %v3225 = vshrl.u32 %v3193, 15
        %v3226 = vshrl.u32 %v3194, 15
        %v3227 = vshrl.u32 %v3195, 15
        %v3228 = vshrl.u32 %v3196, 15
        %v3229 = vshrl.u32 %v3197, 15
        %v3230 = vshrl.u32 %v3198, 15
        %v3231 = vshrl.u32 %v3199, 15
        %v3232 = vshrl.u32 %v3200, 15
        %v3233 = vshrl.u32 %v3201, 15
        %v3234 = vshrl.u32 %v3202, 15
        %v3235 = vshrl.u32 %v3203, 15
        %v3236 = vshrl.u32 %v3204, 15
        %v3237 = vshrl.u32 %v3205, 15
        %v3238 = vshrl.u32 %v3206, 15
        %v3239 = vshrl.u32 %v3207, 15
        %v3240 = vshrl.u32 %v3208, 15
        %v3241 = vshrl.u32 %v3209, 15
        %v3242 = vshrl.u32 %v3210, 15
        %v3243 = vshrl.u32 %v3211, 15
        %v3244 = vshrl.u32 %v3212, 15
        %v3245 = vshrl.u32 %v3213, 15
        %v3246 = vshrl.u32 %v3214, 15
        %v3247 = vshrl.u32 %v3215, 15
        %v3248 = vshrl.u32 %v3216, 15
        %v3249 = vshrl.u32 %v3217, 15
        %v3250 = vshrl.u32 %v3218, 15
        %v3251 = vshrl.u32 %v3219, 15
        %v3252 = vxor.u32 %v3188, %v3220
        %v3253 = vxor.u32 %v3189, %v3221
        %v3254 = vxor.u32 %v3190, %v3222
        %v3255 = vxor.u32 %v3191, %v3223
        %v3256 = vxor.u32 %v3192, %v3224
        %v3257 = vxor.u32 %v3193, %v3225
        %v3258 = vxor.u32 %v3194, %v3226
        %v3259 = vxor.u32 %v3195, %v3227
        %v3260 = vxor.u32 %v3196, %v3228
        %v3261 = vxor.u32 %v3197, %v3229
        %v3262 = vxor.u32 %v3198, %v3230
        %v3263 = vxor.u32 %v3199, %v3231
        %v3264 = vxor.u32 %v3200, %v3232
        %v3265 = vxor.u32 %v3201, %v3233
        %v3266 = vxor.u32 %v3202, %v3234
        %v3267 = vxor.u32 %v3203, %v3235
        %v3268 = vxor.u32 %v3204, %v3236
        %v3269 = vxor.u32 %v3205, %v3237
        %v3270 = vxor.u32 %v3206, %v3238
        %v3271 = vxor.u32 %v3207, %v3239
        %v3272 = vxor.u32 %v3208, %v3240
        %v3273 = vxor.u32 %v3209, %v3241
        %v3274 = vxor.u32 %v3210, %v3242
        %v3275 = vxor.u32 %v3211, %v3243
        %v3276 = vxor.u32 %v3212, %v3244
        %v3277 = vxor.u32 %v3213, %v3245
        %v3278 = vxor.u32 %v3214, %v3246
        %v3279 = vxor.u32 %v3215, %v3247
        %v3280 = vxor.u32 %v3216, %v3248
        %v3281 = vxor.u32 %v3217, %v3249
        %v3282 = vxor.u32 %v3218, %v3250
        %v3283 = vxor.u32 %v3219, %v3251
        %v3284 = vmul.u32 %v3252, 2221713035
        %v3285 = vmul.u32 %v3253, 2221713035
        %v3286 = vmul.u32 %v3254, 2221713035
        %v3287 = vmul.u32 %v3255, 2221713035
        %v3288 = vmul.u32 %v3256, 2221713035
        %v3289 = vmul.u32 %v3257, 2221713035
        %v3290 = vmul.u32 %v3258, 2221713035
        %v3291 = vmul.u32 %v3259, 2221713035
        %v3292 = vmul.u32 %v3260, 2221713035
        %v3293 = vmul.u32 %v3261, 2221713035
        %v3294 = vmul.u32 %v3262, 2221713035
        %v3295 = vmul.u32 %v3263, 2221713035
        %v3296 = vmul.u32 %v3264, 2221713035
        %v3297 = vmul.u32 %v3265, 2221713035
        %v3298 = vmul.u32 %v3266, 2221713035
        %v3299 = vmul.u32 %v3267, 2221713035
        %v3300 = vmul.u32 %v3268, 2221713035
        %v3301 = vmul.u32 %v3269, 2221713035
        %v3302 = vmul.u32 %v3270, 2221713035
        %v3303 = vmul.u32 %v3271, 2221713035
        %v3304 = vmul.u32 %v3272, 2221713035
        %v3305 = vmul.u32 %v3273, 2221713035
        %v3306 = vmul.u32 %v3274, 2221713035
        %v3307 = vmul.u32 %v3275, 2221713035
        %v3308 = vmul.u32 %v3276, 2221713035
        %v3309 = vmul.u32 %v3277, 2221713035
        %v3310 = vmul.u32 %v3278, 2221713035
        %v3311 = vmul.u32 %v3279, 2221713035
        %v3312 = vmul.u32 %v3280, 2221713035
        %v3313 = vmul.u32 %v3281, 2221713035
        %v3314 = vmul.u32 %v3282, 2221713035
        %v3315 = vmul.u32 %v3283, 2221713035
        %v3316 = vshrl.u32 %v3284, 16
        %v3317 = vshrl.u32 %v3285, 16
        %v3318 = vshrl.u32 %v3286, 16
        %v3319 = vshrl.u32 %v3287, 16
        %v3320 = vshrl.u32 %v3288, 16
        %v3321 = vshrl.u32 %v3289, 16
        %v3322 = vshrl.u32 %v3290, 16
        %v3323 = vshrl.u32 %v3291, 16
        %v3324 = vshrl.u32 %v3292, 16
        %v3325 = vshrl.u32 %v3293, 16
        %v3326 = vshrl.u32 %v3294, 16
        %v3327 = vshrl.u32 %v3295, 16
        %v3328 = vshrl.u32 %v3296, 16
        %v3329 = vshrl.u32 %v3297, 16
        %v3330 = vshrl.u32 %v3298, 16
        %v3331 = vshrl.u32 %v3299, 16
        %v3332 = vshrl.u32 %v3300, 16
        %v3333 = vshrl.u32 %v3301, 16
        %v3334 = vshrl.u32 %v3302, 16
        %v3335 = vshrl.u32 %v3303, 16
        %v3336 = vshrl.u32 %v3304, 16
        %v3337 = vshrl.u32 %v3305, 16
        %v3338 = vshrl.u32 %v3306, 16
        %v3339 = vshrl.u32 %v3307, 16
        %v3340 = vshrl.u32 %v3308, 16
        %v3341 = vshrl.u32 %v3309, 16
        %v3342 = vshrl.u32 %v3310, 16
        %v3343 = vshrl.u32 %v3311, 16
        %v3344 = vshrl.u32 %v3312, 16
        %v3345 = vshrl.u32 %v3313, 16
        %v3346 = vshrl.u32 %v3314, 16
        %v3347 = vshrl.u32 %v3315, 16
        %v3348 = vxor.u32 %v3284, %v3316
        %v3349 = vxor.u32 %v3285, %v3317
        %v3350 = vxor.u32 %v3286, %v3318
        %v3351 = vxor.u32 %v3287, %v3319
        %v3352 = vxor.u32 %v3288, %v3320
        %v3353 = vxor.u32 %v3289, %v3321
        %v3354 = vxor.u32 %v3290, %v3322
        %v3355 = vxor.u32 %v3291, %v3323
        %v3356 = vxor.u32 %v3292, %v3324
        %v3357 = vxor.u32 %v3293, %v3325
        %v3358 = vxor.u32 %v3294, %v3326
        %v3359 = vxor.u32 %v3295, %v3327
        %v3360 = vxor.u32 %v3296, %v3328
        %v3361 = vxor.u32 %v3297, %v3329
        %v3362 = vxor.u32 %v3298, %v3330
        %v3363 = vxor.u32 %v3299, %v3331
        %v3364 = vxor.u32 %v3300, %v3332
        %v3365 = vxor.u32 %v3301, %v3333
        %v3366 = vxor.u32 %v3302, %v3334
        %v3367 = vxor.u32 %v3303, %v3335
        %v3368 = vxor.u32 %v3304, %v3336
        %v3369 = vxor.u32 %v3305, %v3337
        %v3370 = vxor.u32 %v3306, %v3338
        %v3371 = vxor.u32 %v3307, %v3339
        %v3372 = vxor.u32 %v3308, %v3340
        %v3373 = vxor.u32 %v3309, %v3341
        %v3374 = vxor.u32 %v3310, %v3342
        %v3375 = vxor.u32 %v3311, %v3343
        %v3376 = vxor.u32 %v3312, %v3344
        %v3377 = vxor.u32 %v3313, %v3345
        %v3378 = vxor.u32 %v3314, %v3346
        %v3379 = vxor.u32 %v3315, %v3347
        %v3380 = vshrl.u32 %v3348, 8
        %v3381 = vshrl.u32 %v3349, 8
        %v3382 = vshrl.u32 %v3350, 8
        %v3383 = vshrl.u32 %v3351, 8
        %v3384 = vshrl.u32 %v3352, 8
        %v3385 = vshrl.u32 %v3353, 8
        %v3386 = vshrl.u32 %v3354, 8
        %v3387 = vshrl.u32 %v3355, 8
        %v3388 = vshrl.u32 %v3356, 8
        %v3389 = vshrl.u32 %v3357, 8
        %v3390 = vshrl.u32 %v3358, 8
        %v3391 = vshrl.u32 %v3359, 8
        %v3392 = vshrl.u32 %v3360, 8
        %v3393 = vshrl.u32 %v3361, 8
        %v3394 = vshrl.u32 %v3362, 8
        %v3395 = vshrl.u32 %v3363, 8
        %v3396 = vshrl.u32 %v3364, 8
        %v3397 = vshrl.u32 %v3365, 8
        %v3398 = vshrl.u32 %v3366, 8
        %v3399 = vshrl.u32 %v3367, 8
        %v3400 = vshrl.u32 %v3368, 8
        %v3401 = vshrl.u32 %v3369, 8
        %v3402 = vshrl.u32 %v3370, 8
        %v3403 = vshrl.u32 %v3371, 8
        %v3404 = vshrl.u32 %v3372, 8
        %v3405 = vshrl.u32 %v3373, 8
        %v3406 = vshrl.u32 %v3374, 8
        %v3407 = vshrl.u32 %v3375, 8
        %v3408 = vshrl.u32 %v3376, 8
        %v3409 = vshrl.u32 %v3377, 8
        %v3410 = vshrl.u32 %v3378, 8
        %v3411 = vshrl.u32 %v3379, 8
        %v3412 = vmul.f32 %v3021, 16777216.0
        %v3413 = vmul.f32 %v3023, 16777216.0
        %v3414 = vmul.f32 %v3025, 16777216.0
        %v3415 = vmul.f32 %v3027, 16777216.0
        %v3416 = vmul.f32 %v3029, 16777216.0
        %v3417 = vmul.f32 %v3031, 16777216.0
        %v3418 = vmul.f32 %v3033, 16777216.0
        %v3419 = vmul.f32 %v3035, 16777216.0
        %v3420 = vmul.f32 %v3037, 16777216.0
        %v3421 = vmul.f32 %v3039, 16777216.0
        %v3422 = vmul.f32 %v3041, 16777216.0
        %v3423 = vmul.f32 %v3043, 16777216.0
        %v3424 = vmul.f32 %v3045, 16777216.0
        %v3425 = vmul.f32 %v3047, 16777216.0
        %v3426 = vmul.f32 %v3049, 16777216.0
        %v3427 = vmul.f32 %v3051, 16777216.0
        %v3428 = vmul.f32 %v3053, 16777216.0
        %v3429 = vmul.f32 %v3055, 16777216.0
        %v3430 = vmul.f32 %v3057, 16777216.0
        %v3431 = vmul.f32 %v3059, 16777216.0
        %v3432 = vmul.f32 %v3061, 16777216.0
        %v3433 = vmul.f32 %v3063, 16777216.0
        %v3434 = vmul.f32 %v3065, 16777216.0
        %v3435 = vmul.f32 %v3067, 16777216.0
        %v3436 = vmul.f32 %v3069, 16777216.0
        %v3437 = vmul.f32 %v3071, 16777216.0
        %v3438 = vmul.f32 %v3073, 16777216.0
        %v3439 = vmul.f32 %v3075, 16777216.0
        %v3440 = vmul.f32 %v3077, 16777216.0
        %v3441 = vmul.f32 %v3079, 16777216.0
        %v3442 = vmul.f32 %v3081, 16777216.0
        %v3443 = vmul.f32 %v3083, 16777216.0
        %v3444 = vcvt.f32.s32.to.zero.pseudo %v3412
        %v3445 = vcvt.f32.s32.to.zero.pseudo %v3413
        %v3446 = vcvt.f32.s32.to.zero.pseudo %v3414
        %v3447 = vcvt.f32.s32.to.zero.pseudo %v3415
        %v3448 = vcvt.f32.s32.to.zero.pseudo %v3416
        %v3449 = vcvt.f32.s32.to.zero.pseudo %v3417
        %v3450 = vcvt.f32.s32.to.zero.pseudo %v3418
        %v3451 = vcvt.f32.s32.to.zero.pseudo %v3419
        %v3452 = vcvt.f32.s32.to.zero.pseudo %v3420
        %v3453 = vcvt.f32.s32.to.zero.pseudo %v3421
        %v3454 = vcvt.f32.s32.to.zero.pseudo %v3422
        %v3455 = vcvt.f32.s32.to.zero.pseudo %v3423
        %v3456 = vcvt.f32.s32.to.zero.pseudo %v3424
        %v3457 = vcvt.f32.s32.to.zero.pseudo %v3425
        %v3458 = vcvt.f32.s32.to.zero.pseudo %v3426
        %v3459 = vcvt.f32.s32.to.zero.pseudo %v3427
        %v3460 = vcvt.f32.s32.to.zero.pseudo %v3428
        %v3461 = vcvt.f32.s32.to.zero.pseudo %v3429
        %v3462 = vcvt.f32.s32.to.zero.pseudo %v3430
        %v3463 = vcvt.f32.s32.to.zero.pseudo %v3431
        %v3464 = vcvt.f32.s32.to.zero.pseudo %v3432
        %v3465 = vcvt.f32.s32.to.zero.pseudo %v3433
        %v3466 = vcvt.f32.s32.to.zero.pseudo %v3434
        %v3467 = vcvt.f32.s32.to.zero.pseudo %v3435
        %v3468 = vcvt.f32.s32.to.zero.pseudo %v3436
        %v3469 = vcvt.f32.s32.to.zero.pseudo %v3437
        %v3470 = vcvt.f32.s32.to.zero.pseudo %v3438
        %v3471 = vcvt.f32.s32.to.zero.pseudo %v3439
        %v3472 = vcvt.f32.s32.to.zero.pseudo %v3440
        %v3473 = vcvt.f32.s32.to.zero.pseudo %v3441
        %v3474 = vcvt.f32.s32.to.zero.pseudo %v3442
        %v3475 = vcvt.f32.s32.to.zero.pseudo %v3443
        %vm3476 = vcmp.lt.s32.totalorder %v3380, %v3444
        %vm3477 = vcmp.lt.s32.totalorder %v3381, %v3445
        %vm3478 = vcmp.lt.s32.totalorder %v3382, %v3446
        %vm3479 = vcmp.lt.s32.totalorder %v3383, %v3447
        %vm3480 = vcmp.lt.s32.totalorder %v3384, %v3448
        %vm3481 = vcmp.lt.s32.totalorder %v3385, %v3449
        %vm3482 = vcmp.lt.s32.totalorder %v3386, %v3450
        %vm3483 = vcmp.lt.s32.totalorder %v3387, %v3451
        %vm3484 = vcmp.lt.s32.totalorder %v3388, %v3452
        %vm3485 = vcmp.lt.s32.totalorder %v3389, %v3453
        %vm3486 = vcmp.lt.s32.totalorder %v3390, %v3454
        %vm3487 = vcmp.lt.s32.totalorder %v3391, %v3455
        %vm3488 = vcmp.lt.s32.totalorder %v3392, %v3456
        %vm3489 = vcmp.lt.s32.totalorder %v3393, %v3457
        %vm3490 = vcmp.lt.s32.totalorder %v3394, %v3458
        %vm3491 = vcmp.lt.s32.totalorder %v3395, %v3459
        %vm3492 = vcmp.lt.s32.totalorder %v3396, %v3460
        %vm3493 = vcmp.lt.s32.totalorder %v3397, %v3461
        %vm3494 = vcmp.lt.s32.totalorder %v3398, %v3462
        %vm3495 = vcmp.lt.s32.totalorder %v3399, %v3463
        %vm3496 = vcmp.lt.s32.totalorder %v3400, %v3464
        %vm3497 = vcmp.lt.s32.totalorder %v3401, %v3465
        %vm3498 = vcmp.lt.s32.totalorder %v3402, %v3466
        %vm3499 = vcmp.lt.s32.totalorder %v3403, %v3467
        %vm3500 = vcmp.lt.s32.totalorder %v3404, %v3468
        %vm3501 = vcmp.lt.s32.totalorder %v3405, %v3469
        %vm3502 = vcmp.lt.s32.totalorder %v3406, %v3470
        %vm3503 = vcmp.lt.s32.totalorder %v3407, %v3471
        %vm3504 = vcmp.lt.s32.totalorder %v3408, %v3472
        %vm3505 = vcmp.lt.s32.totalorder %v3409, %v3473
        %vm3506 = vcmp.lt.s32.totalorder %v3410, %v3474
        %vm3507 = vcmp.lt.s32.totalorder %v3411, %v3475
        %v3508 = vsel %vm3476, 1.0, 0.0
        %v3509 = vsel %vm3477, 1.0, 0.0
        %v3510 = vsel %vm3478, 1.0, 0.0
        %v3511 = vsel %vm3479, 1.0, 0.0
        %v3512 = vsel %vm3480, 1.0, 0.0
        %v3513 = vsel %vm3481, 1.0, 0.0
        %v3514 = vsel %vm3482, 1.0, 0.0
        %v3515 = vsel %vm3483, 1.0, 0.0
        %v3516 = vsel %vm3484, 1.0, 0.0
        %v3517 = vsel %vm3485, 1.0, 0.0
        %v3518 = vsel %vm3486, 1.0, 0.0
        %v3519 = vsel %vm3487, 1.0, 0.0
        %v3520 = vsel %vm3488, 1.0, 0.0
        %v3521 = vsel %vm3489, 1.0, 0.0
        %v3522 = vsel %vm3490, 1.0, 0.0
        %v3523 = vsel %vm3491, 1.0, 0.0
        %v3524 = vsel %vm3492, 1.0, 0.0
        %v3525 = vsel %vm3493, 1.0, 0.0
        %v3526 = vsel %vm3494, 1.0, 0.0
        %v3527 = vsel %vm3495, 1.0, 0.0
        %v3528 = vsel %vm3496, 1.0, 0.0
        %v3529 = vsel %vm3497, 1.0, 0.0
        %v3530 = vsel %vm3498, 1.0, 0.0
        %v3531 = vsel %vm3499, 1.0, 0.0
        %v3532 = vsel %vm3500, 1.0, 0.0
        %v3533 = vsel %vm3501, 1.0, 0.0
        %v3534 = vsel %vm3502, 1.0, 0.0
        %v3535 = vsel %vm3503, 1.0, 0.0
        %v3536 = vsel %vm3504, 1.0, 0.0
        %v3537 = vsel %vm3505, 1.0, 0.0
        %v3538 = vsel %vm3506, 1.0, 0.0
        %v3539 = vsel %vm3507, 1.0, 0.0
        %v3540 = vpack.c.bf16 %v3510, %v3508
        %v3541 = vpack.c.bf16 %v3511, %v3509
        %v3542 = vpack.c.bf16 %v3514, %v3512
        %v3543 = vpack.c.bf16 %v3515, %v3513
        %v3544 = vpack.c.bf16 %v3518, %v3516
        %v3545 = vpack.c.bf16 %v3519, %v3517
        %v3546 = vpack.c.bf16 %v3522, %v3520
        %v3547 = vpack.c.bf16 %v3523, %v3521
        %v3548 = vpack.c.bf16 %v3526, %v3524
        %v3549 = vpack.c.bf16 %v3527, %v3525
        %v3550 = vpack.c.bf16 %v3530, %v3528
        %v3551 = vpack.c.bf16 %v3531, %v3529
        %v3552 = vpack.c.bf16 %v3534, %v3532
        %v3553 = vpack.c.bf16 %v3535, %v3533
        %v3554 = vpack.c.bf16 %v3538, %v3536
        %v3555 = vpack.c.bf16 %v3539, %v3537
        %3556 = vmatprep.subr.bf16.mxu0 0
        %3557 = vmatpush1.bf16.msra.mxu0 %v407
        %3558 = vmatprep.subr.bf16.mxu0 0
        %3559 = vmatpush1.bf16.msra.mxu0 %v408
        %3560 = vmatprep.subr.bf16.mxu0 0
        %3561 = vmatpush1.bf16.msra.mxu0 %v409
        %3562 = vmatprep.subr.bf16.mxu0 0
        %3563 = vmatpush1.bf16.msra.mxu0 %v410
        %3564 = vmatprep.subr.bf16.mxu0 0
        %3565 = vmatpush1.bf16.msra.mxu0 %v411
        %3566 = vmatprep.subr.bf16.mxu0 0
        %3567 = vmatpush1.bf16.msra.mxu0 %v412
        %3568 = vmatprep.subr.bf16.mxu0 0
        %3569 = vmatpush1.bf16.msra.mxu0 %v413
        %3570 = vmatprep.subr.bf16.mxu0 0
        %3571 = vmatpush1.bf16.msra.mxu0 %v414
        %3572 = vmatprep.subr.bf16.mxu0 0
        %3573 = vmatpush1.bf16.msra.mxu0 %v415
        %3574 = vmatprep.subr.bf16.mxu0 0
        %3575 = vmatpush1.bf16.msra.mxu0 %v416
        %3576 = vmatprep.subr.bf16.mxu0 0
        %3577 = vmatpush1.bf16.msra.mxu0 %v417
        %3578 = vmatprep.subr.bf16.mxu0 0
        %3579 = vmatpush1.bf16.msra.mxu0 %v418
        %3580 = vmatprep.subr.bf16.mxu0 0
        %3581 = vmatpush1.bf16.msra.mxu0 %v419
        %3582 = vmatprep.subr.bf16.mxu0 0
        %3583 = vmatpush1.bf16.msra.mxu0 %v420
        %3584 = vmatprep.subr.bf16.mxu0 0
        %3585 = vmatpush1.bf16.msra.mxu0 %v421
        %3586 = vmatprep.subr.bf16.mxu0 0
        %3587 = vmatpush1.bf16.msra.mxu0 %v422
        %3588 = vmatprep.mubr.bf16.mxu0 %v3541
        %3589 = vmatmul.mubr.bf16.gmra.mrb[0].mxu0 %v3540
        %v3590 = vpop.f32.mrb[0].mxu0
        %v3591 = vadd.f32 0.0, %v3590
        %v3592 = vpop.f32.mrb[0].mxu0
        %v3593 = vpop.f32.mrb[0].mxu0
        %v3594 = vadd.f32 0.0, %v3593
        %v3595 = vpop.f32.mrb[0].mxu0
        %3596 = vmatprep.mubr.bf16.mxu0 %v3543
        %3597 = vmatmul.mubr.bf16.gmra.mrb[0].mxu0 %v3542
        %v3598 = vpop.f32.mrb[0].mxu0
        %v3599 = vadd.f32 0.0, %v3598
        %v3600 = vpop.f32.mrb[0].mxu0
        %v3601 = vpop.f32.mrb[0].mxu0
        %v3602 = vadd.f32 0.0, %v3601
        %v3603 = vpop.f32.mrb[0].mxu0
        %3604 = vmatprep.mubr.bf16.mxu0 %v3545
        %3605 = vmatmul.mubr.bf16.gmra.mrb[0].mxu0 %v3544
        %v3606 = vpop.f32.mrb[0].mxu0
        %v3607 = vadd.f32 0.0, %v3606
        %v3608 = vpop.f32.mrb[0].mxu0
        %v3609 = vpop.f32.mrb[0].mxu0
        %v3610 = vadd.f32 0.0, %v3609
        %v3611 = vpop.f32.mrb[0].mxu0
        %3612 = vmatprep.mubr.bf16.mxu0 %v3547
        %3613 = vmatmul.mubr.bf16.gmra.mrb[0].mxu0 %v3546
        %v3614 = vpop.f32.mrb[0].mxu0
        %v3615 = vadd.f32 0.0, %v3614
        %v3616 = vpop.f32.mrb[0].mxu0
        %v3617 = vpop.f32.mrb[0].mxu0
        %v3618 = vadd.f32 0.0, %v3617
        %v3619 = vpop.f32.mrb[0].mxu0
        %3620 = vmatprep.mubr.bf16.mxu0 %v3549
        %3621 = vmatmul.mubr.bf16.gmra.mrb[0].mxu0 %v3548
        %v3622 = vpop.f32.mrb[0].mxu0
        %v3623 = vadd.f32 0.0, %v3622
        %v3624 = vpop.f32.mrb[0].mxu0
        %v3625 = vpop.f32.mrb[0].mxu0
        %v3626 = vadd.f32 0.0, %v3625
        %v3627 = vpop.f32.mrb[0].mxu0
        %3628 = vmatprep.mubr.bf16.mxu0 %v3551
        %3629 = vmatmul.mubr.bf16.gmra.mrb[0].mxu0 %v3550
        %v3630 = vpop.f32.mrb[0].mxu0
        %v3631 = vadd.f32 0.0, %v3630
        %v3632 = vpop.f32.mrb[0].mxu0
        %v3633 = vpop.f32.mrb[0].mxu0
        %v3634 = vadd.f32 0.0, %v3633
        %v3635 = vpop.f32.mrb[0].mxu0
        %3636 = vmatprep.mubr.bf16.mxu0 %v3553
        %3637 = vmatmul.mubr.bf16.gmra.mrb[0].mxu0 %v3552
        %v3638 = vpop.f32.mrb[0].mxu0
        %v3639 = vadd.f32 0.0, %v3638
        %v3640 = vpop.f32.mrb[0].mxu0
        %v3641 = vpop.f32.mrb[0].mxu0
        %v3642 = vadd.f32 0.0, %v3641
        %v3643 = vpop.f32.mrb[0].mxu0
        %3644 = vmatprep.mubr.bf16.mxu0 %v3555
        %3645 = vmatmul.mubr.bf16.gmra.mrb[0].mxu0 %v3554
        %v3646 = vpop.f32.mrb[0].mxu0
        %v3647 = vadd.f32 0.0, %v3646
        %v3648 = vpop.f32.mrb[0].mxu0
        %v3649 = vpop.f32.mrb[0].mxu0
        %v3650 = vadd.f32 0.0, %v3649
        %v3651 = vpop.f32.mrb[0].mxu0
        %3652 = vdwg.mxu0
        %v3653 = vunpack.c.l.bf16 %v440
        %v3654 = vunpack.c.l.bf16 %v441
        %v3655 = vunpack.c.h.bf16 %v440
        %v3656 = vunpack.c.h.bf16 %v441
        %v3657 = vunpack.c.l.bf16 %v442
        %v3658 = vunpack.c.l.bf16 %v443
        %v3659 = vunpack.c.h.bf16 %v442
        %v3660 = vunpack.c.h.bf16 %v443
        %v3661 = vunpack.c.l.bf16 %v444
        %v3662 = vunpack.c.l.bf16 %v445
        %v3663 = vunpack.c.h.bf16 %v444
        %v3664 = vunpack.c.h.bf16 %v445
        %v3665 = vunpack.c.l.bf16 %v446
        %v3666 = vunpack.c.l.bf16 %v447
        %v3667 = vunpack.c.h.bf16 %v446
        %v3668 = vunpack.c.h.bf16 %v447
        %v3669 = vunpack.c.l.bf16 %v448
        %v3670 = vunpack.c.l.bf16 %v449
        %v3671 = vunpack.c.h.bf16 %v448
        %v3672 = vunpack.c.h.bf16 %v449
        %v3673 = vunpack.c.l.bf16 %v450
        %v3674 = vunpack.c.l.bf16 %v451
        %v3675 = vunpack.c.h.bf16 %v450
        %v3676 = vunpack.c.h.bf16 %v451
        %v3677 = vunpack.c.l.bf16 %v452
        %v3678 = vunpack.c.l.bf16 %v453
        %v3679 = vunpack.c.h.bf16 %v452
        %v3680 = vunpack.c.h.bf16 %v453
        %v3681 = vunpack.c.l.bf16 %v454
        %v3682 = vunpack.c.l.bf16 %v455
        %v3683 = vunpack.c.h.bf16 %v454
        %v3684 = vunpack.c.h.bf16 %v455
        %v3685 = vmul.f32 %v3653, %v427
        %v3686 = vmul.f32 %v3654, %v431
        %v3687 = vmul.f32 %v3655, %v427
        %v3688 = vmul.f32 %v3656, %v431
        %v3689 = vmul.f32 %v3657, %v427
        %v3690 = vmul.f32 %v3658, %v431
        %v3691 = vmul.f32 %v3659, %v427
        %v3692 = vmul.f32 %v3660, %v431
        %v3693 = vmul.f32 %v3661, %v427
        %v3694 = vmul.f32 %v3662, %v431
        %v3695 = vmul.f32 %v3663, %v427
        %v3696 = vmul.f32 %v3664, %v431
        %v3697 = vmul.f32 %v3665, %v427
        %v3698 = vmul.f32 %v3666, %v431
        %v3699 = vmul.f32 %v3667, %v427
        %v3700 = vmul.f32 %v3668, %v431
        %v3701 = vmul.f32 %v3669, %v427
        %v3702 = vmul.f32 %v3670, %v431
        %v3703 = vmul.f32 %v3671, %v427
        %v3704 = vmul.f32 %v3672, %v431
        %v3705 = vmul.f32 %v3673, %v427
        %v3706 = vmul.f32 %v3674, %v431
        %v3707 = vmul.f32 %v3675, %v427
        %v3708 = vmul.f32 %v3676, %v431
        %v3709 = vmul.f32 %v3677, %v427
        %v3710 = vmul.f32 %v3678, %v431
        %v3711 = vmul.f32 %v3679, %v427
        %v3712 = vmul.f32 %v3680, %v431
        %v3713 = vmul.f32 %v3681, %v427
        %v3714 = vmul.f32 %v3682, %v431
        %v3715 = vmul.f32 %v3683, %v427
        %v3716 = vmul.f32 %v3684, %v431
        %v3717 = vadd.f32 %v3685, %v3686
        %v3718 = vadd.f32 %v3717, %v3687
        %v3719 = vadd.f32 %v3718, %v3688
        %v3720 = vadd.f32 %v3719, %v3689
        %v3721 = vadd.f32 %v3720, %v3690
        %v3722 = vadd.f32 %v3721, %v3691
        %v3723 = vadd.f32 %v3722, %v3692
        %v3724 = vadd.f32 %v3723, %v3693
        %v3725 = vadd.f32 %v3724, %v3694
        %v3726 = vadd.f32 %v3725, %v3695
        %v3727 = vadd.f32 %v3726, %v3696
        %v3728 = vadd.f32 %v3727, %v3697
        %v3729 = vadd.f32 %v3728, %v3698
        %v3730 = vadd.f32 %v3729, %v3699
        %v3731 = vadd.f32 %v3730, %v3700
        %v3732 = vadd.f32 %v3731, %v3701
        %v3733 = vadd.f32 %v3732, %v3702
        %v3734 = vadd.f32 %v3733, %v3703
        %v3735 = vadd.f32 %v3734, %v3704
        %v3736 = vadd.f32 %v3735, %v3705
        %v3737 = vadd.f32 %v3736, %v3706
        %v3738 = vadd.f32 %v3737, %v3707
        %v3739 = vadd.f32 %v3738, %v3708
        %v3740 = vadd.f32 %v3739, %v3709
        %v3741 = vadd.f32 %v3740, %v3710
        %v3742 = vadd.f32 %v3741, %v3711
        %v3743 = vadd.f32 %v3742, %v3712
        %v3744 = vadd.f32 %v3743, %v3713
        %v3745 = vadd.f32 %v3744, %v3714
        %v3746 = vadd.f32 %v3745, %v3715
        %v3747 = vadd.f32 %v3746, %v3716
        %3748 = vadd.xlane.f32.xlu0 %v3747
        %v3749 = vpop.xlane.xlu0 %3748
        %v3750 = vrot.slane %v3749, 4
        %v3751 = vadd.f32 %v3749, %v3750
        %v3752 = vrot.slane %v3751, 2
        %v3753 = vadd.f32 %v3751, %v3752
        %v3754 = vrot.slane %v3753, 1
        %v3755 = vadd.f32 %v3753, %v3754
        %s3756 = vtos %v3755
        %v3757 = vunpack.c.l.bf16 %v966
        %v3758 = vunpack.c.h.bf16 %v966
        %v3759 = vunpack.c.l.bf16 %v967
        %v3760 = vunpack.c.h.bf16 %v967
        %v3761 = vunpack.c.l.bf16 %v968
        %v3762 = vunpack.c.h.bf16 %v968
        %v3763 = vunpack.c.l.bf16 %v969
        %v3764 = vunpack.c.h.bf16 %v969
        %v3765 = vunpack.c.l.bf16 %v970
        %v3766 = vunpack.c.h.bf16 %v970
        %v3767 = vunpack.c.l.bf16 %v971
        %v3768 = vunpack.c.h.bf16 %v971
        %v3769 = vunpack.c.l.bf16 %v972
        %v3770 = vunpack.c.h.bf16 %v972
        %v3771 = vunpack.c.l.bf16 %v973
        %v3772 = vunpack.c.h.bf16 %v973
        %v3773 = vmul.f32 %v3757, %v438
        %v3774 = vmul.f32 %v3758, %v438
        %v3775 = vmul.f32 %v3759, %v438
        %v3776 = vmul.f32 %v3760, %v438
        %v3777 = vmul.f32 %v3761, %v438
        %v3778 = vmul.f32 %v3762, %v438
        %v3779 = vmul.f32 %v3763, %v438
        %v3780 = vmul.f32 %v3764, %v438
        %v3781 = vmul.f32 %v3765, %v438
        %v3782 = vmul.f32 %v3766, %v438
        %v3783 = vmul.f32 %v3767, %v438
        %v3784 = vmul.f32 %v3768, %v438
        %v3785 = vmul.f32 %v3769, %v438
        %v3786 = vmul.f32 %v3770, %v438
        %v3787 = vmul.f32 %v3771, %v438
        %v3788 = vmul.f32 %v3772, %v438
        %v3789 = vadd.f32 %v3773, %v3774
        %v3790 = vadd.f32 %v3789, %v3775
        %v3791 = vadd.f32 %v3790, %v3776
        %v3792 = vadd.f32 %v3791, %v3777
        %v3793 = vadd.f32 %v3792, %v3778
        %v3794 = vadd.f32 %v3793, %v3779
        %v3795 = vadd.f32 %v3794, %v3780
        %v3796 = vadd.f32 %v3795, %v3781
        %v3797 = vadd.f32 %v3796, %v3782
        %v3798 = vadd.f32 %v3797, %v3783
        %v3799 = vadd.f32 %v3798, %v3784
        %v3800 = vadd.f32 %v3799, %v3785
        %v3801 = vadd.f32 %v3800, %v3786
        %v3802 = vadd.f32 %v3801, %v3787
        %v3803 = vadd.f32 %v3802, %v3788
        %3804 = vadd.xlane.f32.xlu0 %v3803
        %v3805 = vpop.xlane.xlu0 %3804
        %v3806 = vrot.slane %v3805, 4
        %v3807 = vadd.f32 %v3805, %v3806
        %v3808 = vrot.slane %v3807, 2
        %v3809 = vadd.f32 %v3807, %v3808
        %v3810 = vrot.slane %v3809, 1
        %v3811 = vadd.f32 %v3809, %v3810
        %s3812 = vtos %v3811
        %v3813 = vmul.f32 %v491, %v3757
        %v3814 = vmul.f32 %v494, %v3758
        %v3815 = vmul.f32 %v499, %v3759
        %v3816 = vmul.f32 %v502, %v3760
        %v3817 = vmul.f32 %v507, %v3761
        %v3818 = vmul.f32 %v510, %v3762
        %v3819 = vmul.f32 %v515, %v3763
        %v3820 = vmul.f32 %v518, %v3764
        %v3821 = vmul.f32 %v523, %v3765
        %v3822 = vmul.f32 %v526, %v3766
        %v3823 = vmul.f32 %v531, %v3767
        %v3824 = vmul.f32 %v534, %v3768
        %v3825 = vmul.f32 %v539, %v3769
        %v3826 = vmul.f32 %v542, %v3770
        %v3827 = vmul.f32 %v547, %v3771
        %v3828 = vmul.f32 %v550, %v3772
        %v3829 = vadd.f32 %v3813, %v3814
        %v3830 = vadd.f32 %v3829, %v3815
        %v3831 = vadd.f32 %v3830, %v3816
        %v3832 = vadd.f32 %v3831, %v3817
        %v3833 = vadd.f32 %v3832, %v3818
        %v3834 = vadd.f32 %v3833, %v3819
        %v3835 = vadd.f32 %v3834, %v3820
        %v3836 = vadd.f32 %v3835, %v3821
        %v3837 = vadd.f32 %v3836, %v3822
        %v3838 = vadd.f32 %v3837, %v3823
        %v3839 = vadd.f32 %v3838, %v3824
        %v3840 = vadd.f32 %v3839, %v3825
        %v3841 = vadd.f32 %v3840, %v3826
        %v3842 = vadd.f32 %v3841, %v3827
        %v3843 = vadd.f32 %v3842, %v3828
        %3844 = vadd.xlane.f32.xlu0 %v3843
        %v3845 = vpop.xlane.xlu0 %3844
        %v3846 = vrot.slane %v3845, 4
        %v3847 = vadd.f32 %v3845, %v3846
        %v3848 = vrot.slane %v3847, 2
        %v3849 = vadd.f32 %v3847, %v3848
        %v3850 = vrot.slane %v3849, 1
        %v3851 = vadd.f32 %v3849, %v3850
        %s3852 = vtos %v3851
        %s3853 = sadd.f32 %s3756, %s3812
        %s3854 = sadd.f32 %s3853, %s3852
        %v3855 = vunpack.c.l.bf16 %v3540
        %v3856 = vunpack.c.l.bf16 %v3541
        %v3857 = vunpack.c.h.bf16 %v3540
        %v3858 = vunpack.c.h.bf16 %v3541
        %v3859 = vunpack.c.l.bf16 %v3542
        %v3860 = vunpack.c.l.bf16 %v3543
        %v3861 = vunpack.c.h.bf16 %v3542
        %v3862 = vunpack.c.h.bf16 %v3543
        %v3863 = vunpack.c.l.bf16 %v3544
        %v3864 = vunpack.c.l.bf16 %v3545
        %v3865 = vunpack.c.h.bf16 %v3544
        %v3866 = vunpack.c.h.bf16 %v3545
        %v3867 = vunpack.c.l.bf16 %v3546
        %v3868 = vunpack.c.l.bf16 %v3547
        %v3869 = vunpack.c.h.bf16 %v3546
        %v3870 = vunpack.c.h.bf16 %v3547
        %v3871 = vunpack.c.l.bf16 %v3548
        %v3872 = vunpack.c.l.bf16 %v3549
        %v3873 = vunpack.c.h.bf16 %v3548
        %v3874 = vunpack.c.h.bf16 %v3549
        %v3875 = vunpack.c.l.bf16 %v3550
        %v3876 = vunpack.c.l.bf16 %v3551
        %v3877 = vunpack.c.h.bf16 %v3550
        %v3878 = vunpack.c.h.bf16 %v3551
        %v3879 = vunpack.c.l.bf16 %v3552
        %v3880 = vunpack.c.l.bf16 %v3553
        %v3881 = vunpack.c.h.bf16 %v3552
        %v3882 = vunpack.c.h.bf16 %v3553
        %v3883 = vunpack.c.l.bf16 %v3554
        %v3884 = vunpack.c.l.bf16 %v3555
        %v3885 = vunpack.c.h.bf16 %v3554
        %v3886 = vunpack.c.h.bf16 %v3555
        %v3887 = vmul.f32 %v3855, %v427
        %v3888 = vmul.f32 %v3856, %v431
        %v3889 = vmul.f32 %v3857, %v427
        %v3890 = vmul.f32 %v3858, %v431
        %v3891 = vmul.f32 %v3859, %v427
        %v3892 = vmul.f32 %v3860, %v431
        %v3893 = vmul.f32 %v3861, %v427
        %v3894 = vmul.f32 %v3862, %v431
        %v3895 = vmul.f32 %v3863, %v427
        %v3896 = vmul.f32 %v3864, %v431
        %v3897 = vmul.f32 %v3865, %v427
        %v3898 = vmul.f32 %v3866, %v431
        %v3899 = vmul.f32 %v3867, %v427
        %v3900 = vmul.f32 %v3868, %v431
        %v3901 = vmul.f32 %v3869, %v427
        %v3902 = vmul.f32 %v3870, %v431
        %v3903 = vmul.f32 %v3871, %v427
        %v3904 = vmul.f32 %v3872, %v431
        %v3905 = vmul.f32 %v3873, %v427
        %v3906 = vmul.f32 %v3874, %v431
        %v3907 = vmul.f32 %v3875, %v427
        %v3908 = vmul.f32 %v3876, %v431
        %v3909 = vmul.f32 %v3877, %v427
        %v3910 = vmul.f32 %v3878, %v431
        %v3911 = vmul.f32 %v3879, %v427
        %v3912 = vmul.f32 %v3880, %v431
        %v3913 = vmul.f32 %v3881, %v427
        %v3914 = vmul.f32 %v3882, %v431
        %v3915 = vmul.f32 %v3883, %v427
        %v3916 = vmul.f32 %v3884, %v431
        %v3917 = vmul.f32 %v3885, %v427
        %v3918 = vmul.f32 %v3886, %v431
        %v3919 = vadd.f32 %v3887, %v3888
        %v3920 = vadd.f32 %v3919, %v3889
        %v3921 = vadd.f32 %v3920, %v3890
        %v3922 = vadd.f32 %v3921, %v3891
        %v3923 = vadd.f32 %v3922, %v3892
        %v3924 = vadd.f32 %v3923, %v3893
        %v3925 = vadd.f32 %v3924, %v3894
        %v3926 = vadd.f32 %v3925, %v3895
        %v3927 = vadd.f32 %v3926, %v3896
        %v3928 = vadd.f32 %v3927, %v3897
        %v3929 = vadd.f32 %v3928, %v3898
        %v3930 = vadd.f32 %v3929, %v3899
        %v3931 = vadd.f32 %v3930, %v3900
        %v3932 = vadd.f32 %v3931, %v3901
        %v3933 = vadd.f32 %v3932, %v3902
        %v3934 = vadd.f32 %v3933, %v3903
        %v3935 = vadd.f32 %v3934, %v3904
        %v3936 = vadd.f32 %v3935, %v3905
        %v3937 = vadd.f32 %v3936, %v3906
        %v3938 = vadd.f32 %v3937, %v3907
        %v3939 = vadd.f32 %v3938, %v3908
        %v3940 = vadd.f32 %v3939, %v3909
        %v3941 = vadd.f32 %v3940, %v3910
        %v3942 = vadd.f32 %v3941, %v3911
        %v3943 = vadd.f32 %v3942, %v3912
        %v3944 = vadd.f32 %v3943, %v3913
        %v3945 = vadd.f32 %v3944, %v3914
        %v3946 = vadd.f32 %v3945, %v3915
        %v3947 = vadd.f32 %v3946, %v3916
        %v3948 = vadd.f32 %v3947, %v3917
        %v3949 = vadd.f32 %v3948, %v3918
        %3950 = vadd.xlane.f32.xlu0 %v3949
        %v3951 = vpop.xlane.xlu0 %3950
        %v3952 = vrot.slane %v3951, 4
        %v3953 = vadd.f32 %v3951, %v3952
        %v3954 = vrot.slane %v3953, 2
        %v3955 = vadd.f32 %v3953, %v3954
        %v3956 = vrot.slane %v3955, 1
        %v3957 = vadd.f32 %v3955, %v3956
        %s3958 = vtos %v3957
        %v3959 = vunpack.c.l.bf16 %v2739
        %v3960 = vunpack.c.h.bf16 %v2739
        %v3961 = vunpack.c.l.bf16 %v2740
        %v3962 = vunpack.c.h.bf16 %v2740
        %v3963 = vunpack.c.l.bf16 %v2741
        %v3964 = vunpack.c.h.bf16 %v2741
        %v3965 = vunpack.c.l.bf16 %v2742
        %v3966 = vunpack.c.h.bf16 %v2742
        %v3967 = vunpack.c.l.bf16 %v2743
        %v3968 = vunpack.c.h.bf16 %v2743
        %v3969 = vunpack.c.l.bf16 %v2744
        %v3970 = vunpack.c.h.bf16 %v2744
        %v3971 = vunpack.c.l.bf16 %v2745
        %v3972 = vunpack.c.h.bf16 %v2745
        %v3973 = vunpack.c.l.bf16 %v2746
        %v3974 = vunpack.c.h.bf16 %v2746
        %v3975 = vmul.f32 %v3959, %v438
        %v3976 = vmul.f32 %v3960, %v438
        %v3977 = vmul.f32 %v3961, %v438
        %v3978 = vmul.f32 %v3962, %v438
        %v3979 = vmul.f32 %v3963, %v438
        %v3980 = vmul.f32 %v3964, %v438
        %v3981 = vmul.f32 %v3965, %v438
        %v3982 = vmul.f32 %v3966, %v438
        %v3983 = vmul.f32 %v3967, %v438
        %v3984 = vmul.f32 %v3968, %v438
        %v3985 = vmul.f32 %v3969, %v438
        %v3986 = vmul.f32 %v3970, %v438
        %v3987 = vmul.f32 %v3971, %v438
        %v3988 = vmul.f32 %v3972, %v438
        %v3989 = vmul.f32 %v3973, %v438
        %v3990 = vmul.f32 %v3974, %v438
        %v3991 = vadd.f32 %v3975, %v3976
        %v3992 = vadd.f32 %v3991, %v3977
        %v3993 = vadd.f32 %v3992, %v3978
        %v3994 = vadd.f32 %v3993, %v3979
        %v3995 = vadd.f32 %v3994, %v3980
        %v3996 = vadd.f32 %v3995, %v3981
        %v3997 = vadd.f32 %v3996, %v3982
        %v3998 = vadd.f32 %v3997, %v3983
        %v3999 = vadd.f32 %v3998, %v3984
        %v4000 = vadd.f32 %v3999, %v3985
        %v4001 = vadd.f32 %v4000, %v3986
        %v4002 = vadd.f32 %v4001, %v3987
        %v4003 = vadd.f32 %v4002, %v3988
        %v4004 = vadd.f32 %v4003, %v3989
        %v4005 = vadd.f32 %v4004, %v3990
        %4006 = vadd.xlane.f32.xlu0 %v4005
        %v4007 = vpop.xlane.xlu0 %4006
        %v4008 = vrot.slane %v4007, 4
        %v4009 = vadd.f32 %v4007, %v4008
        %v4010 = vrot.slane %v4009, 2
        %v4011 = vadd.f32 %v4009, %v4010
        %v4012 = vrot.slane %v4011, 1
        %v4013 = vadd.f32 %v4011, %v4012
        %s4014 = vtos %v4013
        %v4015 = vmul.f32 %v3591, %v3959
        %v4016 = vmul.f32 %v3594, %v3960
        %v4017 = vmul.f32 %v3599, %v3961
        %v4018 = vmul.f32 %v3602, %v3962
        %v4019 = vmul.f32 %v3607, %v3963
        %v4020 = vmul.f32 %v3610, %v3964
        %v4021 = vmul.f32 %v3615, %v3965
        %v4022 = vmul.f32 %v3618, %v3966
        %v4023 = vmul.f32 %v3623, %v3967
        %v4024 = vmul.f32 %v3626, %v3968
        %v4025 = vmul.f32 %v3631, %v3969
        %v4026 = vmul.f32 %v3634, %v3970
        %v4027 = vmul.f32 %v3639, %v3971
        %v4028 = vmul.f32 %v3642, %v3972
        %v4029 = vmul.f32 %v3647, %v3973
        %v4030 = vmul.f32 %v3650, %v3974
        %v4031 = vadd.f32 %v4015, %v4016
        %v4032 = vadd.f32 %v4031, %v4017
        %v4033 = vadd.f32 %v4032, %v4018
        %v4034 = vadd.f32 %v4033, %v4019
        %v4035 = vadd.f32 %v4034, %v4020
        %v4036 = vadd.f32 %v4035, %v4021
        %v4037 = vadd.f32 %v4036, %v4022
        %v4038 = vadd.f32 %v4037, %v4023
        %v4039 = vadd.f32 %v4038, %v4024
        %v4040 = vadd.f32 %v4039, %v4025
        %v4041 = vadd.f32 %v4040, %v4026
        %v4042 = vadd.f32 %v4041, %v4027
        %v4043 = vadd.f32 %v4042, %v4028
        %v4044 = vadd.f32 %v4043, %v4029
        %v4045 = vadd.f32 %v4044, %v4030
        %4046 = vadd.xlane.f32.xlu0 %v4045
        %v4047 = vpop.xlane.xlu0 %4046
        %v4048 = vrot.slane %v4047, 4
        %v4049 = vadd.f32 %v4047, %v4048
        %v4050 = vrot.slane %v4049, 2
        %v4051 = vadd.f32 %v4049, %v4050
        %v4052 = vrot.slane %v4051, 1
        %v4053 = vadd.f32 %v4051, %v4052
        %s4054 = vtos %v4053
        %s4055 = sadd.f32 %s3958, %s4014
        %s4056 = sadd.f32 %s4055, %s4054
        %s4057 = ssub.f32 %s3854, %s4056
        %v4058 = vstv %s4057
        %vm4059 = vcmask 0
        %4060 = vst.msk [vmem:[%s330] sm:$0x1] %vm4059, %v4058
        %4061 = vst [vmem:[%s336] sm:$0xff] %v3855
        %4062 = vst [vmem:[%s336 + $0x8] sm:$0xff] %v3856
        %4063 = vst [vmem:[%s336 + $0x10] sm:$0xff] %v3857
        %4064 = vst [vmem:[%s336 + $0x18] sm:$0xff] %v3858
        %4065 = vst [vmem:[%s336 + $0x20] sm:$0xff] %v3859
        %4066 = vst [vmem:[%s336 + $0x28] sm:$0xff] %v3860
        %4067 = vst [vmem:[%s336 + $0x30] sm:$0xff] %v3861
        %4068 = vst [vmem:[%s336 + $0x38] sm:$0xff] %v3862
        %4069 = vst [vmem:[%s336 + $0x40] sm:$0xff] %v3863
        %4070 = vst [vmem:[%s336 + $0x48] sm:$0xff] %v3864
        %4071 = vst [vmem:[%s336 + $0x50] sm:$0xff] %v3865
        %4072 = vst [vmem:[%s336 + $0x58] sm:$0xff] %v3866
        %4073 = vst [vmem:[%s336 + $0x60] sm:$0xff] %v3867
        %4074 = vst [vmem:[%s336 + $0x68] sm:$0xff] %v3868
        %4075 = vst [vmem:[%s336 + $0x70] sm:$0xff] %v3869
        %4076 = vst [vmem:[%s336 + $0x78] sm:$0xff] %v3870
        %4077 = vst [vmem:[%s336 + $0x80] sm:$0xff] %v3871
        %4078 = vst [vmem:[%s336 + $0x88] sm:$0xff] %v3872
        %4079 = vst [vmem:[%s336 + $0x90] sm:$0xff] %v3873
        %4080 = vst [vmem:[%s336 + $0x98] sm:$0xff] %v3874
        %4081 = vst [vmem:[%s336 + $0xa0] sm:$0xff] %v3875
        %4082 = vst [vmem:[%s336 + $0xa8] sm:$0xff] %v3876
        %4083 = vst [vmem:[%s336 + $0xb0] sm:$0xff] %v3877
        %4084 = vst [vmem:[%s336 + $0xb8] sm:$0xff] %v3878
        %4085 = vst [vmem:[%s336 + $0xc0] sm:$0xff] %v3879
        %4086 = vst [vmem:[%s336 + $0xc8] sm:$0xff] %v3880
        %4087 = vst [vmem:[%s336 + $0xd0] sm:$0xff] %v3881
        %4088 = vst [vmem:[%s336 + $0xd8] sm:$0xff] %v3882
        %4089 = vst [vmem:[%s336 + $0xe0] sm:$0xff] %v3883
        %4090 = vst [vmem:[%s336 + $0xe8] sm:$0xff] %v3884
        %4091 = vst [vmem:[%s336 + $0xf0] sm:$0xff] %v3885
        %4092 = vst [vmem:[%s336 + $0xf8] sm:$0xff] %v3886
        %p4093 = scmp.lt.s32.totalorder %s22, 1
        %s4094 = scalar_select %p4093, %s22, 1
        %s4095 = scalar_lea.vmem %s6, %s4094
        %s4096 = smul.u32 16, %s22
        %p4097 = scmp.lt.s32.totalorder %s4096, 31
        %s4098 = scalar_select %p4097, %s4096, 31
        %s4099 = smul.addr %s4098, 2
        %s4100 = smul.addr %s4099, 8
        %s4101 = scalar_lea.vmem %s7, %s4100
        // Predicated region
        $region49: #{tpu_custom_call.1} parent=43 // pred_check
          %p4102 = pneg %p176
        $region50: #{tpu_custom_call.1} parent=43 // pred_check_branch
          %4104 = sbr.rel (%p4102) target = $region52
        $region51: #{tpu_custom_call.1} parent=43 // pred_region
          _
        $region52: #{tpu_custom_call.1} parent=43 // pred_fallthru
          _
        // Predicated region
        $region53: #{tpu_custom_call.1} parent=43 // pred_check
          %p4105 = pneg %p202
        $region54: #{tpu_custom_call.1} parent=43 // pred_check_branch
          %4107 = sbr.rel (%p4105) target = $region56
        $region55: #{tpu_custom_call.1} parent=43 // pred_region
          %s4108 = smul.u32 16, %s22
        $region56: #{tpu_custom_call.1} parent=43 // pred_fallthru
          _
      $region44: #{tpu_custom_call.1} parent=5 // pred_fallthru
        _
      %p4109 = scmp.le.s32.totalorder 2, %s17
      // Predicated region
      $region57: #{tpu_custom_call.1} parent=5 // pred_check
        %p4110 = pneg %p4109
      $region58: #{tpu_custom_call.1} parent=5 // pred_check_branch
        %4112 = sbr.rel (%p4110) target = $region60
      $region59: #{tpu_custom_call.1} parent=5 // pred_region
        %s4113 = ssub.s32 %s17, 2
        // Predicated region
        $region61: #{tpu_custom_call.1} parent=59 // pred_check
          %p4114 = pneg %p182
        $region62: #{tpu_custom_call.1} parent=59 // pred_check_branch
          %4116 = sbr.rel (%p4114) target = $region64
        $region63: #{tpu_custom_call.1} parent=59 // pred_region
          %p4117 = scmp.lt.s32.totalorder %s23, 1
          %s4118 = scalar_select %p4117, %s23, 1
          %s4119 = scalar_lea.vmem %s6, %s4118
        $region64: #{tpu_custom_call.1} parent=59 // pred_fallthru
          _
        // Predicated region
        $region65: #{tpu_custom_call.1} parent=59 // pred_check
          %p4120 = pneg %p208
        $region66: #{tpu_custom_call.1} parent=59 // pred_check_branch
          %4122 = sbr.rel (%p4120) target = $region68
        $region67: #{tpu_custom_call.1} parent=59 // pred_region
          %s4123 = smul.u32 16, %s23
          %p4124 = scmp.lt.s32.totalorder %s4123, 31
          %s4125 = scalar_select %p4124, %s4123, 31
          %s4126 = smul.addr %s4125, 2
          %s4127 = smul.addr %s4126, 8
          %s4128 = scalar_lea.vmem %s7, %s4127
        $region68: #{tpu_custom_call.1} parent=59 // pred_fallthru
          _
      $region60: #{tpu_custom_call.1} parent=5 // pred_fallthru
        _
    $region6: #{tpu_custom_call.1} parent=1 // loop_footer
      %s21 = sadd.s32 1, %s17
    $region7: #{tpu_custom_call.1} parent=1 // loop_footer_branch
      %16 = sbr.rel target = $region3
    $region8: #{tpu_custom_call.1} parent=1 // loop_exit
      _
    %4129 = vsyncpa [#allocation4], 1
    %s4130 = scalar_lea.sflag [#allocation4], 1
    %4131 = vsyncpa %s4130, 1

</llo_original>
